<compile_context>
chip_gen: v6e
topology: v6e:2x2x1
jax: 0.10.0
libtpu: 0.0.40
codegen_flags: <defaults>
</compile_context>

<pallas_src>
import functools
import math

import jax
import jax.numpy as jnp
from jax.experimental import pallas as pl
from jax.experimental.pallas import tpu as pltpu

NUM_HEADS = 4
LN_EPS = 1e-5


def _self_attention_kernel(x_ref, wqkv_ref, bqkv_ref, wo_ref, w1_ref, w2_ref,
                           vecs_ref, o_ref, *, seq_len, num_heads):
    R, C = x_ref.shape                      # R = Bt * S rows, C channels (lanes)
    S = seq_len
    Bt = R // S
    H = num_heads
    D = C // H

    x = x_ref[...].astype(jnp.float32)                       # (R, C)

    # packed small vectors (one pipelined input): rows = [ln_g, ln_b, bo, b1, b2]
    ln_g = vecs_ref[0:1, :]
    ln_b = vecs_ref[1:2, :]
    bo = vecs_ref[2:3, :]
    b1 = vecs_ref[3:4, :]
    b2 = vecs_ref[4:5, :]

    def layernorm(v):
        mu = jnp.mean(v, axis=-1, keepdims=True)
        var = jnp.mean(jnp.square(v - mu), axis=-1, keepdims=True)
        return (v - mu) * jax.lax.rsqrt(var + LN_EPS) * ln_g + ln_b

    # NOTE: the reference module reuses `self.ln` inside `ff_self`
    # (nn.Sequential(self.ln, ...)), so the LayerNorm parameters are shared
    # between the pre-attention LN and the feed-forward LN on purpose.
    x_ln = layernorm(x)

    # --- packed QKV projection (MultiheadAttention in_proj): bf16 -> f32 acc ---
    qkv = jnp.dot(x_ln.astype(jnp.bfloat16), wqkv_ref[...],
                  preferred_element_type=jnp.float32) + bqkv_ref[...]    # (R, 3C)

    # --- multi-head scaled dot-product attention.
    # Heads run as batched 3-D einsums over the Bt folded batch elements; the
    # out-projection slice for each head is folded into the loop so the
    # per-head results are accumulated directly into (R, C) (no lane concat).
    # TODO(synk): for large S (e.g. size >= 32) the (Bt, S, S) score matrix
    # should be kv-blocked (online softmax) to bound VMEM on v7x.
    scale = 1.0 / math.sqrt(D)
    acc = jnp.zeros((R, C), jnp.float32)
    for h in range(H):
        qh = qkv[:, h * D:(h + 1) * D].reshape(Bt, S, D).astype(jnp.bfloat16)
        kh = qkv[:, C + h * D:C + (h + 1) * D].reshape(Bt, S, D).astype(jnp.bfloat16)
        vh = qkv[:, 2 * C + h * D:2 * C + (h + 1) * D].reshape(Bt, S, D).astype(jnp.bfloat16)

        s = jnp.einsum('bqd,bkd->bqk', qh, kh,
                       preferred_element_type=jnp.float32) * scale       # (Bt,S,S)
        s = s - jnp.max(s, axis=-1, keepdims=True)
        p = jnp.exp(s)
        denom = jnp.sum(p, axis=-1, keepdims=True)                        # (Bt,S,1)
        oh = jnp.einsum('bqk,bkd->bqd', p.astype(jnp.bfloat16), vh,
                        preferred_element_type=jnp.float32)               # (Bt,S,D)
        # normalize the small (S, D) result instead of the (S, S) probs;
        # approx reciprocal runs on the EUP slot.
        oh = oh * pl.reciprocal(denom, approx=True)

        # fold this head's slice of the output projection (wo_ref is (H, D, C))
        acc = acc + jnp.dot(oh.reshape(R, D).astype(jnp.bfloat16), wo_ref[h],
                            preferred_element_type=jnp.float32)
    attn = acc + bo                                                       # (R, C)

    # --- first residual ---
    h1 = attn + x

    # --- feed-forward: LN (shared weights) -> Linear -> GELU(exact) -> Linear ---
    h_ln = layernorm(h1)
    z = jnp.dot(h_ln.astype(jnp.bfloat16), w1_ref[...],
                preferred_element_type=jnp.float32) + b1
    z = 0.5 * z * (1.0 + jax.lax.erf(z * (1.0 / math.sqrt(2.0))))         # exact GELU
    z = jnp.dot(z.astype(jnp.bfloat16), w2_ref[...],
                preferred_element_type=jnp.float32) + b2

    # --- second residual ---
    # (C < 128 here so this store is lane-masked; acceptable at this size.)
    o_ref[...] = (z + h1).astype(o_ref.dtype)


def make_params(num_channels, key):
    """Parameters in the native PyTorch layout (pre-processing happens in the wrapper)."""
    C = num_channels
    ks = jax.random.split(key, 4)
    return {
        # nn.MultiheadAttention in_proj (3C, C) + bias (3C,)
        "wqkv": jax.random.normal(ks[0], (3 * C, C), jnp.float32) * 0.02,
        "bqkv": jnp.zeros((3 * C,), jnp.float32),
        # out_proj
        "wo": jax.random.normal(ks[1], (C, C), jnp.float32) * 0.02,
        "bo": jnp.zeros((C,), jnp.float32),
        # LayerNorm — a single module shared by the pre-attn LN and ff_self's LN,
        # exactly as in the reference (ff_self contains self.ln).
        "ln_g": jnp.ones((C,), jnp.float32),
        "ln_b": jnp.zeros((C,), jnp.float32),
        # ff_self linears
        "w1": jax.random.normal(ks[2], (C, C), jnp.float32) * 0.02,
        "b1": jnp.zeros((C,), jnp.float32),
        "w2": jax.random.normal(ks[3], (C, C), jnp.float32) * 0.02,
        "b2": jnp.zeros((C,), jnp.float32),
    }


def _pick_batch_tile(batch, seq_len, target_rows=256, max_rows=1024):
    """Largest divisor of `batch` to fold per grid step: aim for >= target_rows
    MXU rows per step, cap the working set at max_rows rows."""
    best = 1
    for d in range(1, batch + 1):
        if batch % d:
            continue
        if d * seq_len > max_rows:
            break
        best = d
        if d * seq_len >= target_rows:
            break
    return best


def self_attention(x, params, num_channels, size):
    """x: NCHW (B, C, size, size) -> NCHW (B, C, size, size)."""
    B = x.shape[0]
    S = size * size
    C = num_channels
    H = NUM_HEADS
    assert C % H == 0

    # glue: NCHW -> flat token matrix (B*S, C); channels on the lane axis.
    x_tok = x.reshape(B, C, S).swapaxes(1, 2).reshape(B * S, C)

    p = params
    # Pre-transpose / pre-cast every weight ONCE, outside the grid body, so the
    # kernel feeds the MXU in its natural (K, N) layout with bf16 operands.
    wqkv_t = jnp.asarray(p["wqkv"]).T.astype(jnp.bfloat16)                # (C, 3C)
    wo_heads = jnp.asarray(p["wo"]).T.reshape(H, C // H, C).astype(jnp.bfloat16)
    w1_t = jnp.asarray(p["w1"]).T.astype(jnp.bfloat16)                    # (C, C)
    w2_t = jnp.asarray(p["w2"]).T.astype(jnp.bfloat16)                    # (C, C)
    bqkv = jnp.asarray(p["bqkv"]).reshape(1, 3 * C).astype(jnp.float32)   # (1, 3C)
    vecs = jnp.stack([
        jnp.asarray(p["ln_g"]).reshape(C),
        jnp.asarray(p["ln_b"]).reshape(C),
        jnp.asarray(p["bo"]).reshape(C),
        jnp.asarray(p["b1"]).reshape(C),
        jnp.asarray(p["b2"]).reshape(C),
    ], axis=0).astype(jnp.float32)                                        # (5, C)

    Bt = _pick_batch_tile(B, S)
    R = Bt * S

    def full_spec(arr):
        nd = arr.ndim
        return pl.BlockSpec(arr.shape, lambda i, _nd=nd: (0,) * _nd)

    kernel = functools.partial(_self_attention_kernel, seq_len=S, num_heads=H)

    out_tok = pl.pallas_call(
        kernel,
        out_shape=jax.ShapeDtypeStruct((B * S, C), x.dtype),
        grid=(B // Bt,),
        in_specs=[
            pl.BlockSpec((R, C), lambda i: (i, 0)),
            full_spec(wqkv_t), full_spec(bqkv),
            full_spec(wo_heads), full_spec(w1_t), full_spec(w2_t),
            full_spec(vecs),
        ],
        out_specs=pl.BlockSpec((R, C), lambda i: (i, 0)),
        compiler_params=pltpu.CompilerParams(
            dimension_semantics=("parallel",)),
    )(x_tok, wqkv_t, bqkv, wo_heads, w1_t, w2_t, vecs)

    # glue: (B*S, C) -> NCHW
    return out_tok.reshape(B, S, C).swapaxes(1, 2).reshape(B, C, size, size)


if __name__ == "__main__":
    num_channels = 32   # must be divisible by the 4 attention heads
    size = 8            # spatial -> sequence length 64
    batch = 2

    key = jax.random.PRNGKey(0)
    k_x, k_p = jax.random.split(key)
    x = jax.random.normal(k_x, (batch, num_channels, size, size), jnp.float32)
    params = make_params(num_channels, k_p)

    out = self_attention(x, params, num_channels, size)
    out = jax.block_until_ready(out)
    assert out.shape == (batch, num_channels, size, size)
    print("KERNEL_OK")
</pallas_src>

<mosaic_0001>
module attributes {stable_mosaic.version = 11 : i64} {
  func.func @_self_attention_kernel(%arg0: i32, %arg1: memref<128x32xf32, #tpu.memory_space<vmem>>, %arg2: memref<32x96xbf16, #tpu.memory_space<vmem>>, %arg3: memref<1x96xf32, #tpu.memory_space<vmem>>, %arg4: memref<4x8x32xbf16, #tpu.memory_space<vmem>>, %arg5: memref<32x32xbf16, #tpu.memory_space<vmem>>, %arg6: memref<32x32xbf16, #tpu.memory_space<vmem>>, %arg7: memref<5x32xf32, #tpu.memory_space<vmem>>, %arg8: memref<128x32xf32, #tpu.memory_space<vmem>>) attributes {dimension_semantics = [#tpu.dimension_semantics<parallel>], iteration_bounds = array<i64: 1>, scalar_prefetch = 0 : i64, scratch_operands = 0 : i64, tpu.core_type = #tpu.core_type<tc>, window_params = [{transform_indices = @transform_0, window_bounds = array<i64: 128, 32>}, {pipeline_mode = #tpu.pipeline_mode<synchronous>, transform_indices = @transform_1, window_bounds = array<i64: 32, 96>}, {pipeline_mode = #tpu.pipeline_mode<synchronous>, transform_indices = @transform_2, window_bounds = array<i64: 1, 96>}, {pipeline_mode = #tpu.pipeline_mode<synchronous>, transform_indices = @transform_3, window_bounds = array<i64: 4, 8, 32>}, {pipeline_mode = #tpu.pipeline_mode<synchronous>, transform_indices = @transform_4, window_bounds = array<i64: 32, 32>}, {pipeline_mode = #tpu.pipeline_mode<synchronous>, transform_indices = @transform_5, window_bounds = array<i64: 32, 32>}, {pipeline_mode = #tpu.pipeline_mode<synchronous>, transform_indices = @transform_6, window_bounds = array<i64: 5, 32>}, {transform_indices = @transform_7, window_bounds = array<i64: 128, 32>}]} {
    %c0 = arith.constant 0 : index
    %c0_0 = arith.constant 0 : index
    %0 = vector.load %arg1[%c0, %c0_0] : memref<128x32xf32, #tpu.memory_space<vmem>>, vector<128x32xf32>
    %c0_1 = arith.constant 0 : index
    %c0_2 = arith.constant 0 : index
    %1 = vector.load %arg7[%c0_1, %c0_2] : memref<5x32xf32, #tpu.memory_space<vmem>>, vector<1x32xf32>
    %c1 = arith.constant 1 : index
    %c0_3 = arith.constant 0 : index
    %2 = vector.load %arg7[%c1, %c0_3] : memref<5x32xf32, #tpu.memory_space<vmem>>, vector<1x32xf32>
    %c2 = arith.constant 2 : index
    %c0_4 = arith.constant 0 : index
    %3 = vector.load %arg7[%c2, %c0_4] : memref<5x32xf32, #tpu.memory_space<vmem>>, vector<1x32xf32>
    %c3 = arith.constant 3 : index
    %c0_5 = arith.constant 0 : index
    %4 = vector.load %arg7[%c3, %c0_5] : memref<5x32xf32, #tpu.memory_space<vmem>>, vector<1x32xf32>
    %c4 = arith.constant 4 : index
    %c0_6 = arith.constant 0 : index
    %5 = vector.load %arg7[%c4, %c0_6] : memref<5x32xf32, #tpu.memory_space<vmem>>, vector<1x32xf32>
    %cst = arith.constant dense<0.000000e+00> : vector<128xf32>
    %6 = vector.multi_reduction <add>, %0, %cst [1] : vector<128x32xf32> to vector<128xf32>
    %7 = vector.shape_cast %6 : vector<128xf32> to vector<128x1xf32>
    %cst_7 = arith.constant 3.200000e+01 : f32
    %8 = vector.broadcast %cst_7 : f32 to vector<128x1xf32>
    %9 = arith.divf %7, %8 : vector<128x1xf32>
    %10 = vector.broadcast %9 : vector<128x1xf32> to vector<128x32xf32>
    %11 = arith.subf %0, %10 : vector<128x32xf32>
    %12 = arith.mulf %11, %11 : vector<128x32xf32>
    %cst_8 = arith.constant dense<0.000000e+00> : vector<128xf32>
    %13 = vector.multi_reduction <add>, %12, %cst_8 [1] : vector<128x32xf32> to vector<128xf32>
    %14 = vector.shape_cast %13 : vector<128xf32> to vector<128x1xf32>
    %cst_9 = arith.constant 3.200000e+01 : f32
    %15 = vector.broadcast %cst_9 : f32 to vector<128x1xf32>
    %16 = arith.divf %14, %15 : vector<128x1xf32>
    %17 = vector.broadcast %9 : vector<128x1xf32> to vector<128x32xf32>
    %18 = arith.subf %0, %17 : vector<128x32xf32>
    %cst_10 = arith.constant 9.99999974E-6 : f32
    %19 = vector.broadcast %cst_10 : f32 to vector<128x1xf32>
    %20 = arith.addf %16, %19 : vector<128x1xf32>
    %21 = math.rsqrt %20 : vector<128x1xf32>
    %22 = vector.broadcast %21 : vector<128x1xf32> to vector<128x32xf32>
    %23 = arith.mulf %18, %22 : vector<128x32xf32>
    %24 = vector.broadcast %1 : vector<1x32xf32> to vector<128x32xf32>
    %25 = arith.mulf %23, %24 : vector<128x32xf32>
    %26 = vector.broadcast %2 : vector<1x32xf32> to vector<128x32xf32>
    %27 = arith.addf %25, %26 : vector<128x32xf32>
    %28 = arith.truncf %27 : vector<128x32xf32> to vector<128x32xbf16>
    %c0_11 = arith.constant 0 : index
    %c0_12 = arith.constant 0 : index
    %29 = vector.load %arg2[%c0_11, %c0_12] : memref<32x96xbf16, #tpu.memory_space<vmem>>, vector<32x96xbf16>
    %cst_13 = arith.constant dense<0.000000e+00> : vector<128x96xf32>
    %30 = tpu.matmul %28, %29, %cst_13 {dimension_numbers = #tpu.dot_dimension_numbers<[1], [0], [0], [1], [0, 0, 1, 1], [], []>} : vector<128x32xbf16>, vector<32x96xbf16>, vector<128x96xf32> -> vector<128x96xf32>
    %c0_14 = arith.constant 0 : index
    %c0_15 = arith.constant 0 : index
    %31 = vector.load %arg3[%c0_14, %c0_15] : memref<1x96xf32, #tpu.memory_space<vmem>>, vector<1x96xf32>
    %32 = vector.broadcast %31 : vector<1x96xf32> to vector<128x96xf32>
    %33 = arith.addf %30, %32 : vector<128x96xf32>
    %cst_16 = arith.constant 0.000000e+00 : f32
    %34 = vector.broadcast %cst_16 : f32 to vector<128x32xf32>
    %35 = vector.extract_strided_slice %33 {offsets = [0, 0], sizes = [128, 8], strides = [1, 1]} : vector<128x96xf32> to vector<128x8xf32>
    %36 = vector.shape_cast %35 : vector<128x8xf32> to vector<2x64x8xf32>
    %37 = arith.truncf %36 : vector<2x64x8xf32> to vector<2x64x8xbf16>
    %38 = vector.extract_strided_slice %33 {offsets = [0, 32], sizes = [128, 8], strides = [1, 1]} : vector<128x96xf32> to vector<128x8xf32>
    %39 = vector.shape_cast %38 : vector<128x8xf32> to vector<2x64x8xf32>
    %40 = arith.truncf %39 : vector<2x64x8xf32> to vector<2x64x8xbf16>
    %41 = vector.extract_strided_slice %33 {offsets = [0, 64], sizes = [128, 8], strides = [1, 1]} : vector<128x96xf32> to vector<128x8xf32>
    %42 = vector.shape_cast %41 : vector<128x8xf32> to vector<2x64x8xf32>
    %43 = arith.truncf %42 : vector<2x64x8xf32> to vector<2x64x8xbf16>
    "tpu.trace_start"() <{level = 10 : i32, message = "bqd,bkd->bqk"}> : () -> ()
    %cst_17 = arith.constant dense<0.000000e+00> : vector<2x64x64xf32>
    %44 = tpu.matmul %37, %40, %cst_17 {dimension_numbers = #tpu.dot_dimension_numbers<[2], [2], [1], [1], [0, 0, 0, 1, 1, 1], [0], [0]>} : vector<2x64x8xbf16>, vector<2x64x8xbf16>, vector<2x64x64xf32> -> vector<2x64x64xf32>
    "tpu.trace_stop"() : () -> ()
    %cst_18 = arith.constant 0.353553385 : f32
    %45 = vector.broadcast %cst_18 : f32 to vector<2x64x64xf32>
    %46 = arith.mulf %44, %45 : vector<2x64x64xf32>
    %cst_19 = arith.constant dense<0xFF800000> : vector<2x64xf32>
    %47 = vector.multi_reduction <maximumf>, %46, %cst_19 [2] : vector<2x64x64xf32> to vector<2x64xf32>
    %48 = vector.shape_cast %47 : vector<2x64xf32> to vector<2x64x1xf32>
    %49 = vector.broadcast %48 : vector<2x64x1xf32> to vector<2x64x64xf32>
    %50 = arith.subf %46, %49 : vector<2x64x64xf32>
    %51 = math.exp %50 : vector<2x64x64xf32>
    %cst_20 = arith.constant dense<0.000000e+00> : vector<2x64xf32>
    %52 = vector.multi_reduction <add>, %51, %cst_20 [2] : vector<2x64x64xf32> to vector<2x64xf32>
    %53 = vector.shape_cast %52 : vector<2x64xf32> to vector<2x64x1xf32>
    %54 = arith.truncf %51 : vector<2x64x64xf32> to vector<2x64x64xbf16>
    "tpu.trace_start"() <{level = 10 : i32, message = "bqk,bkd->bqd"}> : () -> ()
    %cst_21 = arith.constant dense<0.000000e+00> : vector<2x64x8xf32>
    %55 = tpu.matmul %54, %43, %cst_21 {dimension_numbers = #tpu.dot_dimension_numbers<[2], [1], [1], [2], [0, 0, 0, 1, 1, 2], [0], [0]>} : vector<2x64x64xbf16>, vector<2x64x8xbf16>, vector<2x64x8xf32> -> vector<2x64x8xf32>
    "tpu.trace_stop"() : () -> ()
    %56 = tpu.reciprocal %53 {approx = true} : vector<2x64x1xf32> -> vector<2x64x1xf32>
    %57 = vector.broadcast %56 : vector<2x64x1xf32> to vector<2x64x8xf32>
    %58 = arith.mulf %55, %57 : vector<2x64x8xf32>
    %59 = vector.shape_cast %58 : vector<2x64x8xf32> to vector<128x8xf32>
    %60 = arith.truncf %59 : vector<128x8xf32> to vector<128x8xbf16>
    %c0_22 = arith.constant 0 : index
    %c0_23 = arith.constant 0 : index
    %c0_24 = arith.constant 0 : index
    %61 = vector.load %arg4[%c0_22, %c0_23, %c0_24] : memref<4x8x32xbf16, #tpu.memory_space<vmem>>, vector<1x8x32xbf16>
    %62 = vector.shape_cast %61 : vector<1x8x32xbf16> to vector<8x32xbf16>
    %cst_25 = arith.constant dense<0.000000e+00> : vector<128x32xf32>
    %63 = tpu.matmul %60, %62, %cst_25 {dimension_numbers = #tpu.dot_dimension_numbers<[1], [0], [0], [1], [0, 0, 1, 1], [], []>} : vector<128x8xbf16>, vector<8x32xbf16>, vector<128x32xf32> -> vector<128x32xf32>
    %64 = arith.addf %34, %63 : vector<128x32xf32>
    %65 = vector.extract_strided_slice %33 {offsets = [0, 8], sizes = [128, 8], strides = [1, 1]} : vector<128x96xf32> to vector<128x8xf32>
    %66 = vector.shape_cast %65 : vector<128x8xf32> to vector<2x64x8xf32>
    %67 = arith.truncf %66 : vector<2x64x8xf32> to vector<2x64x8xbf16>
    %68 = vector.extract_strided_slice %33 {offsets = [0, 40], sizes = [128, 8], strides = [1, 1]} : vector<128x96xf32> to vector<128x8xf32>
    %69 = vector.shape_cast %68 : vector<128x8xf32> to vector<2x64x8xf32>
    %70 = arith.truncf %69 : vector<2x64x8xf32> to vector<2x64x8xbf16>
    %71 = vector.extract_strided_slice %33 {offsets = [0, 72], sizes = [128, 8], strides = [1, 1]} : vector<128x96xf32> to vector<128x8xf32>
    %72 = vector.shape_cast %71 : vector<128x8xf32> to vector<2x64x8xf32>
    %73 = arith.truncf %72 : vector<2x64x8xf32> to vector<2x64x8xbf16>
    "tpu.trace_start"() <{level = 10 : i32, message = "bqd,bkd->bqk"}> : () -> ()
    %cst_26 = arith.constant dense<0.000000e+00> : vector<2x64x64xf32>
    %74 = tpu.matmul %67, %70, %cst_26 {dimension_numbers = #tpu.dot_dimension_numbers<[2], [2], [1], [1], [0, 0, 0, 1, 1, 1], [0], [0]>} : vector<2x64x8xbf16>, vector<2x64x8xbf16>, vector<2x64x64xf32> -> vector<2x64x64xf32>
    "tpu.trace_stop"() : () -> ()
    %cst_27 = arith.constant 0.353553385 : f32
    %75 = vector.broadcast %cst_27 : f32 to vector<2x64x64xf32>
    %76 = arith.mulf %74, %75 : vector<2x64x64xf32>
    %cst_28 = arith.constant dense<0xFF800000> : vector<2x64xf32>
    %77 = vector.multi_reduction <maximumf>, %76, %cst_28 [2] : vector<2x64x64xf32> to vector<2x64xf32>
    %78 = vector.shape_cast %77 : vector<2x64xf32> to vector<2x64x1xf32>
    %79 = vector.broadcast %78 : vector<2x64x1xf32> to vector<2x64x64xf32>
    %80 = arith.subf %76, %79 : vector<2x64x64xf32>
    %81 = math.exp %80 : vector<2x64x64xf32>
    %cst_29 = arith.constant dense<0.000000e+00> : vector<2x64xf32>
    %82 = vector.multi_reduction <add>, %81, %cst_29 [2] : vector<2x64x64xf32> to vector<2x64xf32>
    %83 = vector.shape_cast %82 : vector<2x64xf32> to vector<2x64x1xf32>
    %84 = arith.truncf %81 : vector<2x64x64xf32> to vector<2x64x64xbf16>
    "tpu.trace_start"() <{level = 10 : i32, message = "bqk,bkd->bqd"}> : () -> ()
    %cst_30 = arith.constant dense<0.000000e+00> : vector<2x64x8xf32>
    %85 = tpu.matmul %84, %73, %cst_30 {dimension_numbers = #tpu.dot_dimension_numbers<[2], [1], [1], [2], [0, 0, 0, 1, 1, 2], [0], [0]>} : vector<2x64x64xbf16>, vector<2x64x8xbf16>, vector<2x64x8xf32> -> vector<2x64x8xf32>
    "tpu.trace_stop"() : () -> ()
    %86 = tpu.reciprocal %83 {approx = true} : vector<2x64x1xf32> -> vector<2x64x1xf32>
    %87 = vector.broadcast %86 : vector<2x64x1xf32> to vector<2x64x8xf32>
    %88 = arith.mulf %85, %87 : vector<2x64x8xf32>
    %89 = vector.shape_cast %88 : vector<2x64x8xf32> to vector<128x8xf32>
    %90 = arith.truncf %89 : vector<128x8xf32> to vector<128x8xbf16>
    %c1_31 = arith.constant 1 : index
    %c0_32 = arith.constant 0 : index
    %c0_33 = arith.constant 0 : index
    %91 = vector.load %arg4[%c1_31, %c0_32, %c0_33] : memref<4x8x32xbf16, #tpu.memory_space<vmem>>, vector<1x8x32xbf16>
    %92 = vector.shape_cast %91 : vector<1x8x32xbf16> to vector<8x32xbf16>
    %cst_34 = arith.constant dense<0.000000e+00> : vector<128x32xf32>
    %93 = tpu.matmul %90, %92, %cst_34 {dimension_numbers = #tpu.dot_dimension_numbers<[1], [0], [0], [1], [0, 0, 1, 1], [], []>} : vector<128x8xbf16>, vector<8x32xbf16>, vector<128x32xf32> -> vector<128x32xf32>
    %94 = arith.addf %64, %93 : vector<128x32xf32>
    %95 = vector.extract_strided_slice %33 {offsets = [0, 16], sizes = [128, 8], strides = [1, 1]} : vector<128x96xf32> to vector<128x8xf32>
    %96 = vector.shape_cast %95 : vector<128x8xf32> to vector<2x64x8xf32>
    %97 = arith.truncf %96 : vector<2x64x8xf32> to vector<2x64x8xbf16>
    %98 = vector.extract_strided_slice %33 {offsets = [0, 48], sizes = [128, 8], strides = [1, 1]} : vector<128x96xf32> to vector<128x8xf32>
    %99 = vector.shape_cast %98 : vector<128x8xf32> to vector<2x64x8xf32>
    %100 = arith.truncf %99 : vector<2x64x8xf32> to vector<2x64x8xbf16>
    %101 = vector.extract_strided_slice %33 {offsets = [0, 80], sizes = [128, 8], strides = [1, 1]} : vector<128x96xf32> to vector<128x8xf32>
    %102 = vector.shape_cast %101 : vector<128x8xf32> to vector<2x64x8xf32>
    %103 = arith.truncf %102 : vector<2x64x8xf32> to vector<2x64x8xbf16>
    "tpu.trace_start"() <{level = 10 : i32, message = "bqd,bkd->bqk"}> : () -> ()
    %cst_35 = arith.constant dense<0.000000e+00> : vector<2x64x64xf32>
    %104 = tpu.matmul %97, %100, %cst_35 {dimension_numbers = #tpu.dot_dimension_numbers<[2], [2], [1], [1], [0, 0, 0, 1, 1, 1], [0], [0]>} : vector<2x64x8xbf16>, vector<2x64x8xbf16>, vector<2x64x64xf32> -> vector<2x64x64xf32>
    "tpu.trace_stop"() : () -> ()
    %cst_36 = arith.constant 0.353553385 : f32
    %105 = vector.broadcast %cst_36 : f32 to vector<2x64x64xf32>
    %106 = arith.mulf %104, %105 : vector<2x64x64xf32>
    %cst_37 = arith.constant dense<0xFF800000> : vector<2x64xf32>
    %107 = vector.multi_reduction <maximumf>, %106, %cst_37 [2] : vector<2x64x64xf32> to vector<2x64xf32>
    %108 = vector.shape_cast %107 : vector<2x64xf32> to vector<2x64x1xf32>
    %109 = vector.broadcast %108 : vector<2x64x1xf32> to vector<2x64x64xf32>
    %110 = arith.subf %106, %109 : vector<2x64x64xf32>
    %111 = math.exp %110 : vector<2x64x64xf32>
    %cst_38 = arith.constant dense<0.000000e+00> : vector<2x64xf32>
    %112 = vector.multi_reduction <add>, %111, %cst_38 [2] : vector<2x64x64xf32> to vector<2x64xf32>
    %113 = vector.shape_cast %112 : vector<2x64xf32> to vector<2x64x1xf32>
    %114 = arith.truncf %111 : vector<2x64x64xf32> to vector<2x64x64xbf16>
    "tpu.trace_start"() <{level = 10 : i32, message = "bqk,bkd->bqd"}> : () -> ()
    %cst_39 = arith.constant dense<0.000000e+00> : vector<2x64x8xf32>
    %115 = tpu.matmul %114, %103, %cst_39 {dimension_numbers = #tpu.dot_dimension_numbers<[2], [1], [1], [2], [0, 0, 0, 1, 1, 2], [0], [0]>} : vector<2x64x64xbf16>, vector<2x64x8xbf16>, vector<2x64x8xf32> -> vector<2x64x8xf32>
    "tpu.trace_stop"() : () -> ()
    %116 = tpu.reciprocal %113 {approx = true} : vector<2x64x1xf32> -> vector<2x64x1xf32>
    %117 = vector.broadcast %116 : vector<2x64x1xf32> to vector<2x64x8xf32>
    %118 = arith.mulf %115, %117 : vector<2x64x8xf32>
    %119 = vector.shape_cast %118 : vector<2x64x8xf32> to vector<128x8xf32>
    %120 = arith.truncf %119 : vector<128x8xf32> to vector<128x8xbf16>
    %c2_40 = arith.constant 2 : index
    %c0_41 = arith.constant 0 : index
    %c0_42 = arith.constant 0 : index
    %121 = vector.load %arg4[%c2_40, %c0_41, %c0_42] : memref<4x8x32xbf16, #tpu.memory_space<vmem>>, vector<1x8x32xbf16>
    %122 = vector.shape_cast %121 : vector<1x8x32xbf16> to vector<8x32xbf16>
    %cst_43 = arith.constant dense<0.000000e+00> : vector<128x32xf32>
    %123 = tpu.matmul %120, %122, %cst_43 {dimension_numbers = #tpu.dot_dimension_numbers<[1], [0], [0], [1], [0, 0, 1, 1], [], []>} : vector<128x8xbf16>, vector<8x32xbf16>, vector<128x32xf32> -> vector<128x32xf32>
    %124 = arith.addf %94, %123 : vector<128x32xf32>
    %125 = vector.extract_strided_slice %33 {offsets = [0, 24], sizes = [128, 8], strides = [1, 1]} : vector<128x96xf32> to vector<128x8xf32>
    %126 = vector.shape_cast %125 : vector<128x8xf32> to vector<2x64x8xf32>
    %127 = arith.truncf %126 : vector<2x64x8xf32> to vector<2x64x8xbf16>
    %128 = vector.extract_strided_slice %33 {offsets = [0, 56], sizes = [128, 8], strides = [1, 1]} : vector<128x96xf32> to vector<128x8xf32>
    %129 = vector.shape_cast %128 : vector<128x8xf32> to vector<2x64x8xf32>
    %130 = arith.truncf %129 : vector<2x64x8xf32> to vector<2x64x8xbf16>
    %131 = vector.extract_strided_slice %33 {offsets = [0, 88], sizes = [128, 8], strides = [1, 1]} : vector<128x96xf32> to vector<128x8xf32>
    %132 = vector.shape_cast %131 : vector<128x8xf32> to vector<2x64x8xf32>
    %133 = arith.truncf %132 : vector<2x64x8xf32> to vector<2x64x8xbf16>
    "tpu.trace_start"() <{level = 10 : i32, message = "bqd,bkd->bqk"}> : () -> ()
    %cst_44 = arith.constant dense<0.000000e+00> : vector<2x64x64xf32>
    %134 = tpu.matmul %127, %130, %cst_44 {dimension_numbers = #tpu.dot_dimension_numbers<[2], [2], [1], [1], [0, 0, 0, 1, 1, 1], [0], [0]>} : vector<2x64x8xbf16>, vector<2x64x8xbf16>, vector<2x64x64xf32> -> vector<2x64x64xf32>
    "tpu.trace_stop"() : () -> ()
    %cst_45 = arith.constant 0.353553385 : f32
    %135 = vector.broadcast %cst_45 : f32 to vector<2x64x64xf32>
    %136 = arith.mulf %134, %135 : vector<2x64x64xf32>
    %cst_46 = arith.constant dense<0xFF800000> : vector<2x64xf32>
    %137 = vector.multi_reduction <maximumf>, %136, %cst_46 [2] : vector<2x64x64xf32> to vector<2x64xf32>
    %138 = vector.shape_cast %137 : vector<2x64xf32> to vector<2x64x1xf32>
    %139 = vector.broadcast %138 : vector<2x64x1xf32> to vector<2x64x64xf32>
    %140 = arith.subf %136, %139 : vector<2x64x64xf32>
    %141 = math.exp %140 : vector<2x64x64xf32>
    %cst_47 = arith.constant dense<0.000000e+00> : vector<2x64xf32>
    %142 = vector.multi_reduction <add>, %141, %cst_47 [2] : vector<2x64x64xf32> to vector<2x64xf32>
    %143 = vector.shape_cast %142 : vector<2x64xf32> to vector<2x64x1xf32>
    %144 = arith.truncf %141 : vector<2x64x64xf32> to vector<2x64x64xbf16>
    "tpu.trace_start"() <{level = 10 : i32, message = "bqk,bkd->bqd"}> : () -> ()
    %cst_48 = arith.constant dense<0.000000e+00> : vector<2x64x8xf32>
    %145 = tpu.matmul %144, %133, %cst_48 {dimension_numbers = #tpu.dot_dimension_numbers<[2], [1], [1], [2], [0, 0, 0, 1, 1, 2], [0], [0]>} : vector<2x64x64xbf16>, vector<2x64x8xbf16>, vector<2x64x8xf32> -> vector<2x64x8xf32>
    "tpu.trace_stop"() : () -> ()
    %146 = tpu.reciprocal %143 {approx = true} : vector<2x64x1xf32> -> vector<2x64x1xf32>
    %147 = vector.broadcast %146 : vector<2x64x1xf32> to vector<2x64x8xf32>
    %148 = arith.mulf %145, %147 : vector<2x64x8xf32>
    %149 = vector.shape_cast %148 : vector<2x64x8xf32> to vector<128x8xf32>
    %150 = arith.truncf %149 : vector<128x8xf32> to vector<128x8xbf16>
    %c3_49 = arith.constant 3 : index
    %c0_50 = arith.constant 0 : index
    %c0_51 = arith.constant 0 : index
    %151 = vector.load %arg4[%c3_49, %c0_50, %c0_51] : memref<4x8x32xbf16, #tpu.memory_space<vmem>>, vector<1x8x32xbf16>
    %152 = vector.shape_cast %151 : vector<1x8x32xbf16> to vector<8x32xbf16>
    %cst_52 = arith.constant dense<0.000000e+00> : vector<128x32xf32>
    %153 = tpu.matmul %150, %152, %cst_52 {dimension_numbers = #tpu.dot_dimension_numbers<[1], [0], [0], [1], [0, 0, 1, 1], [], []>} : vector<128x8xbf16>, vector<8x32xbf16>, vector<128x32xf32> -> vector<128x32xf32>
    %154 = arith.addf %124, %153 : vector<128x32xf32>
    %155 = vector.broadcast %3 : vector<1x32xf32> to vector<128x32xf32>
    %156 = arith.addf %154, %155 : vector<128x32xf32>
    %157 = arith.addf %156, %0 : vector<128x32xf32>
    %cst_53 = arith.constant dense<0.000000e+00> : vector<128xf32>
    %158 = vector.multi_reduction <add>, %157, %cst_53 [1] : vector<128x32xf32> to vector<128xf32>
    %159 = vector.shape_cast %158 : vector<128xf32> to vector<128x1xf32>
    %cst_54 = arith.constant 3.200000e+01 : f32
    %160 = vector.broadcast %cst_54 : f32 to vector<128x1xf32>
    %161 = arith.divf %159, %160 : vector<128x1xf32>
    %162 = vector.broadcast %161 : vector<128x1xf32> to vector<128x32xf32>
    %163 = arith.subf %157, %162 : vector<128x32xf32>
    %164 = arith.mulf %163, %163 : vector<128x32xf32>
    %cst_55 = arith.constant dense<0.000000e+00> : vector<128xf32>
    %165 = vector.multi_reduction <add>, %164, %cst_55 [1] : vector<128x32xf32> to vector<128xf32>
    %166 = vector.shape_cast %165 : vector<128xf32> to vector<128x1xf32>
    %cst_56 = arith.constant 3.200000e+01 : f32
    %167 = vector.broadcast %cst_56 : f32 to vector<128x1xf32>
    %168 = arith.divf %166, %167 : vector<128x1xf32>
    %169 = vector.broadcast %161 : vector<128x1xf32> to vector<128x32xf32>
    %170 = arith.subf %157, %169 : vector<128x32xf32>
    %cst_57 = arith.constant 9.99999974E-6 : f32
    %171 = vector.broadcast %cst_57 : f32 to vector<128x1xf32>
    %172 = arith.addf %168, %171 : vector<128x1xf32>
    %173 = math.rsqrt %172 : vector<128x1xf32>
    %174 = vector.broadcast %173 : vector<128x1xf32> to vector<128x32xf32>
    %175 = arith.mulf %170, %174 : vector<128x32xf32>
    %176 = vector.broadcast %1 : vector<1x32xf32> to vector<128x32xf32>
    %177 = arith.mulf %175, %176 : vector<128x32xf32>
    %178 = vector.broadcast %2 : vector<1x32xf32> to vector<128x32xf32>
    %179 = arith.addf %177, %178 : vector<128x32xf32>
    %180 = arith.truncf %179 : vector<128x32xf32> to vector<128x32xbf16>
    %c0_58 = arith.constant 0 : index
    %c0_59 = arith.constant 0 : index
    %181 = vector.load %arg5[%c0_58, %c0_59] : memref<32x32xbf16, #tpu.memory_space<vmem>>, vector<32x32xbf16>
    %cst_60 = arith.constant dense<0.000000e+00> : vector<128x32xf32>
    %182 = tpu.matmul %180, %181, %cst_60 {dimension_numbers = #tpu.dot_dimension_numbers<[1], [0], [0], [1], [0, 0, 1, 1], [], []>} : vector<128x32xbf16>, vector<32x32xbf16>, vector<128x32xf32> -> vector<128x32xf32>
    %183 = vector.broadcast %4 : vector<1x32xf32> to vector<128x32xf32>
    %184 = arith.addf %182, %183 : vector<128x32xf32>
    %cst_61 = arith.constant 5.000000e-01 : f32
    %185 = vector.broadcast %cst_61 : f32 to vector<128x32xf32>
    %186 = arith.mulf %185, %184 : vector<128x32xf32>
    %cst_62 = arith.constant 0.707106769 : f32
    %187 = vector.broadcast %cst_62 : f32 to vector<128x32xf32>
    %188 = arith.mulf %184, %187 : vector<128x32xf32>
    %189 = math.erf %188 : vector<128x32xf32>
    %cst_63 = arith.constant 1.000000e+00 : f32
    %190 = vector.broadcast %cst_63 : f32 to vector<128x32xf32>
    %191 = arith.addf %190, %189 : vector<128x32xf32>
    %192 = arith.mulf %186, %191 : vector<128x32xf32>
    %193 = arith.truncf %192 : vector<128x32xf32> to vector<128x32xbf16>
    %c0_64 = arith.constant 0 : index
    %c0_65 = arith.constant 0 : index
    %194 = vector.load %arg6[%c0_64, %c0_65] : memref<32x32xbf16, #tpu.memory_space<vmem>>, vector<32x32xbf16>
    %cst_66 = arith.constant dense<0.000000e+00> : vector<128x32xf32>
    %195 = tpu.matmul %193, %194, %cst_66 {dimension_numbers = #tpu.dot_dimension_numbers<[1], [0], [0], [1], [0, 0, 1, 1], [], []>} : vector<128x32xbf16>, vector<32x32xbf16>, vector<128x32xf32> -> vector<128x32xf32>
    %196 = vector.broadcast %5 : vector<1x32xf32> to vector<128x32xf32>
    %197 = arith.addf %195, %196 : vector<128x32xf32>
    %198 = arith.addf %197, %157 : vector<128x32xf32>
    %c0_67 = arith.constant 0 : index
    %c0_68 = arith.constant 0 : index
    %199 = vector.load %arg8[%c0_67, %c0_68] : memref<128x32xf32, #tpu.memory_space<vmem>>, vector<128x32xf32>
    tpu.vector_store %arg8[%c0_67, %c0_68], %198 {strides = array<i32>} : memref<128x32xf32, #tpu.memory_space<vmem>>, vector<128x32xf32>,
    return
  }
  func.func @transform_0(%arg0: i32) -> (i32, i32) {
    %c0_i32 = arith.constant 0 : i32
    %c0_i32_0 = arith.constant 0 : i32
    return %arg0, %c0_i32 : i32, i32
  }
  func.func @transform_1(%arg0: i32) -> (i32, i32) {
    %c0_i32 = arith.constant 0 : i32
    %c0_i32_0 = arith.constant 0 : i32
    %c0_i32_1 = arith.constant 0 : i32
    return %c0_i32, %c0_i32_0 : i32, i32
  }
  func.func @transform_2(%arg0: i32) -> (i32, i32) {
    %c0_i32 = arith.constant 0 : i32
    %c0_i32_0 = arith.constant 0 : i32
    %c0_i32_1 = arith.constant 0 : i32
    return %c0_i32, %c0_i32_0 : i32, i32
  }
  func.func @transform_3(%arg0: i32) -> (i32, i32, i32) {
    %c0_i32 = arith.constant 0 : i32
    %c0_i32_0 = arith.constant 0 : i32
    %c0_i32_1 = arith.constant 0 : i32
    %c0_i32_2 = arith.constant 0 : i32
    return %c0_i32, %c0_i32_0, %c0_i32_1 : i32, i32, i32
  }
  func.func @transform_4(%arg0: i32) -> (i32, i32) {
    %c0_i32 = arith.constant 0 : i32
    %c0_i32_0 = arith.constant 0 : i32
    %c0_i32_1 = arith.constant 0 : i32
    return %c0_i32, %c0_i32_0 : i32, i32
  }
  func.func @transform_5(%arg0: i32) -> (i32, i32) {
    %c0_i32 = arith.constant 0 : i32
    %c0_i32_0 = arith.constant 0 : i32
    %c0_i32_1 = arith.constant 0 : i32
    return %c0_i32, %c0_i32_0 : i32, i32
  }
  func.func @transform_6(%arg0: i32) -> (i32, i32) {
    %c0_i32 = arith.constant 0 : i32
    %c0_i32_0 = arith.constant 0 : i32
    %c0_i32_1 = arith.constant 0 : i32
    return %c0_i32, %c0_i32_0 : i32, i32
  }
  func.func @transform_7(%arg0: i32) -> (i32, i32) {
    %c0_i32 = arith.constant 0 : i32
    %c0_i32_0 = arith.constant 0 : i32
    return %arg0, %c0_i32 : i32, i32
  }
}

</mosaic_0001>

<llo_original>
// kernel: tpu_custom_call.1
$region0: #{tpu_custom_call.1}
  #allocation0 [shape = 'u32[]', space=smem, size = 0x4, offset = 0x4, fixed_abs, tag = 'smem constant byte address 0x4 - core index']
  #allocation1 [shape = 'u32[144,128]{1,0:T(1,128)}', space=vmem, size = 0x12000, scoped, tag = 'internal scratch']
  %s0 = inlined_call_operand.vmem [shape: f32[128,32], index: 0, kind: input, shape index: {}]
  %s1 = inlined_call_operand.vmem [shape: bf16[32,96], index: 1, kind: input, shape index: {}]
  %s2 = inlined_call_operand.vmem [shape: f32[1,96], index: 2, kind: input, shape index: {}]
  %s3 = inlined_call_operand.vmem [shape: bf16[4,8,32], index: 3, kind: input, shape index: {}]
  %s4 = inlined_call_operand.vmem [shape: bf16[32,32], index: 4, kind: input, shape index: {}]
  %s5 = inlined_call_operand.vmem [shape: bf16[32,32], index: 5, kind: input, shape index: {}]
  %s6 = inlined_call_operand.vmem [shape: f32[5,32], index: 6, kind: input, shape index: {}]
  %s7 = inlined_call_operand.vmem [shape: f32[128,32], index: 7, kind: output, shape index: {}]
  %s8 = sld [smem:[#allocation0]]
  $region38: #{tpu_custom_call.1} parent=0
    _
  %s10 = ssub.s32 1, %s8
  %s11 = scalar_select 0, %s10, %s8
  // Predicated region
  $region2: #{tpu_custom_call.1} parent=0 // pred_check
    _
  $region3: #{tpu_custom_call.1} parent=0 // pred_check_branch
    %13 = sbr.rel (0) target = $region5
  $region4: #{tpu_custom_call.1} parent=0 // pred_region
    _
  $region5: #{tpu_custom_call.1} parent=0 // pred_fallthru
    _
  // Predicated region
  $region6: #{tpu_custom_call.1} parent=0 // pred_check
    _
  $region7: #{tpu_custom_call.1} parent=0 // pred_check_branch
    %15 = sbr.rel (0) target = $region9
  $region8: #{tpu_custom_call.1} parent=0 // pred_region
    _
  $region9: #{tpu_custom_call.1} parent=0 // pred_fallthru
    _
  // Predicated region
  $region10: #{tpu_custom_call.1} parent=0 // pred_check
    _
  $region11: #{tpu_custom_call.1} parent=0 // pred_check_branch
    %17 = sbr.rel (0) target = $region13
  $region12: #{tpu_custom_call.1} parent=0 // pred_region
    _
  $region13: #{tpu_custom_call.1} parent=0 // pred_fallthru
    _
  // Predicated region
  $region14: #{tpu_custom_call.1} parent=0 // pred_check
    _
  $region15: #{tpu_custom_call.1} parent=0 // pred_check_branch
    %19 = sbr.rel (0) target = $region17
  $region16: #{tpu_custom_call.1} parent=0 // pred_region
    _
  $region17: #{tpu_custom_call.1} parent=0 // pred_fallthru
    _
  // Predicated region
  $region18: #{tpu_custom_call.1} parent=0 // pred_check
    _
  $region19: #{tpu_custom_call.1} parent=0 // pred_check_branch
    %21 = sbr.rel (0) target = $region21
  $region20: #{tpu_custom_call.1} parent=0 // pred_region
    _
  $region21: #{tpu_custom_call.1} parent=0 // pred_fallthru
    _
  // Predicated region
  $region22: #{tpu_custom_call.1} parent=0 // pred_check
    _
  $region23: #{tpu_custom_call.1} parent=0 // pred_check_branch
    %23 = sbr.rel (0) target = $region25
  $region24: #{tpu_custom_call.1} parent=0 // pred_region
    _
  $region25: #{tpu_custom_call.1} parent=0 // pred_fallthru
    _
  // Predicated region
  $region26: #{tpu_custom_call.1} parent=0 // pred_check
    _
  $region27: #{tpu_custom_call.1} parent=0 // pred_check_branch
    %25 = sbr.rel (0) target = $region29
  $region28: #{tpu_custom_call.1} parent=0 // pred_region
    _
  $region29: #{tpu_custom_call.1} parent=0 // pred_fallthru
    _
  %v27 = vld [vmem:[%s0] sm:$0xff]
  %v28 = vld [vmem:[%s0 + $0x8] sm:$0xff]
  %v29 = vld [vmem:[%s0 + $0x10] sm:$0xff]
  %v30 = vld [vmem:[%s0 + $0x18] sm:$0xff]
  %v31 = vld [vmem:[%s0 + $0x20] sm:$0xff]
  %v32 = vld [vmem:[%s0 + $0x28] sm:$0xff]
  %v33 = vld [vmem:[%s0 + $0x30] sm:$0xff]
  %v34 = vld [vmem:[%s0 + $0x38] sm:$0xff]
  %v35 = vld [vmem:[%s0 + $0x40] sm:$0xff]
  %v36 = vld [vmem:[%s0 + $0x48] sm:$0xff]
  %v37 = vld [vmem:[%s0 + $0x50] sm:$0xff]
  %v38 = vld [vmem:[%s0 + $0x58] sm:$0xff]
  %v39 = vld [vmem:[%s0 + $0x60] sm:$0xff]
  %v40 = vld [vmem:[%s0 + $0x68] sm:$0xff]
  %v41 = vld [vmem:[%s0 + $0x70] sm:$0xff]
  %v42 = vld [vmem:[%s0 + $0x78] sm:$0xff]
  %v43 = vld [vmem:[%s6] sm:$0x1]
  %v44 = vld [vmem:[%s6 + $0x1] sm:$0x1]
  %v45 = vld [vmem:[%s6 + $0x2] sm:$0x1]
  %v46 = vld [vmem:[%s6 + $0x3] sm:$0x1]
  %v47 = vld [vmem:[%s6 + $0x4] sm:$0x1]
  %vm48 = vcmask 261120
  %v49 = vsel %vm48, %v27, 0.0
  %50 = vadd.xlane.f32.xlu0 %v49
  %v51 = vpop.xlane.xlu0 %50
  %v52 = vsel %vm48, %v28, 0.0
  %53 = vadd.xlane.f32.xlu0 %v52
  %v54 = vpop.xlane.xlu0 %53
  %v55 = vsel %vm48, %v29, 0.0
  %56 = vadd.xlane.f32.xlu0 %v55
  %v57 = vpop.xlane.xlu0 %56
  %v58 = vsel %vm48, %v30, 0.0
  %59 = vadd.xlane.f32.xlu0 %v58
  %v60 = vpop.xlane.xlu0 %59
  %v61 = vsel %vm48, %v31, 0.0
  %62 = vadd.xlane.f32.xlu0 %v61
  %v63 = vpop.xlane.xlu0 %62
  %v64 = vsel %vm48, %v32, 0.0
  %65 = vadd.xlane.f32.xlu0 %v64
  %v66 = vpop.xlane.xlu0 %65
  %v67 = vsel %vm48, %v33, 0.0
  %68 = vadd.xlane.f32.xlu0 %v67
  %v69 = vpop.xlane.xlu0 %68
  %v70 = vsel %vm48, %v34, 0.0
  %71 = vadd.xlane.f32.xlu0 %v70
  %v72 = vpop.xlane.xlu0 %71
  %v73 = vsel %vm48, %v35, 0.0
  %74 = vadd.xlane.f32.xlu0 %v73
  %v75 = vpop.xlane.xlu0 %74
  %v76 = vsel %vm48, %v36, 0.0
  %77 = vadd.xlane.f32.xlu0 %v76
  %v78 = vpop.xlane.xlu0 %77
  %v79 = vsel %vm48, %v37, 0.0
  %80 = vadd.xlane.f32.xlu0 %v79
  %v81 = vpop.xlane.xlu0 %80
  %v82 = vsel %vm48, %v38, 0.0
  %83 = vadd.xlane.f32.xlu0 %v82
  %v84 = vpop.xlane.xlu0 %83
  %v85 = vsel %vm48, %v39, 0.0
  %86 = vadd.xlane.f32.xlu0 %v85
  %v87 = vpop.xlane.xlu0 %86
  %v88 = vsel %vm48, %v40, 0.0
  %89 = vadd.xlane.f32.xlu0 %v88
  %v90 = vpop.xlane.xlu0 %89
  %v91 = vsel %vm48, %v41, 0.0
  %92 = vadd.xlane.f32.xlu0 %v91
  %v93 = vpop.xlane.xlu0 %92
  %v94 = vsel %vm48, %v42, 0.0
  %95 = vadd.xlane.f32.xlu0 %v94
  %v96 = vpop.xlane.xlu0 %95
  %v97 = vrcp.pop 32.0
  %v98 = vmul.f32 %v51, %v97
  %v99 = vmul.f32 %v54, %v97
  %v100 = vmul.f32 %v57, %v97
  %v101 = vmul.f32 %v60, %v97
  %v102 = vmul.f32 %v63, %v97
  %v103 = vmul.f32 %v66, %v97
  %v104 = vmul.f32 %v69, %v97
  %v105 = vmul.f32 %v72, %v97
  %v106 = vmul.f32 %v75, %v97
  %v107 = vmul.f32 %v78, %v97
  %v108 = vmul.f32 %v81, %v97
  %v109 = vmul.f32 %v84, %v97
  %v110 = vmul.f32 %v87, %v97
  %v111 = vmul.f32 %v90, %v97
  %v112 = vmul.f32 %v93, %v97
  %v113 = vmul.f32 %v96, %v97
  %v114 = vsub.f32 %v27, %v98
  %v115 = vsub.f32 %v28, %v99
  %v116 = vsub.f32 %v29, %v100
  %v117 = vsub.f32 %v30, %v101
  %v118 = vsub.f32 %v31, %v102
  %v119 = vsub.f32 %v32, %v103
  %v120 = vsub.f32 %v33, %v104
  %v121 = vsub.f32 %v34, %v105
  %v122 = vsub.f32 %v35, %v106
  %v123 = vsub.f32 %v36, %v107
  %v124 = vsub.f32 %v37, %v108
  %v125 = vsub.f32 %v38, %v109
  %v126 = vsub.f32 %v39, %v110
  %v127 = vsub.f32 %v40, %v111
  %v128 = vsub.f32 %v41, %v112
  %v129 = vsub.f32 %v42, %v113
  %v130 = vmul.f32 %v114, %v114
  %v131 = vmul.f32 %v115, %v115
  %v132 = vmul.f32 %v116, %v116
  %v133 = vmul.f32 %v117, %v117
  %v134 = vmul.f32 %v118, %v118
  %v135 = vmul.f32 %v119, %v119
  %v136 = vmul.f32 %v120, %v120
  %v137 = vmul.f32 %v121, %v121
  %v138 = vmul.f32 %v122, %v122
  %v139 = vmul.f32 %v123, %v123
  %v140 = vmul.f32 %v124, %v124
  %v141 = vmul.f32 %v125, %v125
  %v142 = vmul.f32 %v126, %v126
  %v143 = vmul.f32 %v127, %v127
  %v144 = vmul.f32 %v128, %v128
  %v145 = vmul.f32 %v129, %v129
  %v146 = vsel %vm48, %v130, 0.0
  %147 = vadd.xlane.f32.xlu0 %v146
  %v148 = vpop.xlane.xlu0 %147
  %v149 = vsel %vm48, %v131, 0.0
  %150 = vadd.xlane.f32.xlu0 %v149
  %v151 = vpop.xlane.xlu0 %150
  %v152 = vsel %vm48, %v132, 0.0
  %153 = vadd.xlane.f32.xlu0 %v152
  %v154 = vpop.xlane.xlu0 %153
  %v155 = vsel %vm48, %v133, 0.0
  %156 = vadd.xlane.f32.xlu0 %v155
  %v157 = vpop.xlane.xlu0 %156
  %v158 = vsel %vm48, %v134, 0.0
  %159 = vadd.xlane.f32.xlu0 %v158
  %v160 = vpop.xlane.xlu0 %159
  %v161 = vsel %vm48, %v135, 0.0
  %162 = vadd.xlane.f32.xlu0 %v161
  %v163 = vpop.xlane.xlu0 %162
  %v164 = vsel %vm48, %v136, 0.0
  %165 = vadd.xlane.f32.xlu0 %v164
  %v166 = vpop.xlane.xlu0 %165
  %v167 = vsel %vm48, %v137, 0.0
  %168 = vadd.xlane.f32.xlu0 %v167
  %v169 = vpop.xlane.xlu0 %168
  %v170 = vsel %vm48, %v138, 0.0
  %171 = vadd.xlane.f32.xlu0 %v170
  %v172 = vpop.xlane.xlu0 %171
  %v173 = vsel %vm48, %v139, 0.0
  %174 = vadd.xlane.f32.xlu0 %v173
  %v175 = vpop.xlane.xlu0 %174
  %v176 = vsel %vm48, %v140, 0.0
  %177 = vadd.xlane.f32.xlu0 %v176
  %v178 = vpop.xlane.xlu0 %177
  %v179 = vsel %vm48, %v141, 0.0
  %180 = vadd.xlane.f32.xlu0 %v179
  %v181 = vpop.xlane.xlu0 %180
  %v182 = vsel %vm48, %v142, 0.0
  %183 = vadd.xlane.f32.xlu0 %v182
  %v184 = vpop.xlane.xlu0 %183
  %v185 = vsel %vm48, %v143, 0.0
  %186 = vadd.xlane.f32.xlu0 %v185
  %v187 = vpop.xlane.xlu0 %186
  %v188 = vsel %vm48, %v144, 0.0
  %189 = vadd.xlane.f32.xlu0 %v188
  %v190 = vpop.xlane.xlu0 %189
  %v191 = vsel %vm48, %v145, 0.0
  %192 = vadd.xlane.f32.xlu0 %v191
  %v193 = vpop.xlane.xlu0 %192
  %v194 = vmul.f32 %v148, %v97
  %v195 = vmul.f32 %v151, %v97
  %v196 = vmul.f32 %v154, %v97
  %v197 = vmul.f32 %v157, %v97
  %v198 = vmul.f32 %v160, %v97
  %v199 = vmul.f32 %v163, %v97
  %v200 = vmul.f32 %v166, %v97
  %v201 = vmul.f32 %v169, %v97
  %v202 = vmul.f32 %v172, %v97
  %v203 = vmul.f32 %v175, %v97
  %v204 = vmul.f32 %v178, %v97
  %v205 = vmul.f32 %v181, %v97
  %v206 = vmul.f32 %v184, %v97
  %v207 = vmul.f32 %v187, %v97
  %v208 = vmul.f32 %v190, %v97
  %v209 = vmul.f32 %v193, %v97
  %v210 = vadd.f32 %v194, 1e-05
  %v211 = vadd.f32 %v195, 1e-05
  %v212 = vadd.f32 %v196, 1e-05
  %v213 = vadd.f32 %v197, 1e-05
  %v214 = vadd.f32 %v198, 1e-05
  %v215 = vadd.f32 %v199, 1e-05
  %v216 = vadd.f32 %v200, 1e-05
  %v217 = vadd.f32 %v201, 1e-05
  %v218 = vadd.f32 %v202, 1e-05
  %v219 = vadd.f32 %v203, 1e-05
  %v220 = vadd.f32 %v204, 1e-05
  %v221 = vadd.f32 %v205, 1e-05
  %v222 = vadd.f32 %v206, 1e-05
  %v223 = vadd.f32 %v207, 1e-05
  %v224 = vadd.f32 %v208, 1e-05
  %v225 = vadd.f32 %v209, 1e-05
  %v226 = vrsqrt.pop %v210
  %v227 = vrsqrt.pop %v211
  %v228 = vrsqrt.pop %v212
  %v229 = vrsqrt.pop %v213
  %v230 = vrsqrt.pop %v214
  %v231 = vrsqrt.pop %v215
  %v232 = vrsqrt.pop %v216
  %v233 = vrsqrt.pop %v217
  %v234 = vrsqrt.pop %v218
  %v235 = vrsqrt.pop %v219
  %v236 = vrsqrt.pop %v220
  %v237 = vrsqrt.pop %v221
  %v238 = vrsqrt.pop %v222
  %v239 = vrsqrt.pop %v223
  %v240 = vrsqrt.pop %v224
  %v241 = vrsqrt.pop %v225
  %v242 = vmul.f32 %v114, %v226
  %v243 = vmul.f32 %v115, %v227
  %v244 = vmul.f32 %v116, %v228
  %v245 = vmul.f32 %v117, %v229
  %v246 = vmul.f32 %v118, %v230
  %v247 = vmul.f32 %v119, %v231
  %v248 = vmul.f32 %v120, %v232
  %v249 = vmul.f32 %v121, %v233
  %v250 = vmul.f32 %v122, %v234
  %v251 = vmul.f32 %v123, %v235
  %v252 = vmul.f32 %v124, %v236
  %v253 = vmul.f32 %v125, %v237
  %v254 = vmul.f32 %v126, %v238
  %v255 = vmul.f32 %v127, %v239
  %v256 = vmul.f32 %v128, %v240
  %v257 = vmul.f32 %v129, %v241
  %v258 = vlaneseq
  %v259 = vshrl.u32 %v258, 7
  %v260 = vsub.s32 0, %v259
  %v261 = vrot.slane %v43, %v260
  %v262 = vmul.f32 %v242, %v261
  %v263 = vmul.f32 %v243, %v261
  %v264 = vmul.f32 %v244, %v261
  %v265 = vmul.f32 %v245, %v261
  %v266 = vmul.f32 %v246, %v261
  %v267 = vmul.f32 %v247, %v261
  %v268 = vmul.f32 %v248, %v261
  %v269 = vmul.f32 %v249, %v261
  %v270 = vmul.f32 %v250, %v261
  %v271 = vmul.f32 %v251, %v261
  %v272 = vmul.f32 %v252, %v261
  %v273 = vmul.f32 %v253, %v261
  %v274 = vmul.f32 %v254, %v261
  %v275 = vmul.f32 %v255, %v261
  %v276 = vmul.f32 %v256, %v261
  %v277 = vmul.f32 %v257, %v261
  %v278 = vlaneseq
  %v279 = vshrl.u32 %v278, 7
  %v280 = vsub.s32 0, %v279
  %v281 = vrot.slane %v44, %v280
  %v282 = vadd.f32 %v262, %v281
  %v283 = vadd.f32 %v263, %v281
  %v284 = vadd.f32 %v264, %v281
  %v285 = vadd.f32 %v265, %v281
  %v286 = vadd.f32 %v266, %v281
  %v287 = vadd.f32 %v267, %v281
  %v288 = vadd.f32 %v268, %v281
  %v289 = vadd.f32 %v269, %v281
  %v290 = vadd.f32 %v270, %v281
  %v291 = vadd.f32 %v271, %v281
  %v292 = vadd.f32 %v272, %v281
  %v293 = vadd.f32 %v273, %v281
  %v294 = vadd.f32 %v274, %v281
  %v295 = vadd.f32 %v275, %v281
  %v296 = vadd.f32 %v276, %v281
  %v297 = vadd.f32 %v277, %v281
  %v298 = vpack.c.bf16 %v283, %v282
  %v299 = vpack.c.bf16 %v285, %v284
  %v300 = vpack.c.bf16 %v287, %v286
  %v301 = vpack.c.bf16 %v289, %v288
  %v302 = vpack.c.bf16 %v291, %v290
  %v303 = vpack.c.bf16 %v293, %v292
  %v304 = vpack.c.bf16 %v295, %v294
  %v305 = vpack.c.bf16 %v297, %v296
  %v306 = vld [vmem:[%s1] sm:$0xf]
  %v307 = vld [vmem:[%s1 + $0x4] sm:$0xf]
  %v308 = vld [vmem:[%s1 + $0x8] sm:$0xf]
  %v309 = vld [vmem:[%s1 + $0xc] sm:$0xf]
  %v310 = vld [vmem:[%s2] sm:$0x1]
  %v312 = vlaneseq
  %v313 = vshrl.u32 %v312, 7
  %v314 = vsub.s32 0, %v313
  %v315 = vrot.slane %v310, %v314
  %v321 = vunpack.c.l.b16 %v306
  %v322 = vunpack.c.l.b16 %v307
  %v323 = vunpack.c.l.b16 %v308
  %v324 = vunpack.c.l.b16 %v309
  %v325 = vpack.c.b16 %v322, %v321
  %v326 = vpack.c.b16 %v324, %v323
  %v330 = vsel %vm48, %v298, 0
  %v333 = vsel %vm48, %v299, 0
  %v336 = vsel %vm48, %v300, 0
  %v339 = vsel %vm48, %v301, 0
  %v342 = vsel %vm48, %v302, 0
  %v345 = vsel %vm48, %v303, 0
  %v348 = vsel %vm48, %v304, 0
  %v351 = vsel %vm48, %v305, 0
  %353 = vmatprep.subr.bf16.mxu0 0
  %354 = vmatpush1.bf16.msra.mxu0 0
  %355 = vmatprep.subr.bf16.mxu0 0
  %356 = vmatpush1.bf16.msra.mxu0 0
  %357 = vmatprep.subr.bf16.mxu0 0
  %358 = vmatpush1.bf16.msra.mxu0 0
  %359 = vmatprep.subr.bf16.mxu0 0
  %360 = vmatpush1.bf16.msra.mxu0 0
  %361 = vmatprep.subr.bf16.mxu0 0
  %362 = vmatpush1.bf16.msra.mxu0 0
  %363 = vmatprep.subr.bf16.mxu0 0
  %364 = vmatpush1.bf16.msra.mxu0 0
  %365 = vmatprep.subr.bf16.mxu0 0
  %366 = vmatpush1.bf16.msra.mxu0 %v326
  %367 = vmatprep.subr.bf16.mxu0 0
  %368 = vmatpush1.bf16.msra.mxu0 %v325
  %369 = vmatprep.subr.bf16.mxu0 0
  %370 = vmatpush2.bf16.msra.mxu0 0
  %371 = vmatprep.subr.bf16.mxu0 0
  %372 = vmatpush2.bf16.msra.mxu0 0
  %373 = vmatprep.subr.bf16.mxu0 0
  %374 = vmatpush2.bf16.msra.mxu0 0
  %375 = vmatprep.subr.bf16.mxu0 0
  %376 = vmatpush2.bf16.msra.mxu0 0
  %377 = vmatprep.subr.bf16.mxu0 0
  %378 = vmatpush2.bf16.msra.mxu0 0
  %379 = vmatprep.subr.bf16.mxu0 0
  %380 = vmatpush2.bf16.msra.mxu0 0
  %381 = vmatprep.subr.bf16.mxu0 0
  %382 = vmatpush2.bf16.msra.mxu0 0
  %383 = vmatprep.subr.bf16.mxu0 0
  %384 = vmatpush2.bf16.msra.mxu0 0
  %385 = vmatprep.mubr.bf16.mxu0 0
  %386 = vmatmul.mubr.bf16.gmra.mxu0 %v330
  %v387 = vpop.f32.mrf.mxu0
  %v388 = vadd.f32 %v315, %v387
  %v389 = vpop.f32.mrf.mxu0
  %v390 = vpop.f32.mrf.mxu0
  %v391 = vadd.f32 %v315, %v390
  %v392 = vpop.f32.mrf.mxu0
  %393 = vmatprep.mubr.bf16.mxu0 0
  %394 = vmatmul.mubr.bf16.gmra.mxu0 %v333
  %v395 = vpop.f32.mrf.mxu0
  %v396 = vadd.f32 %v315, %v395
  %v397 = vpop.f32.mrf.mxu0
  %v398 = vpop.f32.mrf.mxu0
  %v399 = vadd.f32 %v315, %v398
  %v400 = vpop.f32.mrf.mxu0
  %401 = vmatprep.mubr.bf16.mxu0 0
  %402 = vmatmul.mubr.bf16.gmra.mxu0 %v336
  %v403 = vpop.f32.mrf.mxu0
  %v404 = vadd.f32 %v315, %v403
  %v405 = vpop.f32.mrf.mxu0
  %v406 = vpop.f32.mrf.mxu0
  %v407 = vadd.f32 %v315, %v406
  %v408 = vpop.f32.mrf.mxu0
  %409 = vmatprep.mubr.bf16.mxu0 0
  %410 = vmatmul.mubr.bf16.gmra.mxu0 %v339
  %v411 = vpop.f32.mrf.mxu0
  %v412 = vadd.f32 %v315, %v411
  %v413 = vpop.f32.mrf.mxu0
  %v414 = vpop.f32.mrf.mxu0
  %v415 = vadd.f32 %v315, %v414
  %v416 = vpop.f32.mrf.mxu0
  %417 = vmatprep.mubr.bf16.mxu0 0
  %418 = vmatmul.mubr.bf16.gmra.mxu0 %v342
  %v419 = vpop.f32.mrf.mxu0
  %v420 = vadd.f32 %v315, %v419
  %v421 = vpop.f32.mrf.mxu0
  %v422 = vpop.f32.mrf.mxu0
  %v423 = vadd.f32 %v315, %v422
  %v424 = vpop.f32.mrf.mxu0
  %425 = vmatprep.mubr.bf16.mxu0 0
  %426 = vmatmul.mubr.bf16.gmra.mxu0 %v345
  %v427 = vpop.f32.mrf.mxu0
  %v428 = vadd.f32 %v315, %v427
  %v429 = vpop.f32.mrf.mxu0
  %v430 = vpop.f32.mrf.mxu0
  %v431 = vadd.f32 %v315, %v430
  %v432 = vpop.f32.mrf.mxu0
  %433 = vmatprep.mubr.bf16.mxu0 0
  %434 = vmatmul.mubr.bf16.gmra.mxu0 %v348
  %v435 = vpop.f32.mrf.mxu0
  %v436 = vadd.f32 %v315, %v435
  %v437 = vpop.f32.mrf.mxu0
  %v438 = vpop.f32.mrf.mxu0
  %v439 = vadd.f32 %v315, %v438
  %v440 = vpop.f32.mrf.mxu0
  %441 = vmatprep.mubr.bf16.mxu0 0
  %442 = vmatmul.mubr.bf16.gmra.mxu0 %v351
  %v443 = vpop.f32.mrf.mxu0
  %v444 = vadd.f32 %v315, %v443
  %v445 = vpop.f32.mrf.mxu0
  %v446 = vpop.f32.mrf.mxu0
  %v447 = vadd.f32 %v315, %v446
  %v448 = vpop.f32.mrf.mxu0
  %449 = vdwg.mxu0
  %v450 = vpack.c.bf16 %v391, %v388
  %v451 = vpack.c.bf16 %v399, %v396
  %v452 = vpack.c.bf16 %v407, %v404
  %v453 = vpack.c.bf16 %v415, %v412
  %v454 = vpack.c.bf16 %v423, %v420
  %v455 = vpack.c.bf16 %v431, %v428
  %v456 = vpack.c.bf16 %v439, %v436
  %v457 = vpack.c.bf16 %v447, %v444
  %462 = vrot.lane.b32.xlu0 %v450, 96
  %v463 = vpop.permute.xlu0 %462
  %464 = vrot.lane.b32.xlu0 %v451, 96
  %v465 = vpop.permute.xlu0 %464
  %466 = vrot.lane.b32.xlu0 %v452, 96
  %v467 = vpop.permute.xlu0 %466
  %468 = vrot.lane.b32.xlu0 %v453, 96
  %v469 = vpop.permute.xlu0 %468
  %vm470 = vcmask 64512
  %v472 = vsel %vm470, %v450, 0
  %v475 = vsel %vm470, %v451, 0
  %v478 = vsel %vm470, %v452, 0
  %v481 = vsel %vm470, %v453, 0
  %v484 = vsel %vm470, %v463, 0
  %v487 = vsel %vm470, %v465, 0
  %v490 = vsel %vm470, %v467, 0
  %v493 = vsel %vm470, %v469, 0
  %495 = vmatprep.subr.bf16.mxu0 0
  %496 = vmatpush1.bf16.xpose.msra.mxu0 0
  %497 = vmatprep.subr.bf16.mxu0 0
  %498 = vmatpush1.bf16.xpose.msra.mxu0 0
  %499 = vmatprep.subr.bf16.mxu0 0
  %500 = vmatpush1.bf16.xpose.msra.mxu0 0
  %501 = vmatprep.subr.bf16.mxu0 0
  %502 = vmatpush1.bf16.xpose.msra.mxu0 0
  %503 = vmatprep.subr.bf16.mxu0 0
  %504 = vmatpush1.bf16.xpose.msra.mxu0 %v493
  %505 = vmatprep.subr.bf16.mxu0 0
  %506 = vmatpush1.bf16.xpose.msra.mxu0 %v490
  %507 = vmatprep.subr.bf16.mxu0 0
  %508 = vmatpush1.bf16.xpose.msra.mxu0 %v487
  %509 = vmatprep.subr.bf16.mxu0 0
  %510 = vmatpush1.bf16.xpose.msra.mxu0 %v484
  %511 = vmatprep.subr.bf16.mxu0 0
  %512 = vmatpush2.bf16.xpose.msra.mxu0 0
  %513 = vmatprep.subr.bf16.mxu0 0
  %514 = vmatpush2.bf16.xpose.msra.mxu0 0
  %515 = vmatprep.subr.bf16.mxu0 0
  %516 = vmatpush2.bf16.xpose.msra.mxu0 0
  %517 = vmatprep.subr.bf16.mxu0 0
  %518 = vmatpush2.bf16.xpose.msra.mxu0 0
  %519 = vmatprep.subr.bf16.mxu0 0
  %520 = vmatpush2.bf16.xpose.msra.mxu0 0
  %521 = vmatprep.subr.bf16.mxu0 0
  %522 = vmatpush2.bf16.xpose.msra.mxu0 0
  %523 = vmatprep.subr.bf16.mxu0 0
  %524 = vmatpush2.bf16.xpose.msra.mxu0 0
  %525 = vmatprep.subr.bf16.mxu0 0
  %526 = vmatpush2.bf16.xpose.msra.mxu0 0
  %527 = vmatprep.mubr.bf16.mxu0 0
  %528 = vmatmul.mubr.bf16.gmra.mxu0 %v472
  %v529 = vpop.f32.mrf.mxu0
  %v530 = vadd.f32 0.0, %v529
  %v531 = vpop.f32.mrf.mxu0
  %v532 = vpop.f32.mrf.mxu0
  %v533 = vadd.f32 0.0, %v532
  %v534 = vpop.f32.mrf.mxu0
  %535 = vmatprep.mubr.bf16.mxu0 0
  %536 = vmatmul.mubr.bf16.gmra.mxu0 %v475
  %v537 = vpop.f32.mrf.mxu0
  %v538 = vadd.f32 0.0, %v537
  %v539 = vpop.f32.mrf.mxu0
  %v540 = vpop.f32.mrf.mxu0
  %v541 = vadd.f32 0.0, %v540
  %v542 = vpop.f32.mrf.mxu0
  %543 = vmatprep.mubr.bf16.mxu0 0
  %544 = vmatmul.mubr.bf16.gmra.mxu0 %v478
  %v545 = vpop.f32.mrf.mxu0
  %v546 = vadd.f32 0.0, %v545
  %v547 = vpop.f32.mrf.mxu0
  %v548 = vpop.f32.mrf.mxu0
  %v549 = vadd.f32 0.0, %v548
  %v550 = vpop.f32.mrf.mxu0
  %551 = vmatprep.mubr.bf16.mxu0 0
  %552 = vmatmul.mubr.bf16.gmra.mxu0 %v481
  %v553 = vpop.f32.mrf.mxu0
  %v554 = vadd.f32 0.0, %v553
  %v555 = vpop.f32.mrf.mxu0
  %v556 = vpop.f32.mrf.mxu0
  %v557 = vadd.f32 0.0, %v556
  %v558 = vpop.f32.mrf.mxu0
  %559 = vdwg.mxu0
  %564 = vrot.lane.b32.xlu0 %v454, 96
  %v565 = vpop.permute.xlu0 %564
  %566 = vrot.lane.b32.xlu0 %v455, 96
  %v567 = vpop.permute.xlu0 %566
  %568 = vrot.lane.b32.xlu0 %v456, 96
  %v569 = vpop.permute.xlu0 %568
  %570 = vrot.lane.b32.xlu0 %v457, 96
  %v571 = vpop.permute.xlu0 %570
  %v573 = vsel %vm470, %v454, 0
  %v576 = vsel %vm470, %v455, 0
  %v579 = vsel %vm470, %v456, 0
  %v582 = vsel %vm470, %v457, 0
  %v585 = vsel %vm470, %v565, 0
  %v588 = vsel %vm470, %v567, 0
  %v591 = vsel %vm470, %v569, 0
  %v594 = vsel %vm470, %v571, 0
  %596 = vmatprep.subr.bf16.mxu0 0
  %597 = vmatpush1.bf16.xpose.msra.mxu0 0
  %598 = vmatprep.subr.bf16.mxu0 0
  %599 = vmatpush1.bf16.xpose.msra.mxu0 0
  %600 = vmatprep.subr.bf16.mxu0 0
  %601 = vmatpush1.bf16.xpose.msra.mxu0 0
  %602 = vmatprep.subr.bf16.mxu0 0
  %603 = vmatpush1.bf16.xpose.msra.mxu0 0
  %604 = vmatprep.subr.bf16.mxu0 0
  %605 = vmatpush1.bf16.xpose.msra.mxu0 %v594
  %606 = vmatprep.subr.bf16.mxu0 0
  %607 = vmatpush1.bf16.xpose.msra.mxu0 %v591
  %608 = vmatprep.subr.bf16.mxu0 0
  %609 = vmatpush1.bf16.xpose.msra.mxu0 %v588
  %610 = vmatprep.subr.bf16.mxu0 0
  %611 = vmatpush1.bf16.xpose.msra.mxu0 %v585
  %612 = vmatprep.subr.bf16.mxu0 0
  %613 = vmatpush2.bf16.xpose.msra.mxu0 0
  %614 = vmatprep.subr.bf16.mxu0 0
  %615 = vmatpush2.bf16.xpose.msra.mxu0 0
  %616 = vmatprep.subr.bf16.mxu0 0
  %617 = vmatpush2.bf16.xpose.msra.mxu0 0
  %618 = vmatprep.subr.bf16.mxu0 0
  %619 = vmatpush2.bf16.xpose.msra.mxu0 0
  %620 = vmatprep.subr.bf16.mxu0 0
  %621 = vmatpush2.bf16.xpose.msra.mxu0 0
  %622 = vmatprep.subr.bf16.mxu0 0
  %623 = vmatpush2.bf16.xpose.msra.mxu0 0
  %624 = vmatprep.subr.bf16.mxu0 0
  %625 = vmatpush2.bf16.xpose.msra.mxu0 0
  %626 = vmatprep.subr.bf16.mxu0 0
  %627 = vmatpush2.bf16.xpose.msra.mxu0 0
  %628 = vmatprep.mubr.bf16.mxu0 0
  %629 = vmatmul.mubr.bf16.gmra.mxu0 %v573
  %v630 = vpop.f32.mrf.mxu0
  %v631 = vadd.f32 0.0, %v630
  %v632 = vpop.f32.mrf.mxu0
  %v633 = vpop.f32.mrf.mxu0
  %v634 = vadd.f32 0.0, %v633
  %v635 = vpop.f32.mrf.mxu0
  %636 = vmatprep.mubr.bf16.mxu0 0
  %637 = vmatmul.mubr.bf16.gmra.mxu0 %v576
  %v638 = vpop.f32.mrf.mxu0
  %v639 = vadd.f32 0.0, %v638
  %v640 = vpop.f32.mrf.mxu0
  %v641 = vpop.f32.mrf.mxu0
  %v642 = vadd.f32 0.0, %v641
  %v643 = vpop.f32.mrf.mxu0
  %644 = vmatprep.mubr.bf16.mxu0 0
  %645 = vmatmul.mubr.bf16.gmra.mxu0 %v579
  %v646 = vpop.f32.mrf.mxu0
  %v647 = vadd.f32 0.0, %v646
  %v648 = vpop.f32.mrf.mxu0
  %v649 = vpop.f32.mrf.mxu0
  %v650 = vadd.f32 0.0, %v649
  %v651 = vpop.f32.mrf.mxu0
  %652 = vmatprep.mubr.bf16.mxu0 0
  %653 = vmatmul.mubr.bf16.gmra.mxu0 %v582
  %v654 = vpop.f32.mrf.mxu0
  %v655 = vadd.f32 0.0, %v654
  %v656 = vpop.f32.mrf.mxu0
  %v657 = vpop.f32.mrf.mxu0
  %v658 = vadd.f32 0.0, %v657
  %v659 = vpop.f32.mrf.mxu0
  %660 = vdwg.mxu0
  %v661 = vmul.f32 %v530, 0.35355338
  %v662 = vmul.f32 %v533, 0.35355338
  %v663 = vmul.f32 %v538, 0.35355338
  %v664 = vmul.f32 %v541, 0.35355338
  %v665 = vmul.f32 %v546, 0.35355338
  %v666 = vmul.f32 %v549, 0.35355338
  %v667 = vmul.f32 %v554, 0.35355338
  %v668 = vmul.f32 %v557, 0.35355338
  %v669 = vmul.f32 %v631, 0.35355338
  %v670 = vmul.f32 %v634, 0.35355338
  %v671 = vmul.f32 %v639, 0.35355338
  %v672 = vmul.f32 %v642, 0.35355338
  %v673 = vmul.f32 %v647, 0.35355338
  %v674 = vmul.f32 %v650, 0.35355338
  %v675 = vmul.f32 %v655, 0.35355338
  %v676 = vmul.f32 %v658, 0.35355338
  %vm677 = vcmask 523264
  %v678 = vsel %vm677, %v661, -inf
  %679 = vmax.xlane.f32.xlu0 %v678
  %v680 = vpop.xlane.xlu0 %679
  %v681 = vsel %vm677, %v662, -inf
  %682 = vmax.xlane.f32.xlu0 %v681
  %v683 = vpop.xlane.xlu0 %682
  %v684 = vsel %vm677, %v663, -inf
  %685 = vmax.xlane.f32.xlu0 %v684
  %v686 = vpop.xlane.xlu0 %685
  %v687 = vsel %vm677, %v664, -inf
  %688 = vmax.xlane.f32.xlu0 %v687
  %v689 = vpop.xlane.xlu0 %688
  %v690 = vsel %vm677, %v665, -inf
  %691 = vmax.xlane.f32.xlu0 %v690
  %v692 = vpop.xlane.xlu0 %691
  %v693 = vsel %vm677, %v666, -inf
  %694 = vmax.xlane.f32.xlu0 %v693
  %v695 = vpop.xlane.xlu0 %694
  %v696 = vsel %vm677, %v667, -inf
  %697 = vmax.xlane.f32.xlu0 %v696
  %v698 = vpop.xlane.xlu0 %697
  %v699 = vsel %vm677, %v668, -inf
  %700 = vmax.xlane.f32.xlu0 %v699
  %v701 = vpop.xlane.xlu0 %700
  %v702 = vsel %vm677, %v669, -inf
  %703 = vmax.xlane.f32.xlu0 %v702
  %v704 = vpop.xlane.xlu0 %703
  %v705 = vsel %vm677, %v670, -inf
  %706 = vmax.xlane.f32.xlu0 %v705
  %v707 = vpop.xlane.xlu0 %706
  %v708 = vsel %vm677, %v671, -inf
  %709 = vmax.xlane.f32.xlu0 %v708
  %v710 = vpop.xlane.xlu0 %709
  %v711 = vsel %vm677, %v672, -inf
  %712 = vmax.xlane.f32.xlu0 %v711
  %v713 = vpop.xlane.xlu0 %712
  %v714 = vsel %vm677, %v673, -inf
  %715 = vmax.xlane.f32.xlu0 %v714
  %v716 = vpop.xlane.xlu0 %715
  %v717 = vsel %vm677, %v674, -inf
  %718 = vmax.xlane.f32.xlu0 %v717
  %v719 = vpop.xlane.xlu0 %718
  %v720 = vsel %vm677, %v675, -inf
  %721 = vmax.xlane.f32.xlu0 %v720
  %v722 = vpop.xlane.xlu0 %721
  %v723 = vsel %vm677, %v676, -inf
  %724 = vmax.xlane.f32.xlu0 %v723
  %v725 = vpop.xlane.xlu0 %724
  %v726 = vsub.f32 %v661, %v680
  %v727 = vsub.f32 %v662, %v683
  %v728 = vsub.f32 %v663, %v686
  %v729 = vsub.f32 %v664, %v689
  %v730 = vsub.f32 %v665, %v692
  %v731 = vsub.f32 %v666, %v695
  %v732 = vsub.f32 %v667, %v698
  %v733 = vsub.f32 %v668, %v701
  %v734 = vsub.f32 %v669, %v704
  %v735 = vsub.f32 %v670, %v707
  %v736 = vsub.f32 %v671, %v710
  %v737 = vsub.f32 %v672, %v713
  %v738 = vsub.f32 %v673, %v716
  %v739 = vsub.f32 %v674, %v719
  %v740 = vsub.f32 %v675, %v722
  %v741 = vsub.f32 %v676, %v725
  %v742 = vmul.f32 %v726, 1.442695
  %v743 = vpow.pop %v742
  %v744 = vmul.f32 %v727, 1.442695
  %v745 = vpow.pop %v744
  %v746 = vmul.f32 %v728, 1.442695
  %v747 = vpow.pop %v746
  %v748 = vmul.f32 %v729, 1.442695
  %v749 = vpow.pop %v748
  %v750 = vmul.f32 %v730, 1.442695
  %v751 = vpow.pop %v750
  %v752 = vmul.f32 %v731, 1.442695
  %v753 = vpow.pop %v752
  %v754 = vmul.f32 %v732, 1.442695
  %v755 = vpow.pop %v754
  %v756 = vmul.f32 %v733, 1.442695
  %v757 = vpow.pop %v756
  %v758 = vmul.f32 %v734, 1.442695
  %v759 = vpow.pop %v758
  %v760 = vmul.f32 %v735, 1.442695
  %v761 = vpow.pop %v760
  %v762 = vmul.f32 %v736, 1.442695
  %v763 = vpow.pop %v762
  %v764 = vmul.f32 %v737, 1.442695
  %v765 = vpow.pop %v764
  %v766 = vmul.f32 %v738, 1.442695
  %v767 = vpow.pop %v766
  %v768 = vmul.f32 %v739, 1.442695
  %v769 = vpow.pop %v768
  %v770 = vmul.f32 %v740, 1.442695
  %v771 = vpow.pop %v770
  %v772 = vmul.f32 %v741, 1.442695
  %v773 = vpow.pop %v772
  %v774 = vsel %vm677, %v743, 0.0
  %775 = vadd.xlane.f32.xlu0 %v774
  %v776 = vpop.xlane.xlu0 %775
  %v777 = vsel %vm677, %v745, 0.0
  %778 = vadd.xlane.f32.xlu0 %v777
  %v779 = vpop.xlane.xlu0 %778
  %v780 = vsel %vm677, %v747, 0.0
  %781 = vadd.xlane.f32.xlu0 %v780
  %v782 = vpop.xlane.xlu0 %781
  %v783 = vsel %vm677, %v749, 0.0
  %784 = vadd.xlane.f32.xlu0 %v783
  %v785 = vpop.xlane.xlu0 %784
  %v786 = vsel %vm677, %v751, 0.0
  %787 = vadd.xlane.f32.xlu0 %v786
  %v788 = vpop.xlane.xlu0 %787
  %v789 = vsel %vm677, %v753, 0.0
  %790 = vadd.xlane.f32.xlu0 %v789
  %v791 = vpop.xlane.xlu0 %790
  %v792 = vsel %vm677, %v755, 0.0
  %793 = vadd.xlane.f32.xlu0 %v792
  %v794 = vpop.xlane.xlu0 %793
  %v795 = vsel %vm677, %v757, 0.0
  %796 = vadd.xlane.f32.xlu0 %v795
  %v797 = vpop.xlane.xlu0 %796
  %v798 = vsel %vm677, %v759, 0.0
  %799 = vadd.xlane.f32.xlu0 %v798
  %v800 = vpop.xlane.xlu0 %799
  %v801 = vsel %vm677, %v761, 0.0
  %802 = vadd.xlane.f32.xlu0 %v801
  %v803 = vpop.xlane.xlu0 %802
  %v804 = vsel %vm677, %v763, 0.0
  %805 = vadd.xlane.f32.xlu0 %v804
  %v806 = vpop.xlane.xlu0 %805
  %v807 = vsel %vm677, %v765, 0.0
  %808 = vadd.xlane.f32.xlu0 %v807
  %v809 = vpop.xlane.xlu0 %808
  %v810 = vsel %vm677, %v767, 0.0
  %811 = vadd.xlane.f32.xlu0 %v810
  %v812 = vpop.xlane.xlu0 %811
  %v813 = vsel %vm677, %v769, 0.0
  %814 = vadd.xlane.f32.xlu0 %v813
  %v815 = vpop.xlane.xlu0 %814
  %v816 = vsel %vm677, %v771, 0.0
  %817 = vadd.xlane.f32.xlu0 %v816
  %v818 = vpop.xlane.xlu0 %817
  %v819 = vsel %vm677, %v773, 0.0
  %820 = vadd.xlane.f32.xlu0 %v819
  %v821 = vpop.xlane.xlu0 %820
  %v822 = vpack.c.bf16 %v745, %v743
  %v823 = vpack.c.bf16 %v749, %v747
  %v824 = vpack.c.bf16 %v753, %v751
  %v825 = vpack.c.bf16 %v757, %v755
  %v826 = vpack.c.bf16 %v761, %v759
  %v827 = vpack.c.bf16 %v765, %v763
  %v828 = vpack.c.bf16 %v769, %v767
  %v829 = vpack.c.bf16 %v773, %v771
  %830 = vrot.lane.b32.xlu0 %v450, 64
  %v831 = vpop.permute.xlu0 %830
  %832 = vrot.lane.b32.xlu0 %v451, 64
  %v833 = vpop.permute.xlu0 %832
  %834 = vrot.lane.b32.xlu0 %v452, 64
  %v835 = vpop.permute.xlu0 %834
  %836 = vrot.lane.b32.xlu0 %v453, 64
  %v837 = vpop.permute.xlu0 %836
  %v843 = vsel %vm677, %v822, 0
  %v846 = vsel %vm677, %v823, 0
  %v849 = vsel %vm677, %v824, 0
  %v852 = vsel %vm677, %v825, 0
  %854 = vmatprep.subr.bf16.mxu0 0
  %855 = vmatpush1.bf16.msra.mxu0 0
  %856 = vmatprep.subr.bf16.mxu0 0
  %857 = vmatpush1.bf16.msra.mxu0 0
  %858 = vmatprep.subr.bf16.mxu0 0
  %859 = vmatpush1.bf16.msra.mxu0 0
  %860 = vmatprep.subr.bf16.mxu0 0
  %861 = vmatpush1.bf16.msra.mxu0 0
  %862 = vmatprep.subr.bf16.mxu0 0
  %863 = vmatpush1.bf16.msra.mxu0 %v837
  %864 = vmatprep.subr.bf16.mxu0 0
  %865 = vmatpush1.bf16.msra.mxu0 %v835
  %866 = vmatprep.subr.bf16.mxu0 0
  %867 = vmatpush1.bf16.msra.mxu0 %v833
  %868 = vmatprep.subr.bf16.mxu0 0
  %869 = vmatpush1.bf16.msra.mxu0 %v831
  %870 = vmatprep.subr.bf16.mxu0 0
  %871 = vmatpush2.bf16.msra.mxu0 0
  %872 = vmatprep.subr.bf16.mxu0 0
  %873 = vmatpush2.bf16.msra.mxu0 0
  %874 = vmatprep.subr.bf16.mxu0 0
  %875 = vmatpush2.bf16.msra.mxu0 0
  %876 = vmatprep.subr.bf16.mxu0 0
  %877 = vmatpush2.bf16.msra.mxu0 0
  %878 = vmatprep.subr.bf16.mxu0 0
  %879 = vmatpush2.bf16.msra.mxu0 0
  %880 = vmatprep.subr.bf16.mxu0 0
  %881 = vmatpush2.bf16.msra.mxu0 0
  %882 = vmatprep.subr.bf16.mxu0 0
  %883 = vmatpush2.bf16.msra.mxu0 0
  %884 = vmatprep.subr.bf16.mxu0 0
  %885 = vmatpush2.bf16.msra.mxu0 0
  %886 = vmatprep.mubr.bf16.mxu0 0
  %887 = vmatmul.mubr.bf16.gmra.mxu0 %v843
  %v888 = vpop.f32.mrf.mxu0
  %v889 = vadd.f32 0.0, %v888
  %v890 = vpop.f32.mrf.mxu0
  %v891 = vpop.f32.mrf.mxu0
  %v892 = vadd.f32 0.0, %v891
  %v893 = vpop.f32.mrf.mxu0
  %894 = vmatprep.mubr.bf16.mxu0 0
  %895 = vmatmul.mubr.bf16.gmra.mxu0 %v846
  %v896 = vpop.f32.mrf.mxu0
  %v897 = vadd.f32 0.0, %v896
  %v898 = vpop.f32.mrf.mxu0
  %v899 = vpop.f32.mrf.mxu0
  %v900 = vadd.f32 0.0, %v899
  %v901 = vpop.f32.mrf.mxu0
  %902 = vmatprep.mubr.bf16.mxu0 0
  %903 = vmatmul.mubr.bf16.gmra.mxu0 %v849
  %v904 = vpop.f32.mrf.mxu0
  %v905 = vadd.f32 0.0, %v904
  %v906 = vpop.f32.mrf.mxu0
  %v907 = vpop.f32.mrf.mxu0
  %v908 = vadd.f32 0.0, %v907
  %v909 = vpop.f32.mrf.mxu0
  %910 = vmatprep.mubr.bf16.mxu0 0
  %911 = vmatmul.mubr.bf16.gmra.mxu0 %v852
  %v912 = vpop.f32.mrf.mxu0
  %v913 = vadd.f32 0.0, %v912
  %v914 = vpop.f32.mrf.mxu0
  %v915 = vpop.f32.mrf.mxu0
  %v916 = vadd.f32 0.0, %v915
  %v917 = vpop.f32.mrf.mxu0
  %918 = vdwg.mxu0
  %919 = vrot.lane.b32.xlu0 %v454, 64
  %v920 = vpop.permute.xlu0 %919
  %921 = vrot.lane.b32.xlu0 %v455, 64
  %v922 = vpop.permute.xlu0 %921
  %923 = vrot.lane.b32.xlu0 %v456, 64
  %v924 = vpop.permute.xlu0 %923
  %925 = vrot.lane.b32.xlu0 %v457, 64
  %v926 = vpop.permute.xlu0 %925
  %v932 = vsel %vm677, %v826, 0
  %v935 = vsel %vm677, %v827, 0
  %v938 = vsel %vm677, %v828, 0
  %v941 = vsel %vm677, %v829, 0
  %943 = vmatprep.subr.bf16.mxu0 0
  %944 = vmatpush1.bf16.msra.mxu0 0
  %945 = vmatprep.subr.bf16.mxu0 0
  %946 = vmatpush1.bf16.msra.mxu0 0
  %947 = vmatprep.subr.bf16.mxu0 0
  %948 = vmatpush1.bf16.msra.mxu0 0
  %949 = vmatprep.subr.bf16.mxu0 0
  %950 = vmatpush1.bf16.msra.mxu0 0
  %951 = vmatprep.subr.bf16.mxu0 0
  %952 = vmatpush1.bf16.msra.mxu0 %v926
  %953 = vmatprep.subr.bf16.mxu0 0
  %954 = vmatpush1.bf16.msra.mxu0 %v924
  %955 = vmatprep.subr.bf16.mxu0 0
  %956 = vmatpush1.bf16.msra.mxu0 %v922
  %957 = vmatprep.subr.bf16.mxu0 0
  %958 = vmatpush1.bf16.msra.mxu0 %v920
  %959 = vmatprep.subr.bf16.mxu0 0
  %960 = vmatpush2.bf16.msra.mxu0 0
  %961 = vmatprep.subr.bf16.mxu0 0
  %962 = vmatpush2.bf16.msra.mxu0 0
  %963 = vmatprep.subr.bf16.mxu0 0
  %964 = vmatpush2.bf16.msra.mxu0 0
  %965 = vmatprep.subr.bf16.mxu0 0
  %966 = vmatpush2.bf16.msra.mxu0 0
  %967 = vmatprep.subr.bf16.mxu0 0
  %968 = vmatpush2.bf16.msra.mxu0 0
  %969 = vmatprep.subr.bf16.mxu0 0
  %970 = vmatpush2.bf16.msra.mxu0 0
  %971 = vmatprep.subr.bf16.mxu0 0
  %972 = vmatpush2.bf16.msra.mxu0 0
  %973 = vmatprep.subr.bf16.mxu0 0
  %974 = vmatpush2.bf16.msra.mxu0 0
  %975 = vmatprep.mubr.bf16.mxu0 0
  %976 = vmatmul.mubr.bf16.gmra.mxu0 %v932
  %v977 = vpop.f32.mrf.mxu0
  %v978 = vadd.f32 0.0, %v977
  %v979 = vpop.f32.mrf.mxu0
  %v980 = vpop.f32.mrf.mxu0
  %v981 = vadd.f32 0.0, %v980
  %v982 = vpop.f32.mrf.mxu0
  %983 = vmatprep.mubr.bf16.mxu0 0
  %984 = vmatmul.mubr.bf16.gmra.mxu0 %v935
  %v985 = vpop.f32.mrf.mxu0
  %v986 = vadd.f32 0.0, %v985
  %v987 = vpop.f32.mrf.mxu0
  %v988 = vpop.f32.mrf.mxu0
  %v989 = vadd.f32 0.0, %v988
  %v990 = vpop.f32.mrf.mxu0
  %991 = vmatprep.mubr.bf16.mxu0 0
  %992 = vmatmul.mubr.bf16.gmra.mxu0 %v938
  %v993 = vpop.f32.mrf.mxu0
  %v994 = vadd.f32 0.0, %v993
  %v995 = vpop.f32.mrf.mxu0
  %v996 = vpop.f32.mrf.mxu0
  %v997 = vadd.f32 0.0, %v996
  %v998 = vpop.f32.mrf.mxu0
  %999 = vmatprep.mubr.bf16.mxu0 0
  %1000 = vmatmul.mubr.bf16.gmra.mxu0 %v941
  %v1001 = vpop.f32.mrf.mxu0
  %v1002 = vadd.f32 0.0, %v1001
  %v1003 = vpop.f32.mrf.mxu0
  %v1004 = vpop.f32.mrf.mxu0
  %v1005 = vadd.f32 0.0, %v1004
  %v1006 = vpop.f32.mrf.mxu0
  %1007 = vdwg.mxu0
  %v1008 = vrcp.pop %v776
  %v1009 = vrcp.pop %v779
  %v1010 = vrcp.pop %v782
  %v1011 = vrcp.pop %v785
  %v1012 = vrcp.pop %v788
  %v1013 = vrcp.pop %v791
  %v1014 = vrcp.pop %v794
  %v1015 = vrcp.pop %v797
  %v1016 = vrcp.pop %v800
  %v1017 = vrcp.pop %v803
  %v1018 = vrcp.pop %v806
  %v1019 = vrcp.pop %v809
  %v1020 = vrcp.pop %v812
  %v1021 = vrcp.pop %v815
  %v1022 = vrcp.pop %v818
  %v1023 = vrcp.pop %v821
  %v1024 = vmul.f32 %v889, %v1008
  %v1025 = vmul.f32 %v892, %v1009
  %v1026 = vmul.f32 %v897, %v1010
  %v1027 = vmul.f32 %v900, %v1011
  %v1028 = vmul.f32 %v905, %v1012
  %v1029 = vmul.f32 %v908, %v1013
  %v1030 = vmul.f32 %v913, %v1014
  %v1031 = vmul.f32 %v916, %v1015
  %v1032 = vmul.f32 %v978, %v1016
  %v1033 = vmul.f32 %v981, %v1017
  %v1034 = vmul.f32 %v986, %v1018
  %v1035 = vmul.f32 %v989, %v1019
  %v1036 = vmul.f32 %v994, %v1020
  %v1037 = vmul.f32 %v997, %v1021
  %v1038 = vmul.f32 %v1002, %v1022
  %v1039 = vmul.f32 %v1005, %v1023
  %v1040 = vpack.c.bf16 %v1025, %v1024
  %v1041 = vpack.c.bf16 %v1027, %v1026
  %v1042 = vpack.c.bf16 %v1029, %v1028
  %v1043 = vpack.c.bf16 %v1031, %v1030
  %v1044 = vpack.c.bf16 %v1033, %v1032
  %v1045 = vpack.c.bf16 %v1035, %v1034
  %v1046 = vpack.c.bf16 %v1037, %v1036
  %v1047 = vpack.c.bf16 %v1039, %v1038
  %v1048 = vld [vmem:[%s3] sm:$0xf]
  %1049 = vrot.lane.b32.xlu0 %v450, 120
  %v1050 = vpop.permute.xlu0 %1049
  %1051 = vrot.lane.b32.xlu0 %v451, 120
  %v1052 = vpop.permute.xlu0 %1051
  %1053 = vrot.lane.b32.xlu0 %v452, 120
  %v1054 = vpop.permute.xlu0 %1053
  %1055 = vrot.lane.b32.xlu0 %v453, 120
  %v1056 = vpop.permute.xlu0 %1055
  %1057 = vrot.lane.b32.xlu0 %v450, 88
  %v1058 = vpop.permute.xlu0 %1057
  %1059 = vrot.lane.b32.xlu0 %v451, 88
  %v1060 = vpop.permute.xlu0 %1059
  %1061 = vrot.lane.b32.xlu0 %v452, 88
  %v1062 = vpop.permute.xlu0 %1061
  %1063 = vrot.lane.b32.xlu0 %v453, 88
  %v1064 = vpop.permute.xlu0 %1063
  %v1066 = vsel %vm470, %v1050, 0
  %v1069 = vsel %vm470, %v1052, 0
  %v1072 = vsel %vm470, %v1054, 0
  %v1075 = vsel %vm470, %v1056, 0
  %v1078 = vsel %vm470, %v1058, 0
  %v1081 = vsel %vm470, %v1060, 0
  %v1084 = vsel %vm470, %v1062, 0
  %v1087 = vsel %vm470, %v1064, 0
  %1089 = vmatprep.subr.bf16.mxu0 0
  %1090 = vmatpush1.bf16.xpose.msra.mxu0 0
  %1091 = vmatprep.subr.bf16.mxu0 0
  %1092 = vmatpush1.bf16.xpose.msra.mxu0 0
  %1093 = vmatprep.subr.bf16.mxu0 0
  %1094 = vmatpush1.bf16.xpose.msra.mxu0 0
  %1095 = vmatprep.subr.bf16.mxu0 0
  %1096 = vmatpush1.bf16.xpose.msra.mxu0 0
  %1097 = vmatprep.subr.bf16.mxu0 0
  %1098 = vmatpush1.bf16.xpose.msra.mxu0 %v1087
  %1099 = vmatprep.subr.bf16.mxu0 0
  %1100 = vmatpush1.bf16.xpose.msra.mxu0 %v1084
  %1101 = vmatprep.subr.bf16.mxu0 0
  %1102 = vmatpush1.bf16.xpose.msra.mxu0 %v1081
  %1103 = vmatprep.subr.bf16.mxu0 0
  %1104 = vmatpush1.bf16.xpose.msra.mxu0 %v1078
  %1105 = vmatprep.subr.bf16.mxu0 0
  %1106 = vmatpush2.bf16.xpose.msra.mxu0 0
  %1107 = vmatprep.subr.bf16.mxu0 0
  %1108 = vmatpush2.bf16.xpose.msra.mxu0 0
  %1109 = vmatprep.subr.bf16.mxu0 0
  %1110 = vmatpush2.bf16.xpose.msra.mxu0 0
  %1111 = vmatprep.subr.bf16.mxu0 0
  %1112 = vmatpush2.bf16.xpose.msra.mxu0 0
  %1113 = vmatprep.subr.bf16.mxu0 0
  %1114 = vmatpush2.bf16.xpose.msra.mxu0 0
  %1115 = vmatprep.subr.bf16.mxu0 0
  %1116 = vmatpush2.bf16.xpose.msra.mxu0 0
  %1117 = vmatprep.subr.bf16.mxu0 0
  %1118 = vmatpush2.bf16.xpose.msra.mxu0 0
  %1119 = vmatprep.subr.bf16.mxu0 0
  %1120 = vmatpush2.bf16.xpose.msra.mxu0 0
  %1121 = vmatprep.mubr.bf16.mxu0 0
  %1122 = vmatmul.mubr.bf16.gmra.mxu0 %v1066
  %v1123 = vpop.f32.mrf.mxu0
  %v1124 = vadd.f32 0.0, %v1123
  %v1125 = vpop.f32.mrf.mxu0
  %v1126 = vpop.f32.mrf.mxu0
  %v1127 = vadd.f32 0.0, %v1126
  %v1128 = vpop.f32.mrf.mxu0
  %1129 = vmatprep.mubr.bf16.mxu0 0
  %1130 = vmatmul.mubr.bf16.gmra.mxu0 %v1069
  %v1131 = vpop.f32.mrf.mxu0
  %v1132 = vadd.f32 0.0, %v1131
  %v1133 = vpop.f32.mrf.mxu0
  %v1134 = vpop.f32.mrf.mxu0
  %v1135 = vadd.f32 0.0, %v1134
  %v1136 = vpop.f32.mrf.mxu0
  %1137 = vmatprep.mubr.bf16.mxu0 0
  %1138 = vmatmul.mubr.bf16.gmra.mxu0 %v1072
  %v1139 = vpop.f32.mrf.mxu0
  %v1140 = vadd.f32 0.0, %v1139
  %v1141 = vpop.f32.mrf.mxu0
  %v1142 = vpop.f32.mrf.mxu0
  %v1143 = vadd.f32 0.0, %v1142
  %v1144 = vpop.f32.mrf.mxu0
  %1145 = vmatprep.mubr.bf16.mxu0 0
  %1146 = vmatmul.mubr.bf16.gmra.mxu0 %v1075
  %v1147 = vpop.f32.mrf.mxu0
  %v1148 = vadd.f32 0.0, %v1147
  %v1149 = vpop.f32.mrf.mxu0
  %v1150 = vpop.f32.mrf.mxu0
  %v1151 = vadd.f32 0.0, %v1150
  %v1152 = vpop.f32.mrf.mxu0
  %1153 = vdwg.mxu0
  %1154 = vrot.lane.b32.xlu0 %v454, 120
  %v1155 = vpop.permute.xlu0 %1154
  %1156 = vrot.lane.b32.xlu0 %v455, 120
  %v1157 = vpop.permute.xlu0 %1156
  %1158 = vrot.lane.b32.xlu0 %v456, 120
  %v1159 = vpop.permute.xlu0 %1158
  %1160 = vrot.lane.b32.xlu0 %v457, 120
  %v1161 = vpop.permute.xlu0 %1160
  %1162 = vrot.lane.b32.xlu0 %v454, 88
  %v1163 = vpop.permute.xlu0 %1162
  %1164 = vrot.lane.b32.xlu0 %v455, 88
  %v1165 = vpop.permute.xlu0 %1164
  %1166 = vrot.lane.b32.xlu0 %v456, 88
  %v1167 = vpop.permute.xlu0 %1166
  %1168 = vrot.lane.b32.xlu0 %v457, 88
  %v1169 = vpop.permute.xlu0 %1168
  %v1171 = vsel %vm470, %v1155, 0
  %v1174 = vsel %vm470, %v1157, 0
  %v1177 = vsel %vm470, %v1159, 0
  %v1180 = vsel %vm470, %v1161, 0
  %v1183 = vsel %vm470, %v1163, 0
  %v1186 = vsel %vm470, %v1165, 0
  %v1189 = vsel %vm470, %v1167, 0
  %v1192 = vsel %vm470, %v1169, 0
  %1194 = vmatprep.subr.bf16.mxu0 0
  %1195 = vmatpush1.bf16.xpose.msra.mxu0 0
  %1196 = vmatprep.subr.bf16.mxu0 0
  %1197 = vmatpush1.bf16.xpose.msra.mxu0 0
  %1198 = vmatprep.subr.bf16.mxu0 0
  %1199 = vmatpush1.bf16.xpose.msra.mxu0 0
  %1200 = vmatprep.subr.bf16.mxu0 0
  %1201 = vmatpush1.bf16.xpose.msra.mxu0 0
  %1202 = vmatprep.subr.bf16.mxu0 0
  %1203 = vmatpush1.bf16.xpose.msra.mxu0 %v1192
  %1204 = vmatprep.subr.bf16.mxu0 0
  %1205 = vmatpush1.bf16.xpose.msra.mxu0 %v1189
  %1206 = vmatprep.subr.bf16.mxu0 0
  %1207 = vmatpush1.bf16.xpose.msra.mxu0 %v1186
  %1208 = vmatprep.subr.bf16.mxu0 0
  %1209 = vmatpush1.bf16.xpose.msra.mxu0 %v1183
  %1210 = vmatprep.subr.bf16.mxu0 0
  %1211 = vmatpush2.bf16.xpose.msra.mxu0 0
  %1212 = vmatprep.subr.bf16.mxu0 0
  %1213 = vmatpush2.bf16.xpose.msra.mxu0 0
  %1214 = vmatprep.subr.bf16.mxu0 0
  %1215 = vmatpush2.bf16.xpose.msra.mxu0 0
  %1216 = vmatprep.subr.bf16.mxu0 0
  %1217 = vmatpush2.bf16.xpose.msra.mxu0 0
  %1218 = vmatprep.subr.bf16.mxu0 0
  %1219 = vmatpush2.bf16.xpose.msra.mxu0 0
  %1220 = vmatprep.subr.bf16.mxu0 0
  %1221 = vmatpush2.bf16.xpose.msra.mxu0 0
  %1222 = vmatprep.subr.bf16.mxu0 0
  %1223 = vmatpush2.bf16.xpose.msra.mxu0 0
  %1224 = vmatprep.subr.bf16.mxu0 0
  %1225 = vmatpush2.bf16.xpose.msra.mxu0 0
  %1226 = vmatprep.mubr.bf16.mxu0 0
  %1227 = vmatmul.mubr.bf16.gmra.mxu0 %v1171
  %v1228 = vpop.f32.mrf.mxu0
  %v1229 = vadd.f32 0.0, %v1228
  %v1230 = vpop.f32.mrf.mxu0
  %v1231 = vpop.f32.mrf.mxu0
  %v1232 = vadd.f32 0.0, %v1231
  %v1233 = vpop.f32.mrf.mxu0
  %1234 = vmatprep.mubr.bf16.mxu0 0
  %1235 = vmatmul.mubr.bf16.gmra.mxu0 %v1174
  %v1236 = vpop.f32.mrf.mxu0
  %v1237 = vadd.f32 0.0, %v1236
  %v1238 = vpop.f32.mrf.mxu0
  %v1239 = vpop.f32.mrf.mxu0
  %v1240 = vadd.f32 0.0, %v1239
  %v1241 = vpop.f32.mrf.mxu0
  %1242 = vmatprep.mubr.bf16.mxu0 0
  %1243 = vmatmul.mubr.bf16.gmra.mxu0 %v1177
  %v1244 = vpop.f32.mrf.mxu0
  %v1245 = vadd.f32 0.0, %v1244
  %v1246 = vpop.f32.mrf.mxu0
  %v1247 = vpop.f32.mrf.mxu0
  %v1248 = vadd.f32 0.0, %v1247
  %v1249 = vpop.f32.mrf.mxu0
  %1250 = vmatprep.mubr.bf16.mxu0 0
  %1251 = vmatmul.mubr.bf16.gmra.mxu0 %v1180
  %v1252 = vpop.f32.mrf.mxu0
  %v1253 = vadd.f32 0.0, %v1252
  %v1254 = vpop.f32.mrf.mxu0
  %v1255 = vpop.f32.mrf.mxu0
  %v1256 = vadd.f32 0.0, %v1255
  %v1257 = vpop.f32.mrf.mxu0
  %1258 = vdwg.mxu0
  %v1259 = vmul.f32 %v1124, 0.35355338
  %v1260 = vmul.f32 %v1127, 0.35355338
  %v1261 = vmul.f32 %v1132, 0.35355338
  %v1262 = vmul.f32 %v1135, 0.35355338
  %v1263 = vmul.f32 %v1140, 0.35355338
  %v1264 = vmul.f32 %v1143, 0.35355338
  %v1265 = vmul.f32 %v1148, 0.35355338
  %v1266 = vmul.f32 %v1151, 0.35355338
  %v1267 = vmul.f32 %v1229, 0.35355338
  %v1268 = vmul.f32 %v1232, 0.35355338
  %v1269 = vmul.f32 %v1237, 0.35355338
  %v1270 = vmul.f32 %v1240, 0.35355338
  %v1271 = vmul.f32 %v1245, 0.35355338
  %v1272 = vmul.f32 %v1248, 0.35355338
  %v1273 = vmul.f32 %v1253, 0.35355338
  %v1274 = vmul.f32 %v1256, 0.35355338
  %v1275 = vsel %vm677, %v1259, -inf
  %1276 = vmax.xlane.f32.xlu0 %v1275
  %v1277 = vpop.xlane.xlu0 %1276
  %v1278 = vsel %vm677, %v1260, -inf
  %1279 = vmax.xlane.f32.xlu0 %v1278
  %v1280 = vpop.xlane.xlu0 %1279
  %v1281 = vsel %vm677, %v1261, -inf
  %1282 = vmax.xlane.f32.xlu0 %v1281
  %v1283 = vpop.xlane.xlu0 %1282
  %v1284 = vsel %vm677, %v1262, -inf
  %1285 = vmax.xlane.f32.xlu0 %v1284
  %v1286 = vpop.xlane.xlu0 %1285
  %v1287 = vsel %vm677, %v1263, -inf
  %1288 = vmax.xlane.f32.xlu0 %v1287
  %v1289 = vpop.xlane.xlu0 %1288
  %v1290 = vsel %vm677, %v1264, -inf
  %1291 = vmax.xlane.f32.xlu0 %v1290
  %v1292 = vpop.xlane.xlu0 %1291
  %v1293 = vsel %vm677, %v1265, -inf
  %1294 = vmax.xlane.f32.xlu0 %v1293
  %v1295 = vpop.xlane.xlu0 %1294
  %v1296 = vsel %vm677, %v1266, -inf
  %1297 = vmax.xlane.f32.xlu0 %v1296
  %v1298 = vpop.xlane.xlu0 %1297
  %v1299 = vsel %vm677, %v1267, -inf
  %1300 = vmax.xlane.f32.xlu0 %v1299
  %v1301 = vpop.xlane.xlu0 %1300
  %v1302 = vsel %vm677, %v1268, -inf
  %1303 = vmax.xlane.f32.xlu0 %v1302
  %v1304 = vpop.xlane.xlu0 %1303
  %v1305 = vsel %vm677, %v1269, -inf
  %1306 = vmax.xlane.f32.xlu0 %v1305
  %v1307 = vpop.xlane.xlu0 %1306
  %v1308 = vsel %vm677, %v1270, -inf
  %1309 = vmax.xlane.f32.xlu0 %v1308
  %v1310 = vpop.xlane.xlu0 %1309
  %v1311 = vsel %vm677, %v1271, -inf
  %1312 = vmax.xlane.f32.xlu0 %v1311
  %v1313 = vpop.xlane.xlu0 %1312
  %v1314 = vsel %vm677, %v1272, -inf
  %1315 = vmax.xlane.f32.xlu0 %v1314
  %v1316 = vpop.xlane.xlu0 %1315
  %v1317 = vsel %vm677, %v1273, -inf
  %1318 = vmax.xlane.f32.xlu0 %v1317
  %v1319 = vpop.xlane.xlu0 %1318
  %v1320 = vsel %vm677, %v1274, -inf
  %1321 = vmax.xlane.f32.xlu0 %v1320
  %v1322 = vpop.xlane.xlu0 %1321
  %v1323 = vsub.f32 %v1259, %v1277
  %v1324 = vsub.f32 %v1260, %v1280
  %v1325 = vsub.f32 %v1261, %v1283
  %v1326 = vsub.f32 %v1262, %v1286
  %v1327 = vsub.f32 %v1263, %v1289
  %v1328 = vsub.f32 %v1264, %v1292
  %v1329 = vsub.f32 %v1265, %v1295
  %v1330 = vsub.f32 %v1266, %v1298
  %v1331 = vsub.f32 %v1267, %v1301
  %v1332 = vsub.f32 %v1268, %v1304
  %v1333 = vsub.f32 %v1269, %v1307
  %v1334 = vsub.f32 %v1270, %v1310
  %v1335 = vsub.f32 %v1271, %v1313
  %v1336 = vsub.f32 %v1272, %v1316
  %v1337 = vsub.f32 %v1273, %v1319
  %v1338 = vsub.f32 %v1274, %v1322
  %v1339 = vmul.f32 %v1323, 1.442695
  %v1340 = vpow.pop %v1339
  %v1341 = vmul.f32 %v1324, 1.442695
  %v1342 = vpow.pop %v1341
  %v1343 = vmul.f32 %v1325, 1.442695
  %v1344 = vpow.pop %v1343
  %v1345 = vmul.f32 %v1326, 1.442695
  %v1346 = vpow.pop %v1345
  %v1347 = vmul.f32 %v1327, 1.442695
  %v1348 = vpow.pop %v1347
  %v1349 = vmul.f32 %v1328, 1.442695
  %v1350 = vpow.pop %v1349
  %v1351 = vmul.f32 %v1329, 1.442695
  %v1352 = vpow.pop %v1351
  %v1353 = vmul.f32 %v1330, 1.442695
  %v1354 = vpow.pop %v1353
  %v1355 = vmul.f32 %v1331, 1.442695
  %v1356 = vpow.pop %v1355
  %v1357 = vmul.f32 %v1332, 1.442695
  %v1358 = vpow.pop %v1357
  %v1359 = vmul.f32 %v1333, 1.442695
  %v1360 = vpow.pop %v1359
  %v1361 = vmul.f32 %v1334, 1.442695
  %v1362 = vpow.pop %v1361
  %v1363 = vmul.f32 %v1335, 1.442695
  %v1364 = vpow.pop %v1363
  %v1365 = vmul.f32 %v1336, 1.442695
  %v1366 = vpow.pop %v1365
  %v1367 = vmul.f32 %v1337, 1.442695
  %v1368 = vpow.pop %v1367
  %v1369 = vmul.f32 %v1338, 1.442695
  %v1370 = vpow.pop %v1369
  %v1371 = vsel %vm677, %v1340, 0.0
  %1372 = vadd.xlane.f32.xlu0 %v1371
  %v1373 = vpop.xlane.xlu0 %1372
  %v1374 = vsel %vm677, %v1342, 0.0
  %1375 = vadd.xlane.f32.xlu0 %v1374
  %v1376 = vpop.xlane.xlu0 %1375
  %v1377 = vsel %vm677, %v1344, 0.0
  %1378 = vadd.xlane.f32.xlu0 %v1377
  %v1379 = vpop.xlane.xlu0 %1378
  %v1380 = vsel %vm677, %v1346, 0.0
  %1381 = vadd.xlane.f32.xlu0 %v1380
  %v1382 = vpop.xlane.xlu0 %1381
  %v1383 = vsel %vm677, %v1348, 0.0
  %1384 = vadd.xlane.f32.xlu0 %v1383
  %v1385 = vpop.xlane.xlu0 %1384
  %v1386 = vsel %vm677, %v1350, 0.0
  %1387 = vadd.xlane.f32.xlu0 %v1386
  %v1388 = vpop.xlane.xlu0 %1387
  %v1389 = vsel %vm677, %v1352, 0.0
  %1390 = vadd.xlane.f32.xlu0 %v1389
  %v1391 = vpop.xlane.xlu0 %1390
  %v1392 = vsel %vm677, %v1354, 0.0
  %1393 = vadd.xlane.f32.xlu0 %v1392
  %v1394 = vpop.xlane.xlu0 %1393
  %v1395 = vsel %vm677, %v1356, 0.0
  %1396 = vadd.xlane.f32.xlu0 %v1395
  %v1397 = vpop.xlane.xlu0 %1396
  %v1398 = vsel %vm677, %v1358, 0.0
  %1399 = vadd.xlane.f32.xlu0 %v1398
  %v1400 = vpop.xlane.xlu0 %1399
  %v1401 = vsel %vm677, %v1360, 0.0
  %1402 = vadd.xlane.f32.xlu0 %v1401
  %v1403 = vpop.xlane.xlu0 %1402
  %v1404 = vsel %vm677, %v1362, 0.0
  %1405 = vadd.xlane.f32.xlu0 %v1404
  %v1406 = vpop.xlane.xlu0 %1405
  %v1407 = vsel %vm677, %v1364, 0.0
  %1408 = vadd.xlane.f32.xlu0 %v1407
  %v1409 = vpop.xlane.xlu0 %1408
  %v1410 = vsel %vm677, %v1366, 0.0
  %1411 = vadd.xlane.f32.xlu0 %v1410
  %v1412 = vpop.xlane.xlu0 %1411
  %v1413 = vsel %vm677, %v1368, 0.0
  %1414 = vadd.xlane.f32.xlu0 %v1413
  %v1415 = vpop.xlane.xlu0 %1414
  %v1416 = vsel %vm677, %v1370, 0.0
  %1417 = vadd.xlane.f32.xlu0 %v1416
  %v1418 = vpop.xlane.xlu0 %1417
  %v1419 = vpack.c.bf16 %v1342, %v1340
  %v1420 = vpack.c.bf16 %v1346, %v1344
  %v1421 = vpack.c.bf16 %v1350, %v1348
  %v1422 = vpack.c.bf16 %v1354, %v1352
  %v1423 = vpack.c.bf16 %v1358, %v1356
  %v1424 = vpack.c.bf16 %v1362, %v1360
  %v1425 = vpack.c.bf16 %v1366, %v1364
  %v1426 = vpack.c.bf16 %v1370, %v1368
  %1427 = vrot.lane.b32.xlu0 %v450, 56
  %v1428 = vpop.permute.xlu0 %1427
  %1429 = vrot.lane.b32.xlu0 %v451, 56
  %v1430 = vpop.permute.xlu0 %1429
  %1431 = vrot.lane.b32.xlu0 %v452, 56
  %v1432 = vpop.permute.xlu0 %1431
  %1433 = vrot.lane.b32.xlu0 %v453, 56
  %v1434 = vpop.permute.xlu0 %1433
  %v1440 = vsel %vm677, %v1419, 0
  %v1443 = vsel %vm677, %v1420, 0
  %v1446 = vsel %vm677, %v1421, 0
  %v1449 = vsel %vm677, %v1422, 0
  %1451 = vmatprep.subr.bf16.mxu0 0
  %1452 = vmatpush1.bf16.msra.mxu0 0
  %1453 = vmatprep.subr.bf16.mxu0 0
  %1454 = vmatpush1.bf16.msra.mxu0 0
  %1455 = vmatprep.subr.bf16.mxu0 0
  %1456 = vmatpush1.bf16.msra.mxu0 0
  %1457 = vmatprep.subr.bf16.mxu0 0
  %1458 = vmatpush1.bf16.msra.mxu0 0
  %1459 = vmatprep.subr.bf16.mxu0 0
  %1460 = vmatpush1.bf16.msra.mxu0 %v1434
  %1461 = vmatprep.subr.bf16.mxu0 0
  %1462 = vmatpush1.bf16.msra.mxu0 %v1432
  %1463 = vmatprep.subr.bf16.mxu0 0
  %1464 = vmatpush1.bf16.msra.mxu0 %v1430
  %1465 = vmatprep.subr.bf16.mxu0 0
  %1466 = vmatpush1.bf16.msra.mxu0 %v1428
  %1467 = vmatprep.subr.bf16.mxu0 0
  %1468 = vmatpush2.bf16.msra.mxu0 0
  %1469 = vmatprep.subr.bf16.mxu0 0
  %1470 = vmatpush2.bf16.msra.mxu0 0
  %1471 = vmatprep.subr.bf16.mxu0 0
  %1472 = vmatpush2.bf16.msra.mxu0 0
  %1473 = vmatprep.subr.bf16.mxu0 0
  %1474 = vmatpush2.bf16.msra.mxu0 0
  %1475 = vmatprep.subr.bf16.mxu0 0
  %1476 = vmatpush2.bf16.msra.mxu0 0
  %1477 = vmatprep.subr.bf16.mxu0 0
  %1478 = vmatpush2.bf16.msra.mxu0 0
  %1479 = vmatprep.subr.bf16.mxu0 0
  %1480 = vmatpush2.bf16.msra.mxu0 0
  %1481 = vmatprep.subr.bf16.mxu0 0
  %1482 = vmatpush2.bf16.msra.mxu0 0
  %1483 = vmatprep.mubr.bf16.mxu0 0
  %1484 = vmatmul.mubr.bf16.gmra.mxu0 %v1440
  %v1485 = vpop.f32.mrf.mxu0
  %v1486 = vadd.f32 0.0, %v1485
  %v1487 = vpop.f32.mrf.mxu0
  %v1488 = vpop.f32.mrf.mxu0
  %v1489 = vadd.f32 0.0, %v1488
  %v1490 = vpop.f32.mrf.mxu0
  %1491 = vmatprep.mubr.bf16.mxu0 0
  %1492 = vmatmul.mubr.bf16.gmra.mxu0 %v1443
  %v1493 = vpop.f32.mrf.mxu0
  %v1494 = vadd.f32 0.0, %v1493
  %v1495 = vpop.f32.mrf.mxu0
  %v1496 = vpop.f32.mrf.mxu0
  %v1497 = vadd.f32 0.0, %v1496
  %v1498 = vpop.f32.mrf.mxu0
  %1499 = vmatprep.mubr.bf16.mxu0 0
  %1500 = vmatmul.mubr.bf16.gmra.mxu0 %v1446
  %v1501 = vpop.f32.mrf.mxu0
  %v1502 = vadd.f32 0.0, %v1501
  %v1503 = vpop.f32.mrf.mxu0
  %v1504 = vpop.f32.mrf.mxu0
  %v1505 = vadd.f32 0.0, %v1504
  %v1506 = vpop.f32.mrf.mxu0
  %1507 = vmatprep.mubr.bf16.mxu0 0
  %1508 = vmatmul.mubr.bf16.gmra.mxu0 %v1449
  %v1509 = vpop.f32.mrf.mxu0
  %v1510 = vadd.f32 0.0, %v1509
  %v1511 = vpop.f32.mrf.mxu0
  %v1512 = vpop.f32.mrf.mxu0
  %v1513 = vadd.f32 0.0, %v1512
  %v1514 = vpop.f32.mrf.mxu0
  %1515 = vdwg.mxu0
  %1516 = vrot.lane.b32.xlu0 %v454, 56
  %v1517 = vpop.permute.xlu0 %1516
  %1518 = vrot.lane.b32.xlu0 %v455, 56
  %v1519 = vpop.permute.xlu0 %1518
  %1520 = vrot.lane.b32.xlu0 %v456, 56
  %v1521 = vpop.permute.xlu0 %1520
  %1522 = vrot.lane.b32.xlu0 %v457, 56
  %v1523 = vpop.permute.xlu0 %1522
  %v1529 = vsel %vm677, %v1423, 0
  %v1532 = vsel %vm677, %v1424, 0
  %v1535 = vsel %vm677, %v1425, 0
  %v1538 = vsel %vm677, %v1426, 0
  %1540 = vmatprep.subr.bf16.mxu0 0
  %1541 = vmatpush1.bf16.msra.mxu0 0
  %1542 = vmatprep.subr.bf16.mxu0 0
  %1543 = vmatpush1.bf16.msra.mxu0 0
  %1544 = vmatprep.subr.bf16.mxu0 0
  %1545 = vmatpush1.bf16.msra.mxu0 0
  %1546 = vmatprep.subr.bf16.mxu0 0
  %1547 = vmatpush1.bf16.msra.mxu0 0
  %1548 = vmatprep.subr.bf16.mxu0 0
  %1549 = vmatpush1.bf16.msra.mxu0 %v1523
  %1550 = vmatprep.subr.bf16.mxu0 0
  %1551 = vmatpush1.bf16.msra.mxu0 %v1521
  %1552 = vmatprep.subr.bf16.mxu0 0
  %1553 = vmatpush1.bf16.msra.mxu0 %v1519
  %1554 = vmatprep.subr.bf16.mxu0 0
  %1555 = vmatpush1.bf16.msra.mxu0 %v1517
  %1556 = vmatprep.subr.bf16.mxu0 0
  %1557 = vmatpush2.bf16.msra.mxu0 0
  %1558 = vmatprep.subr.bf16.mxu0 0
  %1559 = vmatpush2.bf16.msra.mxu0 0
  %1560 = vmatprep.subr.bf16.mxu0 0
  %1561 = vmatpush2.bf16.msra.mxu0 0
  %1562 = vmatprep.subr.bf16.mxu0 0
  %1563 = vmatpush2.bf16.msra.mxu0 0
  %1564 = vmatprep.subr.bf16.mxu0 0
  %1565 = vmatpush2.bf16.msra.mxu0 0
  %1566 = vmatprep.subr.bf16.mxu0 0
  %1567 = vmatpush2.bf16.msra.mxu0 0
  %1568 = vmatprep.subr.bf16.mxu0 0
  %1569 = vmatpush2.bf16.msra.mxu0 0
  %1570 = vmatprep.subr.bf16.mxu0 0
  %1571 = vmatpush2.bf16.msra.mxu0 0
  %1572 = vmatprep.mubr.bf16.mxu0 0
  %1573 = vmatmul.mubr.bf16.gmra.mxu0 %v1529
  %v1574 = vpop.f32.mrf.mxu0
  %v1575 = vadd.f32 0.0, %v1574
  %v1576 = vpop.f32.mrf.mxu0
  %v1577 = vpop.f32.mrf.mxu0
  %v1578 = vadd.f32 0.0, %v1577
  %v1579 = vpop.f32.mrf.mxu0
  %1580 = vmatprep.mubr.bf16.mxu0 0
  %1581 = vmatmul.mubr.bf16.gmra.mxu0 %v1532
  %v1582 = vpop.f32.mrf.mxu0
  %v1583 = vadd.f32 0.0, %v1582
  %v1584 = vpop.f32.mrf.mxu0
  %v1585 = vpop.f32.mrf.mxu0
  %v1586 = vadd.f32 0.0, %v1585
  %v1587 = vpop.f32.mrf.mxu0
  %1588 = vmatprep.mubr.bf16.mxu0 0
  %1589 = vmatmul.mubr.bf16.gmra.mxu0 %v1535
  %v1590 = vpop.f32.mrf.mxu0
  %v1591 = vadd.f32 0.0, %v1590
  %v1592 = vpop.f32.mrf.mxu0
  %v1593 = vpop.f32.mrf.mxu0
  %v1594 = vadd.f32 0.0, %v1593
  %v1595 = vpop.f32.mrf.mxu0
  %1596 = vmatprep.mubr.bf16.mxu0 0
  %1597 = vmatmul.mubr.bf16.gmra.mxu0 %v1538
  %v1598 = vpop.f32.mrf.mxu0
  %v1599 = vadd.f32 0.0, %v1598
  %v1600 = vpop.f32.mrf.mxu0
  %v1601 = vpop.f32.mrf.mxu0
  %v1602 = vadd.f32 0.0, %v1601
  %v1603 = vpop.f32.mrf.mxu0
  %1604 = vdwg.mxu0
  %v1605 = vrcp.pop %v1373
  %v1606 = vrcp.pop %v1376
  %v1607 = vrcp.pop %v1379
  %v1608 = vrcp.pop %v1382
  %v1609 = vrcp.pop %v1385
  %v1610 = vrcp.pop %v1388
  %v1611 = vrcp.pop %v1391
  %v1612 = vrcp.pop %v1394
  %v1613 = vrcp.pop %v1397
  %v1614 = vrcp.pop %v1400
  %v1615 = vrcp.pop %v1403
  %v1616 = vrcp.pop %v1406
  %v1617 = vrcp.pop %v1409
  %v1618 = vrcp.pop %v1412
  %v1619 = vrcp.pop %v1415
  %v1620 = vrcp.pop %v1418
  %v1621 = vmul.f32 %v1486, %v1605
  %v1622 = vmul.f32 %v1489, %v1606
  %v1623 = vmul.f32 %v1494, %v1607
  %v1624 = vmul.f32 %v1497, %v1608
  %v1625 = vmul.f32 %v1502, %v1609
  %v1626 = vmul.f32 %v1505, %v1610
  %v1627 = vmul.f32 %v1510, %v1611
  %v1628 = vmul.f32 %v1513, %v1612
  %v1629 = vmul.f32 %v1575, %v1613
  %v1630 = vmul.f32 %v1578, %v1614
  %v1631 = vmul.f32 %v1583, %v1615
  %v1632 = vmul.f32 %v1586, %v1616
  %v1633 = vmul.f32 %v1591, %v1617
  %v1634 = vmul.f32 %v1594, %v1618
  %v1635 = vmul.f32 %v1599, %v1619
  %v1636 = vmul.f32 %v1602, %v1620
  %v1637 = vpack.c.bf16 %v1622, %v1621
  %v1638 = vpack.c.bf16 %v1624, %v1623
  %v1639 = vpack.c.bf16 %v1626, %v1625
  %v1640 = vpack.c.bf16 %v1628, %v1627
  %v1641 = vpack.c.bf16 %v1630, %v1629
  %v1642 = vpack.c.bf16 %v1632, %v1631
  %v1643 = vpack.c.bf16 %v1634, %v1633
  %v1644 = vpack.c.bf16 %v1636, %v1635
  %s1645 = scalar_lea.vmem %s3, 4
  %v1646 = vld [vmem:[%s1645] sm:$0xf]
  %v1648 = vsel %vm470, %v1637, 0
  %v1651 = vsel %vm470, %v1638, 0
  %v1654 = vsel %vm470, %v1639, 0
  %v1657 = vsel %vm470, %v1640, 0
  %v1660 = vsel %vm470, %v1641, 0
  %v1663 = vsel %vm470, %v1642, 0
  %v1666 = vsel %vm470, %v1643, 0
  %v1669 = vsel %vm470, %v1644, 0
  %vm1671 = vcmask 1043456
  %v1673 = vsel %vm1671, %v1646, 0
  %1675 = vmatprep.subr.bf16.mxu0 0
  %1676 = vmatpush1.bf16.msra.mxu0 0
  %1677 = vmatprep.subr.bf16.mxu0 0
  %1678 = vmatpush1.bf16.msra.mxu0 0
  %1679 = vmatprep.subr.bf16.mxu0 0
  %1680 = vmatpush1.bf16.msra.mxu0 0
  %1681 = vmatprep.subr.bf16.mxu0 0
  %1682 = vmatpush1.bf16.msra.mxu0 0
  %1683 = vmatprep.subr.bf16.mxu0 0
  %1684 = vmatpush1.bf16.msra.mxu0 0
  %1685 = vmatprep.subr.bf16.mxu0 0
  %1686 = vmatpush1.bf16.msra.mxu0 0
  %1687 = vmatprep.subr.bf16.mxu0 0
  %1688 = vmatpush1.bf16.msra.mxu0 0
  %1689 = vmatprep.subr.bf16.mxu0 0
  %1690 = vmatpush1.bf16.msra.mxu0 %v1673
  %1691 = vmatprep.subr.bf16.mxu0 0
  %1692 = vmatpush2.bf16.msra.mxu0 0
  %1693 = vmatprep.subr.bf16.mxu0 0
  %1694 = vmatpush2.bf16.msra.mxu0 0
  %1695 = vmatprep.subr.bf16.mxu0 0
  %1696 = vmatpush2.bf16.msra.mxu0 0
  %1697 = vmatprep.subr.bf16.mxu0 0
  %1698 = vmatpush2.bf16.msra.mxu0 0
  %1699 = vmatprep.subr.bf16.mxu0 0
  %1700 = vmatpush2.bf16.msra.mxu0 0
  %1701 = vmatprep.subr.bf16.mxu0 0
  %1702 = vmatpush2.bf16.msra.mxu0 0
  %1703 = vmatprep.subr.bf16.mxu0 0
  %1704 = vmatpush2.bf16.msra.mxu0 0
  %1705 = vmatprep.subr.bf16.mxu0 0
  %1706 = vmatpush2.bf16.msra.mxu0 0
  %1707 = vmatprep.mubr.bf16.mxu0 0
  %1708 = vmatmul.mubr.bf16.gmra.mxu0 %v1648
  %v1709 = vpop.f32.mrf.mxu0
  %v1710 = vadd.f32 0.0, %v1709
  %v1711 = vpop.f32.mrf.mxu0
  %v1712 = vpop.f32.mrf.mxu0
  %v1713 = vadd.f32 0.0, %v1712
  %v1714 = vpop.f32.mrf.mxu0
  %1715 = vmatprep.mubr.bf16.mxu0 0
  %1716 = vmatmul.mubr.bf16.gmra.mxu0 %v1651
  %v1717 = vpop.f32.mrf.mxu0
  %v1718 = vadd.f32 0.0, %v1717
  %v1719 = vpop.f32.mrf.mxu0
  %v1720 = vpop.f32.mrf.mxu0
  %v1721 = vadd.f32 0.0, %v1720
  %v1722 = vpop.f32.mrf.mxu0
  %1723 = vmatprep.mubr.bf16.mxu0 0
  %1724 = vmatmul.mubr.bf16.gmra.mxu0 %v1654
  %v1725 = vpop.f32.mrf.mxu0
  %v1726 = vadd.f32 0.0, %v1725
  %v1727 = vpop.f32.mrf.mxu0
  %v1728 = vpop.f32.mrf.mxu0
  %v1729 = vadd.f32 0.0, %v1728
  %v1730 = vpop.f32.mrf.mxu0
  %1731 = vmatprep.mubr.bf16.mxu0 0
  %1732 = vmatmul.mubr.bf16.gmra.mxu0 %v1657
  %v1733 = vpop.f32.mrf.mxu0
  %v1734 = vadd.f32 0.0, %v1733
  %v1735 = vpop.f32.mrf.mxu0
  %v1736 = vpop.f32.mrf.mxu0
  %v1737 = vadd.f32 0.0, %v1736
  %v1738 = vpop.f32.mrf.mxu0
  %1739 = vmatprep.mubr.bf16.mxu0 0
  %1740 = vmatmul.mubr.bf16.gmra.mxu0 %v1660
  %v1741 = vpop.f32.mrf.mxu0
  %v1742 = vadd.f32 0.0, %v1741
  %v1743 = vpop.f32.mrf.mxu0
  %v1744 = vpop.f32.mrf.mxu0
  %v1745 = vadd.f32 0.0, %v1744
  %v1746 = vpop.f32.mrf.mxu0
  %1747 = vmatprep.mubr.bf16.mxu0 0
  %1748 = vmatmul.mubr.bf16.gmra.mxu0 %v1663
  %v1749 = vpop.f32.mrf.mxu0
  %v1750 = vadd.f32 0.0, %v1749
  %v1751 = vpop.f32.mrf.mxu0
  %v1752 = vpop.f32.mrf.mxu0
  %v1753 = vadd.f32 0.0, %v1752
  %v1754 = vpop.f32.mrf.mxu0
  %1755 = vmatprep.mubr.bf16.mxu0 0
  %1756 = vmatmul.mubr.bf16.gmra.mxu0 %v1666
  %v1757 = vpop.f32.mrf.mxu0
  %v1758 = vadd.f32 0.0, %v1757
  %v1759 = vpop.f32.mrf.mxu0
  %v1760 = vpop.f32.mrf.mxu0
  %v1761 = vadd.f32 0.0, %v1760
  %v1762 = vpop.f32.mrf.mxu0
  %1763 = vmatprep.mubr.bf16.mxu0 0
  %1764 = vmatmul.mubr.bf16.gmra.mxu0 %v1669
  %v1765 = vpop.f32.mrf.mxu0
  %v1766 = vadd.f32 0.0, %v1765
  %v1767 = vpop.f32.mrf.mxu0
  %v1768 = vpop.f32.mrf.mxu0
  %v1769 = vadd.f32 0.0, %v1768
  %v1770 = vpop.f32.mrf.mxu0
  %1771 = vdwg.mxu0
  %v1773 = vsel %vm470, %v1040, 0
  %v1776 = vsel %vm470, %v1041, 0
  %v1779 = vsel %vm470, %v1042, 0
  %v1782 = vsel %vm470, %v1043, 0
  %v1785 = vsel %vm470, %v1044, 0
  %v1788 = vsel %vm470, %v1045, 0
  %v1791 = vsel %vm470, %v1046, 0
  %v1794 = vsel %vm470, %v1047, 0
  %v1797 = vsel %vm1671, %v1048, 0
  %1799 = vmatprep.subr.bf16.mxu0 0
  %1800 = vmatpush1.bf16.msra.mxu0 0
  %1801 = vmatprep.subr.bf16.mxu0 0
  %1802 = vmatpush1.bf16.msra.mxu0 0
  %1803 = vmatprep.subr.bf16.mxu0 0
  %1804 = vmatpush1.bf16.msra.mxu0 0
  %1805 = vmatprep.subr.bf16.mxu0 0
  %1806 = vmatpush1.bf16.msra.mxu0 0
  %1807 = vmatprep.subr.bf16.mxu0 0
  %1808 = vmatpush1.bf16.msra.mxu0 0
  %1809 = vmatprep.subr.bf16.mxu0 0
  %1810 = vmatpush1.bf16.msra.mxu0 0
  %1811 = vmatprep.subr.bf16.mxu0 0
  %1812 = vmatpush1.bf16.msra.mxu0 0
  %1813 = vmatprep.subr.bf16.mxu0 0
  %1814 = vmatpush1.bf16.msra.mxu0 %v1797
  %1815 = vmatprep.subr.bf16.mxu0 0
  %1816 = vmatpush2.bf16.msra.mxu0 0
  %1817 = vmatprep.subr.bf16.mxu0 0
  %1818 = vmatpush2.bf16.msra.mxu0 0
  %1819 = vmatprep.subr.bf16.mxu0 0
  %1820 = vmatpush2.bf16.msra.mxu0 0
  %1821 = vmatprep.subr.bf16.mxu0 0
  %1822 = vmatpush2.bf16.msra.mxu0 0
  %1823 = vmatprep.subr.bf16.mxu0 0
  %1824 = vmatpush2.bf16.msra.mxu0 0
  %1825 = vmatprep.subr.bf16.mxu0 0
  %1826 = vmatpush2.bf16.msra.mxu0 0
  %1827 = vmatprep.subr.bf16.mxu0 0
  %1828 = vmatpush2.bf16.msra.mxu0 0
  %1829 = vmatprep.subr.bf16.mxu0 0
  %1830 = vmatpush2.bf16.msra.mxu0 0
  %1831 = vmatprep.mubr.bf16.mxu0 0
  %1832 = vmatmul.mubr.bf16.gmra.mxu0 %v1773
  %v1833 = vpop.f32.mrf.mxu0
  %v1834 = vadd.f32 %v1710, %v1833
  %v1835 = vpop.f32.mrf.mxu0
  %v1836 = vpop.f32.mrf.mxu0
  %v1837 = vadd.f32 %v1713, %v1836
  %v1838 = vpop.f32.mrf.mxu0
  %1839 = vmatprep.mubr.bf16.mxu0 0
  %1840 = vmatmul.mubr.bf16.gmra.mxu0 %v1776
  %v1841 = vpop.f32.mrf.mxu0
  %v1842 = vadd.f32 %v1718, %v1841
  %v1843 = vpop.f32.mrf.mxu0
  %v1844 = vpop.f32.mrf.mxu0
  %v1845 = vadd.f32 %v1721, %v1844
  %v1846 = vpop.f32.mrf.mxu0
  %1847 = vmatprep.mubr.bf16.mxu0 0
  %1848 = vmatmul.mubr.bf16.gmra.mxu0 %v1779
  %v1849 = vpop.f32.mrf.mxu0
  %v1850 = vadd.f32 %v1726, %v1849
  %v1851 = vpop.f32.mrf.mxu0
  %v1852 = vpop.f32.mrf.mxu0
  %v1853 = vadd.f32 %v1729, %v1852
  %v1854 = vpop.f32.mrf.mxu0
  %1855 = vmatprep.mubr.bf16.mxu0 0
  %1856 = vmatmul.mubr.bf16.gmra.mxu0 %v1782
  %v1857 = vpop.f32.mrf.mxu0
  %v1858 = vadd.f32 %v1734, %v1857
  %v1859 = vpop.f32.mrf.mxu0
  %v1860 = vpop.f32.mrf.mxu0
  %v1861 = vadd.f32 %v1737, %v1860
  %v1862 = vpop.f32.mrf.mxu0
  %1863 = vmatprep.mubr.bf16.mxu0 0
  %1864 = vmatmul.mubr.bf16.gmra.mxu0 %v1785
  %v1865 = vpop.f32.mrf.mxu0
  %v1866 = vadd.f32 %v1742, %v1865
  %v1867 = vpop.f32.mrf.mxu0
  %v1868 = vpop.f32.mrf.mxu0
  %v1869 = vadd.f32 %v1745, %v1868
  %v1870 = vpop.f32.mrf.mxu0
  %1871 = vmatprep.mubr.bf16.mxu0 0
  %1872 = vmatmul.mubr.bf16.gmra.mxu0 %v1788
  %v1873 = vpop.f32.mrf.mxu0
  %v1874 = vadd.f32 %v1750, %v1873
  %v1875 = vpop.f32.mrf.mxu0
  %v1876 = vpop.f32.mrf.mxu0
  %v1877 = vadd.f32 %v1753, %v1876
  %v1878 = vpop.f32.mrf.mxu0
  %1879 = vmatprep.mubr.bf16.mxu0 0
  %1880 = vmatmul.mubr.bf16.gmra.mxu0 %v1791
  %v1881 = vpop.f32.mrf.mxu0
  %v1882 = vadd.f32 %v1758, %v1881
  %v1883 = vpop.f32.mrf.mxu0
  %v1884 = vpop.f32.mrf.mxu0
  %v1885 = vadd.f32 %v1761, %v1884
  %v1886 = vpop.f32.mrf.mxu0
  %1887 = vmatprep.mubr.bf16.mxu0 0
  %1888 = vmatmul.mubr.bf16.gmra.mxu0 %v1794
  %v1889 = vpop.f32.mrf.mxu0
  %v1890 = vadd.f32 %v1766, %v1889
  %v1891 = vpop.f32.mrf.mxu0
  %v1892 = vpop.f32.mrf.mxu0
  %v1893 = vadd.f32 %v1769, %v1892
  %v1894 = vpop.f32.mrf.mxu0
  %1895 = vdwg.mxu0
  %1896 = vrot.lane.b32.xlu0 %v450, 112
  %v1897 = vpop.permute.xlu0 %1896
  %1898 = vrot.lane.b32.xlu0 %v451, 112
  %v1899 = vpop.permute.xlu0 %1898
  %1900 = vrot.lane.b32.xlu0 %v452, 112
  %v1901 = vpop.permute.xlu0 %1900
  %1902 = vrot.lane.b32.xlu0 %v453, 112
  %v1903 = vpop.permute.xlu0 %1902
  %1904 = vrot.lane.b32.xlu0 %v450, 80
  %v1905 = vpop.permute.xlu0 %1904
  %1906 = vrot.lane.b32.xlu0 %v451, 80
  %v1907 = vpop.permute.xlu0 %1906
  %1908 = vrot.lane.b32.xlu0 %v452, 80
  %v1909 = vpop.permute.xlu0 %1908
  %1910 = vrot.lane.b32.xlu0 %v453, 80
  %v1911 = vpop.permute.xlu0 %1910
  %v1913 = vsel %vm470, %v1897, 0
  %v1916 = vsel %vm470, %v1899, 0
  %v1919 = vsel %vm470, %v1901, 0
  %v1922 = vsel %vm470, %v1903, 0
  %v1925 = vsel %vm470, %v1905, 0
  %v1928 = vsel %vm470, %v1907, 0
  %v1931 = vsel %vm470, %v1909, 0
  %v1934 = vsel %vm470, %v1911, 0
  %1936 = vmatprep.subr.bf16.mxu0 0
  %1937 = vmatpush1.bf16.xpose.msra.mxu0 0
  %1938 = vmatprep.subr.bf16.mxu0 0
  %1939 = vmatpush1.bf16.xpose.msra.mxu0 0
  %1940 = vmatprep.subr.bf16.mxu0 0
  %1941 = vmatpush1.bf16.xpose.msra.mxu0 0
  %1942 = vmatprep.subr.bf16.mxu0 0
  %1943 = vmatpush1.bf16.xpose.msra.mxu0 0
  %1944 = vmatprep.subr.bf16.mxu0 0
  %1945 = vmatpush1.bf16.xpose.msra.mxu0 %v1934
  %1946 = vmatprep.subr.bf16.mxu0 0
  %1947 = vmatpush1.bf16.xpose.msra.mxu0 %v1931
  %1948 = vmatprep.subr.bf16.mxu0 0
  %1949 = vmatpush1.bf16.xpose.msra.mxu0 %v1928
  %1950 = vmatprep.subr.bf16.mxu0 0
  %1951 = vmatpush1.bf16.xpose.msra.mxu0 %v1925
  %1952 = vmatprep.subr.bf16.mxu0 0
  %1953 = vmatpush2.bf16.xpose.msra.mxu0 0
  %1954 = vmatprep.subr.bf16.mxu0 0
  %1955 = vmatpush2.bf16.xpose.msra.mxu0 0
  %1956 = vmatprep.subr.bf16.mxu0 0
  %1957 = vmatpush2.bf16.xpose.msra.mxu0 0
  %1958 = vmatprep.subr.bf16.mxu0 0
  %1959 = vmatpush2.bf16.xpose.msra.mxu0 0
  %1960 = vmatprep.subr.bf16.mxu0 0
  %1961 = vmatpush2.bf16.xpose.msra.mxu0 0
  %1962 = vmatprep.subr.bf16.mxu0 0
  %1963 = vmatpush2.bf16.xpose.msra.mxu0 0
  %1964 = vmatprep.subr.bf16.mxu0 0
  %1965 = vmatpush2.bf16.xpose.msra.mxu0 0
  %1966 = vmatprep.subr.bf16.mxu0 0
  %1967 = vmatpush2.bf16.xpose.msra.mxu0 0
  %1968 = vmatprep.mubr.bf16.mxu0 0
  %1969 = vmatmul.mubr.bf16.gmra.mxu0 %v1913
  %v1970 = vpop.f32.mrf.mxu0
  %v1971 = vadd.f32 0.0, %v1970
  %v1972 = vpop.f32.mrf.mxu0
  %v1973 = vpop.f32.mrf.mxu0
  %v1974 = vadd.f32 0.0, %v1973
  %v1975 = vpop.f32.mrf.mxu0
  %1976 = vmatprep.mubr.bf16.mxu0 0
  %1977 = vmatmul.mubr.bf16.gmra.mxu0 %v1916
  %v1978 = vpop.f32.mrf.mxu0
  %v1979 = vadd.f32 0.0, %v1978
  %v1980 = vpop.f32.mrf.mxu0
  %v1981 = vpop.f32.mrf.mxu0
  %v1982 = vadd.f32 0.0, %v1981
  %v1983 = vpop.f32.mrf.mxu0
  %1984 = vmatprep.mubr.bf16.mxu0 0
  %1985 = vmatmul.mubr.bf16.gmra.mxu0 %v1919
  %v1986 = vpop.f32.mrf.mxu0
  %v1987 = vadd.f32 0.0, %v1986
  %v1988 = vpop.f32.mrf.mxu0
  %v1989 = vpop.f32.mrf.mxu0
  %v1990 = vadd.f32 0.0, %v1989
  %v1991 = vpop.f32.mrf.mxu0
  %1992 = vmatprep.mubr.bf16.mxu0 0
  %1993 = vmatmul.mubr.bf16.gmra.mxu0 %v1922
  %v1994 = vpop.f32.mrf.mxu0
  %v1995 = vadd.f32 0.0, %v1994
  %v1996 = vpop.f32.mrf.mxu0
  %v1997 = vpop.f32.mrf.mxu0
  %v1998 = vadd.f32 0.0, %v1997
  %v1999 = vpop.f32.mrf.mxu0
  %2000 = vdwg.mxu0
  %2001 = vrot.lane.b32.xlu0 %v454, 112
  %v2002 = vpop.permute.xlu0 %2001
  %2003 = vrot.lane.b32.xlu0 %v455, 112
  %v2004 = vpop.permute.xlu0 %2003
  %2005 = vrot.lane.b32.xlu0 %v456, 112
  %v2006 = vpop.permute.xlu0 %2005
  %2007 = vrot.lane.b32.xlu0 %v457, 112
  %v2008 = vpop.permute.xlu0 %2007
  %2009 = vrot.lane.b32.xlu0 %v454, 80
  %v2010 = vpop.permute.xlu0 %2009
  %2011 = vrot.lane.b32.xlu0 %v455, 80
  %v2012 = vpop.permute.xlu0 %2011
  %2013 = vrot.lane.b32.xlu0 %v456, 80
  %v2014 = vpop.permute.xlu0 %2013
  %2015 = vrot.lane.b32.xlu0 %v457, 80
  %v2016 = vpop.permute.xlu0 %2015
  %v2018 = vsel %vm470, %v2002, 0
  %v2021 = vsel %vm470, %v2004, 0
  %v2024 = vsel %vm470, %v2006, 0
  %v2027 = vsel %vm470, %v2008, 0
  %v2030 = vsel %vm470, %v2010, 0
  %v2033 = vsel %vm470, %v2012, 0
  %v2036 = vsel %vm470, %v2014, 0
  %v2039 = vsel %vm470, %v2016, 0
  %2041 = vmatprep.subr.bf16.mxu0 0
  %2042 = vmatpush1.bf16.xpose.msra.mxu0 0
  %2043 = vmatprep.subr.bf16.mxu0 0
  %2044 = vmatpush1.bf16.xpose.msra.mxu0 0
  %2045 = vmatprep.subr.bf16.mxu0 0
  %2046 = vmatpush1.bf16.xpose.msra.mxu0 0
  %2047 = vmatprep.subr.bf16.mxu0 0
  %2048 = vmatpush1.bf16.xpose.msra.mxu0 0
  %2049 = vmatprep.subr.bf16.mxu0 0
  %2050 = vmatpush1.bf16.xpose.msra.mxu0 %v2039
  %2051 = vmatprep.subr.bf16.mxu0 0
  %2052 = vmatpush1.bf16.xpose.msra.mxu0 %v2036
  %2053 = vmatprep.subr.bf16.mxu0 0
  %2054 = vmatpush1.bf16.xpose.msra.mxu0 %v2033
  %2055 = vmatprep.subr.bf16.mxu0 0
  %2056 = vmatpush1.bf16.xpose.msra.mxu0 %v2030
  %2057 = vmatprep.subr.bf16.mxu0 0
  %2058 = vmatpush2.bf16.xpose.msra.mxu0 0
  %2059 = vmatprep.subr.bf16.mxu0 0
  %2060 = vmatpush2.bf16.xpose.msra.mxu0 0
  %2061 = vmatprep.subr.bf16.mxu0 0
  %2062 = vmatpush2.bf16.xpose.msra.mxu0 0
  %2063 = vmatprep.subr.bf16.mxu0 0
  %2064 = vmatpush2.bf16.xpose.msra.mxu0 0
  %2065 = vmatprep.subr.bf16.mxu0 0
  %2066 = vmatpush2.bf16.xpose.msra.mxu0 0
  %2067 = vmatprep.subr.bf16.mxu0 0
  %2068 = vmatpush2.bf16.xpose.msra.mxu0 0
  %2069 = vmatprep.subr.bf16.mxu0 0
  %2070 = vmatpush2.bf16.xpose.msra.mxu0 0
  %2071 = vmatprep.subr.bf16.mxu0 0
  %2072 = vmatpush2.bf16.xpose.msra.mxu0 0
  %2073 = vmatprep.mubr.bf16.mxu0 0
  %2074 = vmatmul.mubr.bf16.gmra.mxu0 %v2018
  %v2075 = vpop.f32.mrf.mxu0
  %v2076 = vadd.f32 0.0, %v2075
  %v2077 = vpop.f32.mrf.mxu0
  %v2078 = vpop.f32.mrf.mxu0
  %v2079 = vadd.f32 0.0, %v2078
  %v2080 = vpop.f32.mrf.mxu0
  %2081 = vmatprep.mubr.bf16.mxu0 0
  %2082 = vmatmul.mubr.bf16.gmra.mxu0 %v2021
  %v2083 = vpop.f32.mrf.mxu0
  %v2084 = vadd.f32 0.0, %v2083
  %v2085 = vpop.f32.mrf.mxu0
  %v2086 = vpop.f32.mrf.mxu0
  %v2087 = vadd.f32 0.0, %v2086
  %v2088 = vpop.f32.mrf.mxu0
  %2089 = vmatprep.mubr.bf16.mxu0 0
  %2090 = vmatmul.mubr.bf16.gmra.mxu0 %v2024
  %v2091 = vpop.f32.mrf.mxu0
  %v2092 = vadd.f32 0.0, %v2091
  %v2093 = vpop.f32.mrf.mxu0
  %v2094 = vpop.f32.mrf.mxu0
  %v2095 = vadd.f32 0.0, %v2094
  %v2096 = vpop.f32.mrf.mxu0
  %2097 = vmatprep.mubr.bf16.mxu0 0
  %2098 = vmatmul.mubr.bf16.gmra.mxu0 %v2027
  %v2099 = vpop.f32.mrf.mxu0
  %v2100 = vadd.f32 0.0, %v2099
  %v2101 = vpop.f32.mrf.mxu0
  %v2102 = vpop.f32.mrf.mxu0
  %v2103 = vadd.f32 0.0, %v2102
  %v2104 = vpop.f32.mrf.mxu0
  %2105 = vdwg.mxu0
  %v2106 = vmul.f32 %v1971, 0.35355338
  %v2107 = vmul.f32 %v1974, 0.35355338
  %v2108 = vmul.f32 %v1979, 0.35355338
  %v2109 = vmul.f32 %v1982, 0.35355338
  %v2110 = vmul.f32 %v1987, 0.35355338
  %v2111 = vmul.f32 %v1990, 0.35355338
  %v2112 = vmul.f32 %v1995, 0.35355338
  %v2113 = vmul.f32 %v1998, 0.35355338
  %v2114 = vmul.f32 %v2076, 0.35355338
  %v2115 = vmul.f32 %v2079, 0.35355338
  %v2116 = vmul.f32 %v2084, 0.35355338
  %v2117 = vmul.f32 %v2087, 0.35355338
  %v2118 = vmul.f32 %v2092, 0.35355338
  %v2119 = vmul.f32 %v2095, 0.35355338
  %v2120 = vmul.f32 %v2100, 0.35355338
  %v2121 = vmul.f32 %v2103, 0.35355338
  %v2122 = vsel %vm677, %v2106, -inf
  %2123 = vmax.xlane.f32.xlu0 %v2122
  %v2124 = vpop.xlane.xlu0 %2123
  %v2125 = vsel %vm677, %v2107, -inf
  %2126 = vmax.xlane.f32.xlu0 %v2125
  %v2127 = vpop.xlane.xlu0 %2126
  %v2128 = vsel %vm677, %v2108, -inf
  %2129 = vmax.xlane.f32.xlu0 %v2128
  %v2130 = vpop.xlane.xlu0 %2129
  %v2131 = vsel %vm677, %v2109, -inf
  %2132 = vmax.xlane.f32.xlu0 %v2131
  %v2133 = vpop.xlane.xlu0 %2132
  %v2134 = vsel %vm677, %v2110, -inf
  %2135 = vmax.xlane.f32.xlu0 %v2134
  %v2136 = vpop.xlane.xlu0 %2135
  %v2137 = vsel %vm677, %v2111, -inf
  %2138 = vmax.xlane.f32.xlu0 %v2137
  %v2139 = vpop.xlane.xlu0 %2138
  %v2140 = vsel %vm677, %v2112, -inf
  %2141 = vmax.xlane.f32.xlu0 %v2140
  %v2142 = vpop.xlane.xlu0 %2141
  %v2143 = vsel %vm677, %v2113, -inf
  %2144 = vmax.xlane.f32.xlu0 %v2143
  %v2145 = vpop.xlane.xlu0 %2144
  %v2146 = vsel %vm677, %v2114, -inf
  %2147 = vmax.xlane.f32.xlu0 %v2146
  %v2148 = vpop.xlane.xlu0 %2147
  %v2149 = vsel %vm677, %v2115, -inf
  %2150 = vmax.xlane.f32.xlu0 %v2149
  %v2151 = vpop.xlane.xlu0 %2150
  %v2152 = vsel %vm677, %v2116, -inf
  %2153 = vmax.xlane.f32.xlu0 %v2152
  %v2154 = vpop.xlane.xlu0 %2153
  %v2155 = vsel %vm677, %v2117, -inf
  %2156 = vmax.xlane.f32.xlu0 %v2155
  %v2157 = vpop.xlane.xlu0 %2156
  %v2158 = vsel %vm677, %v2118, -inf
  %2159 = vmax.xlane.f32.xlu0 %v2158
  %v2160 = vpop.xlane.xlu0 %2159
  %v2161 = vsel %vm677, %v2119, -inf
  %2162 = vmax.xlane.f32.xlu0 %v2161
  %v2163 = vpop.xlane.xlu0 %2162
  %v2164 = vsel %vm677, %v2120, -inf
  %2165 = vmax.xlane.f32.xlu0 %v2164
  %v2166 = vpop.xlane.xlu0 %2165
  %v2167 = vsel %vm677, %v2121, -inf
  %2168 = vmax.xlane.f32.xlu0 %v2167
  %v2169 = vpop.xlane.xlu0 %2168
  %v2170 = vsub.f32 %v2106, %v2124
  %v2171 = vsub.f32 %v2107, %v2127
  %v2172 = vsub.f32 %v2108, %v2130
  %v2173 = vsub.f32 %v2109, %v2133
  %v2174 = vsub.f32 %v2110, %v2136
  %v2175 = vsub.f32 %v2111, %v2139
  %v2176 = vsub.f32 %v2112, %v2142
  %v2177 = vsub.f32 %v2113, %v2145
  %v2178 = vsub.f32 %v2114, %v2148
  %v2179 = vsub.f32 %v2115, %v2151
  %v2180 = vsub.f32 %v2116, %v2154
  %v2181 = vsub.f32 %v2117, %v2157
  %v2182 = vsub.f32 %v2118, %v2160
  %v2183 = vsub.f32 %v2119, %v2163
  %v2184 = vsub.f32 %v2120, %v2166
  %v2185 = vsub.f32 %v2121, %v2169
  %v2186 = vmul.f32 %v2170, 1.442695
  %v2187 = vpow.pop %v2186
  %v2188 = vmul.f32 %v2171, 1.442695
  %v2189 = vpow.pop %v2188
  %v2190 = vmul.f32 %v2172, 1.442695
  %v2191 = vpow.pop %v2190
  %v2192 = vmul.f32 %v2173, 1.442695
  %v2193 = vpow.pop %v2192
  %v2194 = vmul.f32 %v2174, 1.442695
  %v2195 = vpow.pop %v2194
  %v2196 = vmul.f32 %v2175, 1.442695
  %v2197 = vpow.pop %v2196
  %v2198 = vmul.f32 %v2176, 1.442695
  %v2199 = vpow.pop %v2198
  %v2200 = vmul.f32 %v2177, 1.442695
  %v2201 = vpow.pop %v2200
  %v2202 = vmul.f32 %v2178, 1.442695
  %v2203 = vpow.pop %v2202
  %v2204 = vmul.f32 %v2179, 1.442695
  %v2205 = vpow.pop %v2204
  %v2206 = vmul.f32 %v2180, 1.442695
  %v2207 = vpow.pop %v2206
  %v2208 = vmul.f32 %v2181, 1.442695
  %v2209 = vpow.pop %v2208
  %v2210 = vmul.f32 %v2182, 1.442695
  %v2211 = vpow.pop %v2210
  %v2212 = vmul.f32 %v2183, 1.442695
  %v2213 = vpow.pop %v2212
  %v2214 = vmul.f32 %v2184, 1.442695
  %v2215 = vpow.pop %v2214
  %v2216 = vmul.f32 %v2185, 1.442695
  %v2217 = vpow.pop %v2216
  %v2218 = vsel %vm677, %v2187, 0.0
  %2219 = vadd.xlane.f32.xlu0 %v2218
  %v2220 = vpop.xlane.xlu0 %2219
  %v2221 = vsel %vm677, %v2189, 0.0
  %2222 = vadd.xlane.f32.xlu0 %v2221
  %v2223 = vpop.xlane.xlu0 %2222
  %v2224 = vsel %vm677, %v2191, 0.0
  %2225 = vadd.xlane.f32.xlu0 %v2224
  %v2226 = vpop.xlane.xlu0 %2225
  %v2227 = vsel %vm677, %v2193, 0.0
  %2228 = vadd.xlane.f32.xlu0 %v2227
  %v2229 = vpop.xlane.xlu0 %2228
  %v2230 = vsel %vm677, %v2195, 0.0
  %2231 = vadd.xlane.f32.xlu0 %v2230
  %v2232 = vpop.xlane.xlu0 %2231
  %v2233 = vsel %vm677, %v2197, 0.0
  %2234 = vadd.xlane.f32.xlu0 %v2233
  %v2235 = vpop.xlane.xlu0 %2234
  %v2236 = vsel %vm677, %v2199, 0.0
  %2237 = vadd.xlane.f32.xlu0 %v2236
  %v2238 = vpop.xlane.xlu0 %2237
  %v2239 = vsel %vm677, %v2201, 0.0
  %2240 = vadd.xlane.f32.xlu0 %v2239
  %v2241 = vpop.xlane.xlu0 %2240
  %v2242 = vsel %vm677, %v2203, 0.0
  %2243 = vadd.xlane.f32.xlu0 %v2242
  %v2244 = vpop.xlane.xlu0 %2243
  %v2245 = vsel %vm677, %v2205, 0.0
  %2246 = vadd.xlane.f32.xlu0 %v2245
  %v2247 = vpop.xlane.xlu0 %2246
  %v2248 = vsel %vm677, %v2207, 0.0
  %2249 = vadd.xlane.f32.xlu0 %v2248
  %v2250 = vpop.xlane.xlu0 %2249
  %v2251 = vsel %vm677, %v2209, 0.0
  %2252 = vadd.xlane.f32.xlu0 %v2251
  %v2253 = vpop.xlane.xlu0 %2252
  %v2254 = vsel %vm677, %v2211, 0.0
  %2255 = vadd.xlane.f32.xlu0 %v2254
  %v2256 = vpop.xlane.xlu0 %2255
  %v2257 = vsel %vm677, %v2213, 0.0
  %2258 = vadd.xlane.f32.xlu0 %v2257
  %v2259 = vpop.xlane.xlu0 %2258
  %v2260 = vsel %vm677, %v2215, 0.0
  %2261 = vadd.xlane.f32.xlu0 %v2260
  %v2262 = vpop.xlane.xlu0 %2261
  %v2263 = vsel %vm677, %v2217, 0.0
  %2264 = vadd.xlane.f32.xlu0 %v2263
  %v2265 = vpop.xlane.xlu0 %2264
  %v2266 = vpack.c.bf16 %v2189, %v2187
  %v2267 = vpack.c.bf16 %v2193, %v2191
  %v2268 = vpack.c.bf16 %v2197, %v2195
  %v2269 = vpack.c.bf16 %v2201, %v2199
  %v2270 = vpack.c.bf16 %v2205, %v2203
  %v2271 = vpack.c.bf16 %v2209, %v2207
  %v2272 = vpack.c.bf16 %v2213, %v2211
  %v2273 = vpack.c.bf16 %v2217, %v2215
  %2274 = vrot.lane.b32.xlu0 %v450, 48
  %v2275 = vpop.permute.xlu0 %2274
  %2276 = vrot.lane.b32.xlu0 %v451, 48
  %v2277 = vpop.permute.xlu0 %2276
  %2278 = vrot.lane.b32.xlu0 %v452, 48
  %v2279 = vpop.permute.xlu0 %2278
  %2280 = vrot.lane.b32.xlu0 %v453, 48
  %v2281 = vpop.permute.xlu0 %2280
  %v2287 = vsel %vm677, %v2266, 0
  %v2290 = vsel %vm677, %v2267, 0
  %v2293 = vsel %vm677, %v2268, 0
  %v2296 = vsel %vm677, %v2269, 0
  %2298 = vmatprep.subr.bf16.mxu0 0
  %2299 = vmatpush1.bf16.msra.mxu0 0
  %2300 = vmatprep.subr.bf16.mxu0 0
  %2301 = vmatpush1.bf16.msra.mxu0 0
  %2302 = vmatprep.subr.bf16.mxu0 0
  %2303 = vmatpush1.bf16.msra.mxu0 0
  %2304 = vmatprep.subr.bf16.mxu0 0
  %2305 = vmatpush1.bf16.msra.mxu0 0
  %2306 = vmatprep.subr.bf16.mxu0 0
  %2307 = vmatpush1.bf16.msra.mxu0 %v2281
  %2308 = vmatprep.subr.bf16.mxu0 0
  %2309 = vmatpush1.bf16.msra.mxu0 %v2279
  %2310 = vmatprep.subr.bf16.mxu0 0
  %2311 = vmatpush1.bf16.msra.mxu0 %v2277
  %2312 = vmatprep.subr.bf16.mxu0 0
  %2313 = vmatpush1.bf16.msra.mxu0 %v2275
  %2314 = vmatprep.subr.bf16.mxu0 0
  %2315 = vmatpush2.bf16.msra.mxu0 0
  %2316 = vmatprep.subr.bf16.mxu0 0
  %2317 = vmatpush2.bf16.msra.mxu0 0
  %2318 = vmatprep.subr.bf16.mxu0 0
  %2319 = vmatpush2.bf16.msra.mxu0 0
  %2320 = vmatprep.subr.bf16.mxu0 0
  %2321 = vmatpush2.bf16.msra.mxu0 0
  %2322 = vmatprep.subr.bf16.mxu0 0
  %2323 = vmatpush2.bf16.msra.mxu0 0
  %2324 = vmatprep.subr.bf16.mxu0 0
  %2325 = vmatpush2.bf16.msra.mxu0 0
  %2326 = vmatprep.subr.bf16.mxu0 0
  %2327 = vmatpush2.bf16.msra.mxu0 0
  %2328 = vmatprep.subr.bf16.mxu0 0
  %2329 = vmatpush2.bf16.msra.mxu0 0
  %2330 = vmatprep.mubr.bf16.mxu0 0
  %2331 = vmatmul.mubr.bf16.gmra.mxu0 %v2287
  %v2332 = vpop.f32.mrf.mxu0
  %v2333 = vadd.f32 0.0, %v2332
  %v2334 = vpop.f32.mrf.mxu0
  %v2335 = vpop.f32.mrf.mxu0
  %v2336 = vadd.f32 0.0, %v2335
  %v2337 = vpop.f32.mrf.mxu0
  %2338 = vmatprep.mubr.bf16.mxu0 0
  %2339 = vmatmul.mubr.bf16.gmra.mxu0 %v2290
  %v2340 = vpop.f32.mrf.mxu0
  %v2341 = vadd.f32 0.0, %v2340
  %v2342 = vpop.f32.mrf.mxu0
  %v2343 = vpop.f32.mrf.mxu0
  %v2344 = vadd.f32 0.0, %v2343
  %v2345 = vpop.f32.mrf.mxu0
  %2346 = vmatprep.mubr.bf16.mxu0 0
  %2347 = vmatmul.mubr.bf16.gmra.mxu0 %v2293
  %v2348 = vpop.f32.mrf.mxu0
  %v2349 = vadd.f32 0.0, %v2348
  %v2350 = vpop.f32.mrf.mxu0
  %v2351 = vpop.f32.mrf.mxu0
  %v2352 = vadd.f32 0.0, %v2351
  %v2353 = vpop.f32.mrf.mxu0
  %2354 = vmatprep.mubr.bf16.mxu0 0
  %2355 = vmatmul.mubr.bf16.gmra.mxu0 %v2296
  %v2356 = vpop.f32.mrf.mxu0
  %v2357 = vadd.f32 0.0, %v2356
  %v2358 = vpop.f32.mrf.mxu0
  %v2359 = vpop.f32.mrf.mxu0
  %v2360 = vadd.f32 0.0, %v2359
  %v2361 = vpop.f32.mrf.mxu0
  %2362 = vdwg.mxu0
  %2363 = vrot.lane.b32.xlu0 %v454, 48
  %v2364 = vpop.permute.xlu0 %2363
  %2365 = vrot.lane.b32.xlu0 %v455, 48
  %v2366 = vpop.permute.xlu0 %2365
  %2367 = vrot.lane.b32.xlu0 %v456, 48
  %v2368 = vpop.permute.xlu0 %2367
  %2369 = vrot.lane.b32.xlu0 %v457, 48
  %v2370 = vpop.permute.xlu0 %2369
  %v2376 = vsel %vm677, %v2270, 0
  %v2379 = vsel %vm677, %v2271, 0
  %v2382 = vsel %vm677, %v2272, 0
  %v2385 = vsel %vm677, %v2273, 0
  %2387 = vmatprep.subr.bf16.mxu0 0
  %2388 = vmatpush1.bf16.msra.mxu0 0
  %2389 = vmatprep.subr.bf16.mxu0 0
  %2390 = vmatpush1.bf16.msra.mxu0 0
  %2391 = vmatprep.subr.bf16.mxu0 0
  %2392 = vmatpush1.bf16.msra.mxu0 0
  %2393 = vmatprep.subr.bf16.mxu0 0
  %2394 = vmatpush1.bf16.msra.mxu0 0
  %2395 = vmatprep.subr.bf16.mxu0 0
  %2396 = vmatpush1.bf16.msra.mxu0 %v2370
  %2397 = vmatprep.subr.bf16.mxu0 0
  %2398 = vmatpush1.bf16.msra.mxu0 %v2368
  %2399 = vmatprep.subr.bf16.mxu0 0
  %2400 = vmatpush1.bf16.msra.mxu0 %v2366
  %2401 = vmatprep.subr.bf16.mxu0 0
  %2402 = vmatpush1.bf16.msra.mxu0 %v2364
  %2403 = vmatprep.subr.bf16.mxu0 0
  %2404 = vmatpush2.bf16.msra.mxu0 0
  %2405 = vmatprep.subr.bf16.mxu0 0
  %2406 = vmatpush2.bf16.msra.mxu0 0
  %2407 = vmatprep.subr.bf16.mxu0 0
  %2408 = vmatpush2.bf16.msra.mxu0 0
  %2409 = vmatprep.subr.bf16.mxu0 0
  %2410 = vmatpush2.bf16.msra.mxu0 0
  %2411 = vmatprep.subr.bf16.mxu0 0
  %2412 = vmatpush2.bf16.msra.mxu0 0
  %2413 = vmatprep.subr.bf16.mxu0 0
  %2414 = vmatpush2.bf16.msra.mxu0 0
  %2415 = vmatprep.subr.bf16.mxu0 0
  %2416 = vmatpush2.bf16.msra.mxu0 0
  %2417 = vmatprep.subr.bf16.mxu0 0
  %2418 = vmatpush2.bf16.msra.mxu0 0
  %2419 = vmatprep.mubr.bf16.mxu0 0
  %2420 = vmatmul.mubr.bf16.gmra.mxu0 %v2376
  %v2421 = vpop.f32.mrf.mxu0
  %v2422 = vadd.f32 0.0, %v2421
  %v2423 = vpop.f32.mrf.mxu0
  %v2424 = vpop.f32.mrf.mxu0
  %v2425 = vadd.f32 0.0, %v2424
  %v2426 = vpop.f32.mrf.mxu0
  %2427 = vmatprep.mubr.bf16.mxu0 0
  %2428 = vmatmul.mubr.bf16.gmra.mxu0 %v2379
  %v2429 = vpop.f32.mrf.mxu0
  %v2430 = vadd.f32 0.0, %v2429
  %v2431 = vpop.f32.mrf.mxu0
  %v2432 = vpop.f32.mrf.mxu0
  %v2433 = vadd.f32 0.0, %v2432
  %v2434 = vpop.f32.mrf.mxu0
  %2435 = vmatprep.mubr.bf16.mxu0 0
  %2436 = vmatmul.mubr.bf16.gmra.mxu0 %v2382
  %v2437 = vpop.f32.mrf.mxu0
  %v2438 = vadd.f32 0.0, %v2437
  %v2439 = vpop.f32.mrf.mxu0
  %v2440 = vpop.f32.mrf.mxu0
  %v2441 = vadd.f32 0.0, %v2440
  %v2442 = vpop.f32.mrf.mxu0
  %2443 = vmatprep.mubr.bf16.mxu0 0
  %2444 = vmatmul.mubr.bf16.gmra.mxu0 %v2385
  %v2445 = vpop.f32.mrf.mxu0
  %v2446 = vadd.f32 0.0, %v2445
  %v2447 = vpop.f32.mrf.mxu0
  %v2448 = vpop.f32.mrf.mxu0
  %v2449 = vadd.f32 0.0, %v2448
  %v2450 = vpop.f32.mrf.mxu0
  %2451 = vdwg.mxu0
  %v2452 = vrcp.pop %v2220
  %v2453 = vrcp.pop %v2223
  %v2454 = vrcp.pop %v2226
  %v2455 = vrcp.pop %v2229
  %v2456 = vrcp.pop %v2232
  %v2457 = vrcp.pop %v2235
  %v2458 = vrcp.pop %v2238
  %v2459 = vrcp.pop %v2241
  %v2460 = vrcp.pop %v2244
  %v2461 = vrcp.pop %v2247
  %v2462 = vrcp.pop %v2250
  %v2463 = vrcp.pop %v2253
  %v2464 = vrcp.pop %v2256
  %v2465 = vrcp.pop %v2259
  %v2466 = vrcp.pop %v2262
  %v2467 = vrcp.pop %v2265
  %v2468 = vmul.f32 %v2333, %v2452
  %v2469 = vmul.f32 %v2336, %v2453
  %v2470 = vmul.f32 %v2341, %v2454
  %v2471 = vmul.f32 %v2344, %v2455
  %v2472 = vmul.f32 %v2349, %v2456
  %v2473 = vmul.f32 %v2352, %v2457
  %v2474 = vmul.f32 %v2357, %v2458
  %v2475 = vmul.f32 %v2360, %v2459
  %v2476 = vmul.f32 %v2422, %v2460
  %v2477 = vmul.f32 %v2425, %v2461
  %v2478 = vmul.f32 %v2430, %v2462
  %v2479 = vmul.f32 %v2433, %v2463
  %v2480 = vmul.f32 %v2438, %v2464
  %v2481 = vmul.f32 %v2441, %v2465
  %v2482 = vmul.f32 %v2446, %v2466
  %v2483 = vmul.f32 %v2449, %v2467
  %v2484 = vpack.c.bf16 %v2469, %v2468
  %v2485 = vpack.c.bf16 %v2471, %v2470
  %v2486 = vpack.c.bf16 %v2473, %v2472
  %v2487 = vpack.c.bf16 %v2475, %v2474
  %v2488 = vpack.c.bf16 %v2477, %v2476
  %v2489 = vpack.c.bf16 %v2479, %v2478
  %v2490 = vpack.c.bf16 %v2481, %v2480
  %v2491 = vpack.c.bf16 %v2483, %v2482
  %s2492 = scalar_lea.vmem %s3, 8
  %v2493 = vld [vmem:[%s2492] sm:$0xf]
  %v2495 = vsel %vm470, %v2484, 0
  %v2498 = vsel %vm470, %v2485, 0
  %v2501 = vsel %vm470, %v2486, 0
  %v2504 = vsel %vm470, %v2487, 0
  %v2507 = vsel %vm470, %v2488, 0
  %v2510 = vsel %vm470, %v2489, 0
  %v2513 = vsel %vm470, %v2490, 0
  %v2516 = vsel %vm470, %v2491, 0
  %v2519 = vsel %vm1671, %v2493, 0
  %2521 = vmatprep.subr.bf16.mxu0 0
  %2522 = vmatpush1.bf16.msra.mxu0 0
  %2523 = vmatprep.subr.bf16.mxu0 0
  %2524 = vmatpush1.bf16.msra.mxu0 0
  %2525 = vmatprep.subr.bf16.mxu0 0
  %2526 = vmatpush1.bf16.msra.mxu0 0
  %2527 = vmatprep.subr.bf16.mxu0 0
  %2528 = vmatpush1.bf16.msra.mxu0 0
  %2529 = vmatprep.subr.bf16.mxu0 0
  %2530 = vmatpush1.bf16.msra.mxu0 0
  %2531 = vmatprep.subr.bf16.mxu0 0
  %2532 = vmatpush1.bf16.msra.mxu0 0
  %2533 = vmatprep.subr.bf16.mxu0 0
  %2534 = vmatpush1.bf16.msra.mxu0 0
  %2535 = vmatprep.subr.bf16.mxu0 0
  %2536 = vmatpush1.bf16.msra.mxu0 %v2519
  %2537 = vmatprep.subr.bf16.mxu0 0
  %2538 = vmatpush2.bf16.msra.mxu0 0
  %2539 = vmatprep.subr.bf16.mxu0 0
  %2540 = vmatpush2.bf16.msra.mxu0 0
  %2541 = vmatprep.subr.bf16.mxu0 0
  %2542 = vmatpush2.bf16.msra.mxu0 0
  %2543 = vmatprep.subr.bf16.mxu0 0
  %2544 = vmatpush2.bf16.msra.mxu0 0
  %2545 = vmatprep.subr.bf16.mxu0 0
  %2546 = vmatpush2.bf16.msra.mxu0 0
  %2547 = vmatprep.subr.bf16.mxu0 0
  %2548 = vmatpush2.bf16.msra.mxu0 0
  %2549 = vmatprep.subr.bf16.mxu0 0
  %2550 = vmatpush2.bf16.msra.mxu0 0
  %2551 = vmatprep.subr.bf16.mxu0 0
  %2552 = vmatpush2.bf16.msra.mxu0 0
  %2553 = vmatprep.mubr.bf16.mxu0 0
  %2554 = vmatmul.mubr.bf16.gmra.mxu0 %v2495
  %v2555 = vpop.f32.mrf.mxu0
  %v2556 = vadd.f32 0.0, %v2555
  %v2557 = vpop.f32.mrf.mxu0
  %v2558 = vpop.f32.mrf.mxu0
  %v2559 = vadd.f32 0.0, %v2558
  %v2560 = vpop.f32.mrf.mxu0
  %2561 = vmatprep.mubr.bf16.mxu0 0
  %2562 = vmatmul.mubr.bf16.gmra.mxu0 %v2498
  %v2563 = vpop.f32.mrf.mxu0
  %v2564 = vadd.f32 0.0, %v2563
  %v2565 = vpop.f32.mrf.mxu0
  %v2566 = vpop.f32.mrf.mxu0
  %v2567 = vadd.f32 0.0, %v2566
  %v2568 = vpop.f32.mrf.mxu0
  %2569 = vmatprep.mubr.bf16.mxu0 0
  %2570 = vmatmul.mubr.bf16.gmra.mxu0 %v2501
  %v2571 = vpop.f32.mrf.mxu0
  %v2572 = vadd.f32 0.0, %v2571
  %v2573 = vpop.f32.mrf.mxu0
  %v2574 = vpop.f32.mrf.mxu0
  %v2575 = vadd.f32 0.0, %v2574
  %v2576 = vpop.f32.mrf.mxu0
  %2577 = vmatprep.mubr.bf16.mxu0 0
  %2578 = vmatmul.mubr.bf16.gmra.mxu0 %v2504
  %v2579 = vpop.f32.mrf.mxu0
  %v2580 = vadd.f32 0.0, %v2579
  %v2581 = vpop.f32.mrf.mxu0
  %v2582 = vpop.f32.mrf.mxu0
  %v2583 = vadd.f32 0.0, %v2582
  %v2584 = vpop.f32.mrf.mxu0
  %2585 = vmatprep.mubr.bf16.mxu0 0
  %2586 = vmatmul.mubr.bf16.gmra.mxu0 %v2507
  %v2587 = vpop.f32.mrf.mxu0
  %v2588 = vadd.f32 0.0, %v2587
  %v2589 = vpop.f32.mrf.mxu0
  %v2590 = vpop.f32.mrf.mxu0
  %v2591 = vadd.f32 0.0, %v2590
  %v2592 = vpop.f32.mrf.mxu0
  %2593 = vmatprep.mubr.bf16.mxu0 0
  %2594 = vmatmul.mubr.bf16.gmra.mxu0 %v2510
  %v2595 = vpop.f32.mrf.mxu0
  %v2596 = vadd.f32 0.0, %v2595
  %v2597 = vpop.f32.mrf.mxu0
  %v2598 = vpop.f32.mrf.mxu0
  %v2599 = vadd.f32 0.0, %v2598
  %v2600 = vpop.f32.mrf.mxu0
  %2601 = vmatprep.mubr.bf16.mxu0 0
  %2602 = vmatmul.mubr.bf16.gmra.mxu0 %v2513
  %v2603 = vpop.f32.mrf.mxu0
  %v2604 = vadd.f32 0.0, %v2603
  %v2605 = vpop.f32.mrf.mxu0
  %v2606 = vpop.f32.mrf.mxu0
  %v2607 = vadd.f32 0.0, %v2606
  %v2608 = vpop.f32.mrf.mxu0
  %2609 = vmatprep.mubr.bf16.mxu0 0
  %2610 = vmatmul.mubr.bf16.gmra.mxu0 %v2516
  %v2611 = vpop.f32.mrf.mxu0
  %v2612 = vadd.f32 0.0, %v2611
  %v2613 = vpop.f32.mrf.mxu0
  %v2614 = vpop.f32.mrf.mxu0
  %v2615 = vadd.f32 0.0, %v2614
  %v2616 = vpop.f32.mrf.mxu0
  %2617 = vdwg.mxu0
  %v2618 = vadd.f32 %v1834, %v2556
  %v2619 = vadd.f32 %v1837, %v2559
  %v2620 = vadd.f32 %v1842, %v2564
  %v2621 = vadd.f32 %v1845, %v2567
  %v2622 = vadd.f32 %v1850, %v2572
  %v2623 = vadd.f32 %v1853, %v2575
  %v2624 = vadd.f32 %v1858, %v2580
  %v2625 = vadd.f32 %v1861, %v2583
  %v2626 = vadd.f32 %v1866, %v2588
  %v2627 = vadd.f32 %v1869, %v2591
  %v2628 = vadd.f32 %v1874, %v2596
  %v2629 = vadd.f32 %v1877, %v2599
  %v2630 = vadd.f32 %v1882, %v2604
  %v2631 = vadd.f32 %v1885, %v2607
  %v2632 = vadd.f32 %v1890, %v2612
  %v2633 = vadd.f32 %v1893, %v2615
  %2634 = vrot.lane.b32.xlu0 %v450, 104
  %v2635 = vpop.permute.xlu0 %2634
  %2636 = vrot.lane.b32.xlu0 %v451, 104
  %v2637 = vpop.permute.xlu0 %2636
  %2638 = vrot.lane.b32.xlu0 %v452, 104
  %v2639 = vpop.permute.xlu0 %2638
  %2640 = vrot.lane.b32.xlu0 %v453, 104
  %v2641 = vpop.permute.xlu0 %2640
  %2642 = vrot.lane.b32.xlu0 %v450, 72
  %v2643 = vpop.permute.xlu0 %2642
  %2644 = vrot.lane.b32.xlu0 %v451, 72
  %v2645 = vpop.permute.xlu0 %2644
  %2646 = vrot.lane.b32.xlu0 %v452, 72
  %v2647 = vpop.permute.xlu0 %2646
  %2648 = vrot.lane.b32.xlu0 %v453, 72
  %v2649 = vpop.permute.xlu0 %2648
  %v2651 = vsel %vm470, %v2635, 0
  %v2654 = vsel %vm470, %v2637, 0
  %v2657 = vsel %vm470, %v2639, 0
  %v2660 = vsel %vm470, %v2641, 0
  %v2663 = vsel %vm470, %v2643, 0
  %v2666 = vsel %vm470, %v2645, 0
  %v2669 = vsel %vm470, %v2647, 0
  %v2672 = vsel %vm470, %v2649, 0
  %2674 = vmatprep.subr.bf16.mxu0 0
  %2675 = vmatpush1.bf16.xpose.msra.mxu0 0
  %2676 = vmatprep.subr.bf16.mxu0 0
  %2677 = vmatpush1.bf16.xpose.msra.mxu0 0
  %2678 = vmatprep.subr.bf16.mxu0 0
  %2679 = vmatpush1.bf16.xpose.msra.mxu0 0
  %2680 = vmatprep.subr.bf16.mxu0 0
  %2681 = vmatpush1.bf16.xpose.msra.mxu0 0
  %2682 = vmatprep.subr.bf16.mxu0 0
  %2683 = vmatpush1.bf16.xpose.msra.mxu0 %v2672
  %2684 = vmatprep.subr.bf16.mxu0 0
  %2685 = vmatpush1.bf16.xpose.msra.mxu0 %v2669
  %2686 = vmatprep.subr.bf16.mxu0 0
  %2687 = vmatpush1.bf16.xpose.msra.mxu0 %v2666
  %2688 = vmatprep.subr.bf16.mxu0 0
  %2689 = vmatpush1.bf16.xpose.msra.mxu0 %v2663
  %2690 = vmatprep.subr.bf16.mxu0 0
  %2691 = vmatpush2.bf16.xpose.msra.mxu0 0
  %2692 = vmatprep.subr.bf16.mxu0 0
  %2693 = vmatpush2.bf16.xpose.msra.mxu0 0
  %2694 = vmatprep.subr.bf16.mxu0 0
  %2695 = vmatpush2.bf16.xpose.msra.mxu0 0
  %2696 = vmatprep.subr.bf16.mxu0 0
  %2697 = vmatpush2.bf16.xpose.msra.mxu0 0
  %2698 = vmatprep.subr.bf16.mxu0 0
  %2699 = vmatpush2.bf16.xpose.msra.mxu0 0
  %2700 = vmatprep.subr.bf16.mxu0 0
  %2701 = vmatpush2.bf16.xpose.msra.mxu0 0
  %2702 = vmatprep.subr.bf16.mxu0 0
  %2703 = vmatpush2.bf16.xpose.msra.mxu0 0
  %2704 = vmatprep.subr.bf16.mxu0 0
  %2705 = vmatpush2.bf16.xpose.msra.mxu0 0
  %2706 = vmatprep.mubr.bf16.mxu0 0
  %2707 = vmatmul.mubr.bf16.gmra.mxu0 %v2651
  %v2708 = vpop.f32.mrf.mxu0
  %v2709 = vadd.f32 0.0, %v2708
  %v2710 = vpop.f32.mrf.mxu0
  %v2711 = vpop.f32.mrf.mxu0
  %v2712 = vadd.f32 0.0, %v2711
  %v2713 = vpop.f32.mrf.mxu0
  %2714 = vmatprep.mubr.bf16.mxu0 0
  %2715 = vmatmul.mubr.bf16.gmra.mxu0 %v2654
  %v2716 = vpop.f32.mrf.mxu0
  %v2717 = vadd.f32 0.0, %v2716
  %v2718 = vpop.f32.mrf.mxu0
  %v2719 = vpop.f32.mrf.mxu0
  %v2720 = vadd.f32 0.0, %v2719
  %v2721 = vpop.f32.mrf.mxu0
  %2722 = vmatprep.mubr.bf16.mxu0 0
  %2723 = vmatmul.mubr.bf16.gmra.mxu0 %v2657
  %v2724 = vpop.f32.mrf.mxu0
  %v2725 = vadd.f32 0.0, %v2724
  %v2726 = vpop.f32.mrf.mxu0
  %v2727 = vpop.f32.mrf.mxu0
  %v2728 = vadd.f32 0.0, %v2727
  %v2729 = vpop.f32.mrf.mxu0
  %2730 = vmatprep.mubr.bf16.mxu0 0
  %2731 = vmatmul.mubr.bf16.gmra.mxu0 %v2660
  %v2732 = vpop.f32.mrf.mxu0
  %v2733 = vadd.f32 0.0, %v2732
  %v2734 = vpop.f32.mrf.mxu0
  %v2735 = vpop.f32.mrf.mxu0
  %v2736 = vadd.f32 0.0, %v2735
  %v2737 = vpop.f32.mrf.mxu0
  %2738 = vdwg.mxu0
  %2739 = vrot.lane.b32.xlu0 %v454, 104
  %v2740 = vpop.permute.xlu0 %2739
  %2741 = vrot.lane.b32.xlu0 %v455, 104
  %v2742 = vpop.permute.xlu0 %2741
  %2743 = vrot.lane.b32.xlu0 %v456, 104
  %v2744 = vpop.permute.xlu0 %2743
  %2745 = vrot.lane.b32.xlu0 %v457, 104
  %v2746 = vpop.permute.xlu0 %2745
  %2747 = vrot.lane.b32.xlu0 %v454, 72
  %v2748 = vpop.permute.xlu0 %2747
  %2749 = vrot.lane.b32.xlu0 %v455, 72
  %v2750 = vpop.permute.xlu0 %2749
  %2751 = vrot.lane.b32.xlu0 %v456, 72
  %v2752 = vpop.permute.xlu0 %2751
  %2753 = vrot.lane.b32.xlu0 %v457, 72
  %v2754 = vpop.permute.xlu0 %2753
  %v2756 = vsel %vm470, %v2740, 0
  %v2759 = vsel %vm470, %v2742, 0
  %v2762 = vsel %vm470, %v2744, 0
  %v2765 = vsel %vm470, %v2746, 0
  %v2768 = vsel %vm470, %v2748, 0
  %v2771 = vsel %vm470, %v2750, 0
  %v2774 = vsel %vm470, %v2752, 0
  %v2777 = vsel %vm470, %v2754, 0
  %2779 = vmatprep.subr.bf16.mxu0 0
  %2780 = vmatpush1.bf16.xpose.msra.mxu0 0
  %2781 = vmatprep.subr.bf16.mxu0 0
  %2782 = vmatpush1.bf16.xpose.msra.mxu0 0
  %2783 = vmatprep.subr.bf16.mxu0 0
  %2784 = vmatpush1.bf16.xpose.msra.mxu0 0
  %2785 = vmatprep.subr.bf16.mxu0 0
  %2786 = vmatpush1.bf16.xpose.msra.mxu0 0
  %2787 = vmatprep.subr.bf16.mxu0 0
  %2788 = vmatpush1.bf16.xpose.msra.mxu0 %v2777
  %2789 = vmatprep.subr.bf16.mxu0 0
  %2790 = vmatpush1.bf16.xpose.msra.mxu0 %v2774
  %2791 = vmatprep.subr.bf16.mxu0 0
  %2792 = vmatpush1.bf16.xpose.msra.mxu0 %v2771
  %2793 = vmatprep.subr.bf16.mxu0 0
  %2794 = vmatpush1.bf16.xpose.msra.mxu0 %v2768
  %2795 = vmatprep.subr.bf16.mxu0 0
  %2796 = vmatpush2.bf16.xpose.msra.mxu0 0
  %2797 = vmatprep.subr.bf16.mxu0 0
  %2798 = vmatpush2.bf16.xpose.msra.mxu0 0
  %2799 = vmatprep.subr.bf16.mxu0 0
  %2800 = vmatpush2.bf16.xpose.msra.mxu0 0
  %2801 = vmatprep.subr.bf16.mxu0 0
  %2802 = vmatpush2.bf16.xpose.msra.mxu0 0
  %2803 = vmatprep.subr.bf16.mxu0 0
  %2804 = vmatpush2.bf16.xpose.msra.mxu0 0
  %2805 = vmatprep.subr.bf16.mxu0 0
  %2806 = vmatpush2.bf16.xpose.msra.mxu0 0
  %2807 = vmatprep.subr.bf16.mxu0 0
  %2808 = vmatpush2.bf16.xpose.msra.mxu0 0
  %2809 = vmatprep.subr.bf16.mxu0 0
  %2810 = vmatpush2.bf16.xpose.msra.mxu0 0
  %2811 = vmatprep.mubr.bf16.mxu0 0
  %2812 = vmatmul.mubr.bf16.gmra.mxu0 %v2756
  %v2813 = vpop.f32.mrf.mxu0
  %v2814 = vadd.f32 0.0, %v2813
  %v2815 = vpop.f32.mrf.mxu0
  %v2816 = vpop.f32.mrf.mxu0
  %v2817 = vadd.f32 0.0, %v2816
  %v2818 = vpop.f32.mrf.mxu0
  %2819 = vmatprep.mubr.bf16.mxu0 0
  %2820 = vmatmul.mubr.bf16.gmra.mxu0 %v2759
  %v2821 = vpop.f32.mrf.mxu0
  %v2822 = vadd.f32 0.0, %v2821
  %v2823 = vpop.f32.mrf.mxu0
  %v2824 = vpop.f32.mrf.mxu0
  %v2825 = vadd.f32 0.0, %v2824
  %v2826 = vpop.f32.mrf.mxu0
  %2827 = vmatprep.mubr.bf16.mxu0 0
  %2828 = vmatmul.mubr.bf16.gmra.mxu0 %v2762
  %v2829 = vpop.f32.mrf.mxu0
  %v2830 = vadd.f32 0.0, %v2829
  %v2831 = vpop.f32.mrf.mxu0
  %v2832 = vpop.f32.mrf.mxu0
  %v2833 = vadd.f32 0.0, %v2832
  %v2834 = vpop.f32.mrf.mxu0
  %2835 = vmatprep.mubr.bf16.mxu0 0
  %2836 = vmatmul.mubr.bf16.gmra.mxu0 %v2765
  %v2837 = vpop.f32.mrf.mxu0
  %v2838 = vadd.f32 0.0, %v2837
  %v2839 = vpop.f32.mrf.mxu0
  %v2840 = vpop.f32.mrf.mxu0
  %v2841 = vadd.f32 0.0, %v2840
  %v2842 = vpop.f32.mrf.mxu0
  %2843 = vdwg.mxu0
  %v2844 = vmul.f32 %v2709, 0.35355338
  %v2845 = vmul.f32 %v2712, 0.35355338
  %v2846 = vmul.f32 %v2717, 0.35355338
  %v2847 = vmul.f32 %v2720, 0.35355338
  %v2848 = vmul.f32 %v2725, 0.35355338
  %v2849 = vmul.f32 %v2728, 0.35355338
  %v2850 = vmul.f32 %v2733, 0.35355338
  %v2851 = vmul.f32 %v2736, 0.35355338
  %v2852 = vmul.f32 %v2814, 0.35355338
  %v2853 = vmul.f32 %v2817, 0.35355338
  %v2854 = vmul.f32 %v2822, 0.35355338
  %v2855 = vmul.f32 %v2825, 0.35355338
  %v2856 = vmul.f32 %v2830, 0.35355338
  %v2857 = vmul.f32 %v2833, 0.35355338
  %v2858 = vmul.f32 %v2838, 0.35355338
  %v2859 = vmul.f32 %v2841, 0.35355338
  %v2860 = vsel %vm677, %v2844, -inf
  %2861 = vmax.xlane.f32.xlu0 %v2860
  %v2862 = vpop.xlane.xlu0 %2861
  %v2863 = vsel %vm677, %v2845, -inf
  %2864 = vmax.xlane.f32.xlu0 %v2863
  %v2865 = vpop.xlane.xlu0 %2864
  %v2866 = vsel %vm677, %v2846, -inf
  %2867 = vmax.xlane.f32.xlu0 %v2866
  %v2868 = vpop.xlane.xlu0 %2867
  %v2869 = vsel %vm677, %v2847, -inf
  %2870 = vmax.xlane.f32.xlu0 %v2869
  %v2871 = vpop.xlane.xlu0 %2870
  %v2872 = vsel %vm677, %v2848, -inf
  %2873 = vmax.xlane.f32.xlu0 %v2872
  %v2874 = vpop.xlane.xlu0 %2873
  %v2875 = vsel %vm677, %v2849, -inf
  %2876 = vmax.xlane.f32.xlu0 %v2875
  %v2877 = vpop.xlane.xlu0 %2876
  %v2878 = vsel %vm677, %v2850, -inf
  %2879 = vmax.xlane.f32.xlu0 %v2878
  %v2880 = vpop.xlane.xlu0 %2879
  %v2881 = vsel %vm677, %v2851, -inf
  %2882 = vmax.xlane.f32.xlu0 %v2881
  %v2883 = vpop.xlane.xlu0 %2882
  %v2884 = vsel %vm677, %v2852, -inf
  %2885 = vmax.xlane.f32.xlu0 %v2884
  %v2886 = vpop.xlane.xlu0 %2885
  %v2887 = vsel %vm677, %v2853, -inf
  %2888 = vmax.xlane.f32.xlu0 %v2887
  %v2889 = vpop.xlane.xlu0 %2888
  %v2890 = vsel %vm677, %v2854, -inf
  %2891 = vmax.xlane.f32.xlu0 %v2890
  %v2892 = vpop.xlane.xlu0 %2891
  %v2893 = vsel %vm677, %v2855, -inf
  %2894 = vmax.xlane.f32.xlu0 %v2893
  %v2895 = vpop.xlane.xlu0 %2894
  %v2896 = vsel %vm677, %v2856, -inf
  %2897 = vmax.xlane.f32.xlu0 %v2896
  %v2898 = vpop.xlane.xlu0 %2897
  %v2899 = vsel %vm677, %v2857, -inf
  %2900 = vmax.xlane.f32.xlu0 %v2899
  %v2901 = vpop.xlane.xlu0 %2900
  %v2902 = vsel %vm677, %v2858, -inf
  %2903 = vmax.xlane.f32.xlu0 %v2902
  %v2904 = vpop.xlane.xlu0 %2903
  %v2905 = vsel %vm677, %v2859, -inf
  %2906 = vmax.xlane.f32.xlu0 %v2905
  %v2907 = vpop.xlane.xlu0 %2906
  %v2908 = vsub.f32 %v2844, %v2862
  %v2909 = vsub.f32 %v2845, %v2865
  %v2910 = vsub.f32 %v2846, %v2868
  %v2911 = vsub.f32 %v2847, %v2871
  %v2912 = vsub.f32 %v2848, %v2874
  %v2913 = vsub.f32 %v2849, %v2877
  %v2914 = vsub.f32 %v2850, %v2880
  %v2915 = vsub.f32 %v2851, %v2883
  %v2916 = vsub.f32 %v2852, %v2886
  %v2917 = vsub.f32 %v2853, %v2889
  %v2918 = vsub.f32 %v2854, %v2892
  %v2919 = vsub.f32 %v2855, %v2895
  %v2920 = vsub.f32 %v2856, %v2898
  %v2921 = vsub.f32 %v2857, %v2901
  %v2922 = vsub.f32 %v2858, %v2904
  %v2923 = vsub.f32 %v2859, %v2907
  %v2924 = vmul.f32 %v2908, 1.442695
  %v2925 = vpow.pop %v2924
  %v2926 = vmul.f32 %v2909, 1.442695
  %v2927 = vpow.pop %v2926
  %v2928 = vmul.f32 %v2910, 1.442695
  %v2929 = vpow.pop %v2928
  %v2930 = vmul.f32 %v2911, 1.442695
  %v2931 = vpow.pop %v2930
  %v2932 = vmul.f32 %v2912, 1.442695
  %v2933 = vpow.pop %v2932
  %v2934 = vmul.f32 %v2913, 1.442695
  %v2935 = vpow.pop %v2934
  %v2936 = vmul.f32 %v2914, 1.442695
  %v2937 = vpow.pop %v2936
  %v2938 = vmul.f32 %v2915, 1.442695
  %v2939 = vpow.pop %v2938
  %v2940 = vmul.f32 %v2916, 1.442695
  %v2941 = vpow.pop %v2940
  %v2942 = vmul.f32 %v2917, 1.442695
  %v2943 = vpow.pop %v2942
  %v2944 = vmul.f32 %v2918, 1.442695
  %v2945 = vpow.pop %v2944
  %v2946 = vmul.f32 %v2919, 1.442695
  %v2947 = vpow.pop %v2946
  %v2948 = vmul.f32 %v2920, 1.442695
  %v2949 = vpow.pop %v2948
  %v2950 = vmul.f32 %v2921, 1.442695
  %v2951 = vpow.pop %v2950
  %v2952 = vmul.f32 %v2922, 1.442695
  %v2953 = vpow.pop %v2952
  %v2954 = vmul.f32 %v2923, 1.442695
  %v2955 = vpow.pop %v2954
  %v2956 = vsel %vm677, %v2925, 0.0
  %2957 = vadd.xlane.f32.xlu0 %v2956
  %v2958 = vpop.xlane.xlu0 %2957
  %v2959 = vsel %vm677, %v2927, 0.0
  %2960 = vadd.xlane.f32.xlu0 %v2959
  %v2961 = vpop.xlane.xlu0 %2960
  %v2962 = vsel %vm677, %v2929, 0.0
  %2963 = vadd.xlane.f32.xlu0 %v2962
  %v2964 = vpop.xlane.xlu0 %2963
  %v2965 = vsel %vm677, %v2931, 0.0
  %2966 = vadd.xlane.f32.xlu0 %v2965
  %v2967 = vpop.xlane.xlu0 %2966
  %v2968 = vsel %vm677, %v2933, 0.0
  %2969 = vadd.xlane.f32.xlu0 %v2968
  %v2970 = vpop.xlane.xlu0 %2969
  %v2971 = vsel %vm677, %v2935, 0.0
  %2972 = vadd.xlane.f32.xlu0 %v2971
  %v2973 = vpop.xlane.xlu0 %2972
  %v2974 = vsel %vm677, %v2937, 0.0
  %2975 = vadd.xlane.f32.xlu0 %v2974
  %v2976 = vpop.xlane.xlu0 %2975
  %v2977 = vsel %vm677, %v2939, 0.0
  %2978 = vadd.xlane.f32.xlu0 %v2977
  %v2979 = vpop.xlane.xlu0 %2978
  %v2980 = vsel %vm677, %v2941, 0.0
  %2981 = vadd.xlane.f32.xlu0 %v2980
  %v2982 = vpop.xlane.xlu0 %2981
  %v2983 = vsel %vm677, %v2943, 0.0
  %2984 = vadd.xlane.f32.xlu0 %v2983
  %v2985 = vpop.xlane.xlu0 %2984
  %v2986 = vsel %vm677, %v2945, 0.0
  %2987 = vadd.xlane.f32.xlu0 %v2986
  %v2988 = vpop.xlane.xlu0 %2987
  %v2989 = vsel %vm677, %v2947, 0.0
  %2990 = vadd.xlane.f32.xlu0 %v2989
  %v2991 = vpop.xlane.xlu0 %2990
  %v2992 = vsel %vm677, %v2949, 0.0
  %2993 = vadd.xlane.f32.xlu0 %v2992
  %v2994 = vpop.xlane.xlu0 %2993
  %v2995 = vsel %vm677, %v2951, 0.0
  %2996 = vadd.xlane.f32.xlu0 %v2995
  %v2997 = vpop.xlane.xlu0 %2996
  %v2998 = vsel %vm677, %v2953, 0.0
  %2999 = vadd.xlane.f32.xlu0 %v2998
  %v3000 = vpop.xlane.xlu0 %2999
  %v3001 = vsel %vm677, %v2955, 0.0
  %3002 = vadd.xlane.f32.xlu0 %v3001
  %v3003 = vpop.xlane.xlu0 %3002
  %v3004 = vpack.c.bf16 %v2927, %v2925
  %v3005 = vpack.c.bf16 %v2931, %v2929
  %v3006 = vpack.c.bf16 %v2935, %v2933
  %v3007 = vpack.c.bf16 %v2939, %v2937
  %v3008 = vpack.c.bf16 %v2943, %v2941
  %v3009 = vpack.c.bf16 %v2947, %v2945
  %v3010 = vpack.c.bf16 %v2951, %v2949
  %v3011 = vpack.c.bf16 %v2955, %v2953
  %3012 = vrot.lane.b32.xlu0 %v450, 40
  %v3013 = vpop.permute.xlu0 %3012
  %3014 = vrot.lane.b32.xlu0 %v451, 40
  %v3015 = vpop.permute.xlu0 %3014
  %3016 = vrot.lane.b32.xlu0 %v452, 40
  %v3017 = vpop.permute.xlu0 %3016
  %3018 = vrot.lane.b32.xlu0 %v453, 40
  %v3019 = vpop.permute.xlu0 %3018
  %v3025 = vsel %vm677, %v3004, 0
  %v3028 = vsel %vm677, %v3005, 0
  %v3031 = vsel %vm677, %v3006, 0
  %v3034 = vsel %vm677, %v3007, 0
  %3036 = vmatprep.subr.bf16.mxu0 0
  %3037 = vmatpush1.bf16.msra.mxu0 0
  %3038 = vmatprep.subr.bf16.mxu0 0
  %3039 = vmatpush1.bf16.msra.mxu0 0
  %3040 = vmatprep.subr.bf16.mxu0 0
  %3041 = vmatpush1.bf16.msra.mxu0 0
  %3042 = vmatprep.subr.bf16.mxu0 0
  %3043 = vmatpush1.bf16.msra.mxu0 0
  %3044 = vmatprep.subr.bf16.mxu0 0
  %3045 = vmatpush1.bf16.msra.mxu0 %v3019
  %3046 = vmatprep.subr.bf16.mxu0 0
  %3047 = vmatpush1.bf16.msra.mxu0 %v3017
  %3048 = vmatprep.subr.bf16.mxu0 0
  %3049 = vmatpush1.bf16.msra.mxu0 %v3015
  %3050 = vmatprep.subr.bf16.mxu0 0
  %3051 = vmatpush1.bf16.msra.mxu0 %v3013
  %3052 = vmatprep.subr.bf16.mxu0 0
  %3053 = vmatpush2.bf16.msra.mxu0 0
  %3054 = vmatprep.subr.bf16.mxu0 0
  %3055 = vmatpush2.bf16.msra.mxu0 0
  %3056 = vmatprep.subr.bf16.mxu0 0
  %3057 = vmatpush2.bf16.msra.mxu0 0
  %3058 = vmatprep.subr.bf16.mxu0 0
  %3059 = vmatpush2.bf16.msra.mxu0 0
  %3060 = vmatprep.subr.bf16.mxu0 0
  %3061 = vmatpush2.bf16.msra.mxu0 0
  %3062 = vmatprep.subr.bf16.mxu0 0
  %3063 = vmatpush2.bf16.msra.mxu0 0
  %3064 = vmatprep.subr.bf16.mxu0 0
  %3065 = vmatpush2.bf16.msra.mxu0 0
  %3066 = vmatprep.subr.bf16.mxu0 0
  %3067 = vmatpush2.bf16.msra.mxu0 0
  %3068 = vmatprep.mubr.bf16.mxu0 0
  %3069 = vmatmul.mubr.bf16.gmra.mxu0 %v3025
  %v3070 = vpop.f32.mrf.mxu0
  %v3071 = vadd.f32 0.0, %v3070
  %v3072 = vpop.f32.mrf.mxu0
  %v3073 = vpop.f32.mrf.mxu0
  %v3074 = vadd.f32 0.0, %v3073
  %v3075 = vpop.f32.mrf.mxu0
  %3076 = vmatprep.mubr.bf16.mxu0 0
  %3077 = vmatmul.mubr.bf16.gmra.mxu0 %v3028
  %v3078 = vpop.f32.mrf.mxu0
  %v3079 = vadd.f32 0.0, %v3078
  %v3080 = vpop.f32.mrf.mxu0
  %v3081 = vpop.f32.mrf.mxu0
  %v3082 = vadd.f32 0.0, %v3081
  %v3083 = vpop.f32.mrf.mxu0
  %3084 = vmatprep.mubr.bf16.mxu0 0
  %3085 = vmatmul.mubr.bf16.gmra.mxu0 %v3031
  %v3086 = vpop.f32.mrf.mxu0
  %v3087 = vadd.f32 0.0, %v3086
  %v3088 = vpop.f32.mrf.mxu0
  %v3089 = vpop.f32.mrf.mxu0
  %v3090 = vadd.f32 0.0, %v3089
  %v3091 = vpop.f32.mrf.mxu0
  %3092 = vmatprep.mubr.bf16.mxu0 0
  %3093 = vmatmul.mubr.bf16.gmra.mxu0 %v3034
  %v3094 = vpop.f32.mrf.mxu0
  %v3095 = vadd.f32 0.0, %v3094
  %v3096 = vpop.f32.mrf.mxu0
  %v3097 = vpop.f32.mrf.mxu0
  %v3098 = vadd.f32 0.0, %v3097
  %v3099 = vpop.f32.mrf.mxu0
  %3100 = vdwg.mxu0
  %3101 = vrot.lane.b32.xlu0 %v454, 40
  %v3102 = vpop.permute.xlu0 %3101
  %3103 = vrot.lane.b32.xlu0 %v455, 40
  %v3104 = vpop.permute.xlu0 %3103
  %3105 = vrot.lane.b32.xlu0 %v456, 40
  %v3106 = vpop.permute.xlu0 %3105
  %3107 = vrot.lane.b32.xlu0 %v457, 40
  %v3108 = vpop.permute.xlu0 %3107
  %v3114 = vsel %vm677, %v3008, 0
  %v3117 = vsel %vm677, %v3009, 0
  %v3120 = vsel %vm677, %v3010, 0
  %v3123 = vsel %vm677, %v3011, 0
  %3125 = vmatprep.subr.bf16.mxu0 0
  %3126 = vmatpush1.bf16.msra.mxu0 0
  %3127 = vmatprep.subr.bf16.mxu0 0
  %3128 = vmatpush1.bf16.msra.mxu0 0
  %3129 = vmatprep.subr.bf16.mxu0 0
  %3130 = vmatpush1.bf16.msra.mxu0 0
  %3131 = vmatprep.subr.bf16.mxu0 0
  %3132 = vmatpush1.bf16.msra.mxu0 0
  %3133 = vmatprep.subr.bf16.mxu0 0
  %3134 = vmatpush1.bf16.msra.mxu0 %v3108
  %3135 = vmatprep.subr.bf16.mxu0 0
  %3136 = vmatpush1.bf16.msra.mxu0 %v3106
  %3137 = vmatprep.subr.bf16.mxu0 0
  %3138 = vmatpush1.bf16.msra.mxu0 %v3104
  %3139 = vmatprep.subr.bf16.mxu0 0
  %3140 = vmatpush1.bf16.msra.mxu0 %v3102
  %3141 = vmatprep.subr.bf16.mxu0 0
  %3142 = vmatpush2.bf16.msra.mxu0 0
  %3143 = vmatprep.subr.bf16.mxu0 0
  %3144 = vmatpush2.bf16.msra.mxu0 0
  %3145 = vmatprep.subr.bf16.mxu0 0
  %3146 = vmatpush2.bf16.msra.mxu0 0
  %3147 = vmatprep.subr.bf16.mxu0 0
  %3148 = vmatpush2.bf16.msra.mxu0 0
  %3149 = vmatprep.subr.bf16.mxu0 0
  %3150 = vmatpush2.bf16.msra.mxu0 0
  %3151 = vmatprep.subr.bf16.mxu0 0
  %3152 = vmatpush2.bf16.msra.mxu0 0
  %3153 = vmatprep.subr.bf16.mxu0 0
  %3154 = vmatpush2.bf16.msra.mxu0 0
  %3155 = vmatprep.subr.bf16.mxu0 0
  %3156 = vmatpush2.bf16.msra.mxu0 0
  %3157 = vmatprep.mubr.bf16.mxu0 0
  %3158 = vmatmul.mubr.bf16.gmra.mxu0 %v3114
  %v3159 = vpop.f32.mrf.mxu0
  %v3160 = vadd.f32 0.0, %v3159
  %v3161 = vpop.f32.mrf.mxu0
  %v3162 = vpop.f32.mrf.mxu0
  %v3163 = vadd.f32 0.0, %v3162
  %v3164 = vpop.f32.mrf.mxu0
  %3165 = vmatprep.mubr.bf16.mxu0 0
  %3166 = vmatmul.mubr.bf16.gmra.mxu0 %v3117
  %v3167 = vpop.f32.mrf.mxu0
  %v3168 = vadd.f32 0.0, %v3167
  %v3169 = vpop.f32.mrf.mxu0
  %v3170 = vpop.f32.mrf.mxu0
  %v3171 = vadd.f32 0.0, %v3170
  %v3172 = vpop.f32.mrf.mxu0
  %3173 = vmatprep.mubr.bf16.mxu0 0
  %3174 = vmatmul.mubr.bf16.gmra.mxu0 %v3120
  %v3175 = vpop.f32.mrf.mxu0
  %v3176 = vadd.f32 0.0, %v3175
  %v3177 = vpop.f32.mrf.mxu0
  %v3178 = vpop.f32.mrf.mxu0
  %v3179 = vadd.f32 0.0, %v3178
  %v3180 = vpop.f32.mrf.mxu0
  %3181 = vmatprep.mubr.bf16.mxu0 0
  %3182 = vmatmul.mubr.bf16.gmra.mxu0 %v3123
  %v3183 = vpop.f32.mrf.mxu0
  %v3184 = vadd.f32 0.0, %v3183
  %v3185 = vpop.f32.mrf.mxu0
  %v3186 = vpop.f32.mrf.mxu0
  %v3187 = vadd.f32 0.0, %v3186
  %v3188 = vpop.f32.mrf.mxu0
  %3189 = vdwg.mxu0
  %v3190 = vrcp.pop %v2958
  %v3191 = vrcp.pop %v2961
  %v3192 = vrcp.pop %v2964
  %v3193 = vrcp.pop %v2967
  %v3194 = vrcp.pop %v2970
  %v3195 = vrcp.pop %v2973
  %v3196 = vrcp.pop %v2976
  %v3197 = vrcp.pop %v2979
  %v3198 = vrcp.pop %v2982
  %v3199 = vrcp.pop %v2985
  %v3200 = vrcp.pop %v2988
  %v3201 = vrcp.pop %v2991
  %v3202 = vrcp.pop %v2994
  %v3203 = vrcp.pop %v2997
  %v3204 = vrcp.pop %v3000
  %v3205 = vrcp.pop %v3003
  %v3206 = vmul.f32 %v3071, %v3190
  %v3207 = vmul.f32 %v3074, %v3191
  %v3208 = vmul.f32 %v3079, %v3192
  %v3209 = vmul.f32 %v3082, %v3193
  %v3210 = vmul.f32 %v3087, %v3194
  %v3211 = vmul.f32 %v3090, %v3195
  %v3212 = vmul.f32 %v3095, %v3196
  %v3213 = vmul.f32 %v3098, %v3197
  %v3214 = vmul.f32 %v3160, %v3198
  %v3215 = vmul.f32 %v3163, %v3199
  %v3216 = vmul.f32 %v3168, %v3200
  %v3217 = vmul.f32 %v3171, %v3201
  %v3218 = vmul.f32 %v3176, %v3202
  %v3219 = vmul.f32 %v3179, %v3203
  %v3220 = vmul.f32 %v3184, %v3204
  %v3221 = vmul.f32 %v3187, %v3205
  %v3222 = vpack.c.bf16 %v3207, %v3206
  %v3223 = vpack.c.bf16 %v3209, %v3208
  %v3224 = vpack.c.bf16 %v3211, %v3210
  %v3225 = vpack.c.bf16 %v3213, %v3212
  %v3226 = vpack.c.bf16 %v3215, %v3214
  %v3227 = vpack.c.bf16 %v3217, %v3216
  %v3228 = vpack.c.bf16 %v3219, %v3218
  %v3229 = vpack.c.bf16 %v3221, %v3220
  %s3230 = scalar_lea.vmem %s3, 12
  %v3231 = vld [vmem:[%s3230] sm:$0xf]
  %v3233 = vsel %vm470, %v3222, 0
  %v3236 = vsel %vm470, %v3223, 0
  %v3239 = vsel %vm470, %v3224, 0
  %v3242 = vsel %vm470, %v3225, 0
  %v3245 = vsel %vm470, %v3226, 0
  %v3248 = vsel %vm470, %v3227, 0
  %v3251 = vsel %vm470, %v3228, 0
  %v3254 = vsel %vm470, %v3229, 0
  %v3257 = vsel %vm1671, %v3231, 0
  %3259 = vmatprep.subr.bf16.mxu0 0
  %3260 = vmatpush1.bf16.msra.mxu0 0
  %3261 = vmatprep.subr.bf16.mxu0 0
  %3262 = vmatpush1.bf16.msra.mxu0 0
  %3263 = vmatprep.subr.bf16.mxu0 0
  %3264 = vmatpush1.bf16.msra.mxu0 0
  %3265 = vmatprep.subr.bf16.mxu0 0
  %3266 = vmatpush1.bf16.msra.mxu0 0
  %3267 = vmatprep.subr.bf16.mxu0 0
  %3268 = vmatpush1.bf16.msra.mxu0 0
  %3269 = vmatprep.subr.bf16.mxu0 0
  %3270 = vmatpush1.bf16.msra.mxu0 0
  %3271 = vmatprep.subr.bf16.mxu0 0
  %3272 = vmatpush1.bf16.msra.mxu0 0
  %3273 = vmatprep.subr.bf16.mxu0 0
  %3274 = vmatpush1.bf16.msra.mxu0 %v3257
  %3275 = vmatprep.subr.bf16.mxu0 0
  %3276 = vmatpush2.bf16.msra.mxu0 0
  %3277 = vmatprep.subr.bf16.mxu0 0
  %3278 = vmatpush2.bf16.msra.mxu0 0
  %3279 = vmatprep.subr.bf16.mxu0 0
  %3280 = vmatpush2.bf16.msra.mxu0 0
  %3281 = vmatprep.subr.bf16.mxu0 0
  %3282 = vmatpush2.bf16.msra.mxu0 0
  %3283 = vmatprep.subr.bf16.mxu0 0
  %3284 = vmatpush2.bf16.msra.mxu0 0
  %3285 = vmatprep.subr.bf16.mxu0 0
  %3286 = vmatpush2.bf16.msra.mxu0 0
  %3287 = vmatprep.subr.bf16.mxu0 0
  %3288 = vmatpush2.bf16.msra.mxu0 0
  %3289 = vmatprep.subr.bf16.mxu0 0
  %3290 = vmatpush2.bf16.msra.mxu0 0
  %3291 = vmatprep.mubr.bf16.mxu0 0
  %3292 = vmatmul.mubr.bf16.gmra.mxu0 %v3233
  %v3293 = vpop.f32.mrf.mxu0
  %v3294 = vadd.f32 0.0, %v3293
  %v3295 = vpop.f32.mrf.mxu0
  %v3296 = vpop.f32.mrf.mxu0
  %v3297 = vadd.f32 0.0, %v3296
  %v3298 = vpop.f32.mrf.mxu0
  %3299 = vmatprep.mubr.bf16.mxu0 0
  %3300 = vmatmul.mubr.bf16.gmra.mxu0 %v3236
  %v3301 = vpop.f32.mrf.mxu0
  %v3302 = vadd.f32 0.0, %v3301
  %v3303 = vpop.f32.mrf.mxu0
  %v3304 = vpop.f32.mrf.mxu0
  %v3305 = vadd.f32 0.0, %v3304
  %v3306 = vpop.f32.mrf.mxu0
  %3307 = vmatprep.mubr.bf16.mxu0 0
  %3308 = vmatmul.mubr.bf16.gmra.mxu0 %v3239
  %v3309 = vpop.f32.mrf.mxu0
  %v3310 = vadd.f32 0.0, %v3309
  %v3311 = vpop.f32.mrf.mxu0
  %v3312 = vpop.f32.mrf.mxu0
  %v3313 = vadd.f32 0.0, %v3312
  %v3314 = vpop.f32.mrf.mxu0
  %3315 = vmatprep.mubr.bf16.mxu0 0
  %3316 = vmatmul.mubr.bf16.gmra.mxu0 %v3242
  %v3317 = vpop.f32.mrf.mxu0
  %v3318 = vadd.f32 0.0, %v3317
  %v3319 = vpop.f32.mrf.mxu0
  %v3320 = vpop.f32.mrf.mxu0
  %v3321 = vadd.f32 0.0, %v3320
  %v3322 = vpop.f32.mrf.mxu0
  %3323 = vmatprep.mubr.bf16.mxu0 0
  %3324 = vmatmul.mubr.bf16.gmra.mxu0 %v3245
  %v3325 = vpop.f32.mrf.mxu0
  %v3326 = vadd.f32 0.0, %v3325
  %v3327 = vpop.f32.mrf.mxu0
  %v3328 = vpop.f32.mrf.mxu0
  %v3329 = vadd.f32 0.0, %v3328
  %v3330 = vpop.f32.mrf.mxu0
  %3331 = vmatprep.mubr.bf16.mxu0 0
  %3332 = vmatmul.mubr.bf16.gmra.mxu0 %v3248
  %v3333 = vpop.f32.mrf.mxu0
  %v3334 = vadd.f32 0.0, %v3333
  %v3335 = vpop.f32.mrf.mxu0
  %v3336 = vpop.f32.mrf.mxu0
  %v3337 = vadd.f32 0.0, %v3336
  %v3338 = vpop.f32.mrf.mxu0
  %3339 = vmatprep.mubr.bf16.mxu0 0
  %3340 = vmatmul.mubr.bf16.gmra.mxu0 %v3251
  %v3341 = vpop.f32.mrf.mxu0
  %v3342 = vadd.f32 0.0, %v3341
  %v3343 = vpop.f32.mrf.mxu0
  %v3344 = vpop.f32.mrf.mxu0
  %v3345 = vadd.f32 0.0, %v3344
  %v3346 = vpop.f32.mrf.mxu0
  %3347 = vmatprep.mubr.bf16.mxu0 0
  %3348 = vmatmul.mubr.bf16.gmra.mxu0 %v3254
  %v3349 = vpop.f32.mrf.mxu0
  %v3350 = vadd.f32 0.0, %v3349
  %v3351 = vpop.f32.mrf.mxu0
  %v3352 = vpop.f32.mrf.mxu0
  %v3353 = vadd.f32 0.0, %v3352
  %v3354 = vpop.f32.mrf.mxu0
  %3355 = vdwg.mxu0
  %v3356 = vadd.f32 %v2618, %v3294
  %v3357 = vadd.f32 %v2619, %v3297
  %v3358 = vadd.f32 %v2620, %v3302
  %v3359 = vadd.f32 %v2621, %v3305
  %v3360 = vadd.f32 %v2622, %v3310
  %v3361 = vadd.f32 %v2623, %v3313
  %v3362 = vadd.f32 %v2624, %v3318
  %v3363 = vadd.f32 %v2625, %v3321
  %v3364 = vadd.f32 %v2626, %v3326
  %v3365 = vadd.f32 %v2627, %v3329
  %v3366 = vadd.f32 %v2628, %v3334
  %v3367 = vadd.f32 %v2629, %v3337
  %v3368 = vadd.f32 %v2630, %v3342
  %v3369 = vadd.f32 %v2631, %v3345
  %v3370 = vadd.f32 %v2632, %v3350
  %v3371 = vadd.f32 %v2633, %v3353
  %v3372 = vlaneseq
  %v3373 = vshrl.u32 %v3372, 7
  %v3374 = vsub.s32 0, %v3373
  %v3375 = vrot.slane %v45, %v3374
  %v3376 = vadd.f32 %v3356, %v3375
  %v3377 = vadd.f32 %v3357, %v3375
  %v3378 = vadd.f32 %v3358, %v3375
  %v3379 = vadd.f32 %v3359, %v3375
  %v3380 = vadd.f32 %v3360, %v3375
  %v3381 = vadd.f32 %v3361, %v3375
  %v3382 = vadd.f32 %v3362, %v3375
  %v3383 = vadd.f32 %v3363, %v3375
  %v3384 = vadd.f32 %v3364, %v3375
  %v3385 = vadd.f32 %v3365, %v3375
  %v3386 = vadd.f32 %v3366, %v3375
  %v3387 = vadd.f32 %v3367, %v3375
  %v3388 = vadd.f32 %v3368, %v3375
  %v3389 = vadd.f32 %v3369, %v3375
  %v3390 = vadd.f32 %v3370, %v3375
  %v3391 = vadd.f32 %v3371, %v3375
  %v3392 = vadd.f32 %v3376, %v27
  %v3393 = vadd.f32 %v3377, %v28
  %v3394 = vadd.f32 %v3378, %v29
  %v3395 = vadd.f32 %v3379, %v30
  %v3396 = vadd.f32 %v3380, %v31
  %v3397 = vadd.f32 %v3381, %v32
  %v3398 = vadd.f32 %v3382, %v33
  %v3399 = vadd.f32 %v3383, %v34
  %v3400 = vadd.f32 %v3384, %v35
  %v3401 = vadd.f32 %v3385, %v36
  %v3402 = vadd.f32 %v3386, %v37
  %v3403 = vadd.f32 %v3387, %v38
  %v3404 = vadd.f32 %v3388, %v39
  %v3405 = vadd.f32 %v3389, %v40
  %v3406 = vadd.f32 %v3390, %v41
  %v3407 = vadd.f32 %v3391, %v42
  %v3408 = vsel %vm48, %v3392, 0.0
  %3409 = vadd.xlane.f32.xlu0 %v3408
  %v3410 = vpop.xlane.xlu0 %3409
  %v3411 = vsel %vm48, %v3393, 0.0
  %3412 = vadd.xlane.f32.xlu0 %v3411
  %v3413 = vpop.xlane.xlu0 %3412
  %v3414 = vsel %vm48, %v3394, 0.0
  %3415 = vadd.xlane.f32.xlu0 %v3414
  %v3416 = vpop.xlane.xlu0 %3415
  %v3417 = vsel %vm48, %v3395, 0.0
  %3418 = vadd.xlane.f32.xlu0 %v3417
  %v3419 = vpop.xlane.xlu0 %3418
  %v3420 = vsel %vm48, %v3396, 0.0
  %3421 = vadd.xlane.f32.xlu0 %v3420
  %v3422 = vpop.xlane.xlu0 %3421
  %v3423 = vsel %vm48, %v3397, 0.0
  %3424 = vadd.xlane.f32.xlu0 %v3423
  %v3425 = vpop.xlane.xlu0 %3424
  %v3426 = vsel %vm48, %v3398, 0.0
  %3427 = vadd.xlane.f32.xlu0 %v3426
  %v3428 = vpop.xlane.xlu0 %3427
  %v3429 = vsel %vm48, %v3399, 0.0
  %3430 = vadd.xlane.f32.xlu0 %v3429
  %v3431 = vpop.xlane.xlu0 %3430
  %v3432 = vsel %vm48, %v3400, 0.0
  %3433 = vadd.xlane.f32.xlu0 %v3432
  %v3434 = vpop.xlane.xlu0 %3433
  %v3435 = vsel %vm48, %v3401, 0.0
  %3436 = vadd.xlane.f32.xlu0 %v3435
  %v3437 = vpop.xlane.xlu0 %3436
  %v3438 = vsel %vm48, %v3402, 0.0
  %3439 = vadd.xlane.f32.xlu0 %v3438
  %v3440 = vpop.xlane.xlu0 %3439
  %v3441 = vsel %vm48, %v3403, 0.0
  %3442 = vadd.xlane.f32.xlu0 %v3441
  %v3443 = vpop.xlane.xlu0 %3442
  %v3444 = vsel %vm48, %v3404, 0.0
  %3445 = vadd.xlane.f32.xlu0 %v3444
  %v3446 = vpop.xlane.xlu0 %3445
  %v3447 = vsel %vm48, %v3405, 0.0
  %3448 = vadd.xlane.f32.xlu0 %v3447
  %v3449 = vpop.xlane.xlu0 %3448
  %v3450 = vsel %vm48, %v3406, 0.0
  %3451 = vadd.xlane.f32.xlu0 %v3450
  %v3452 = vpop.xlane.xlu0 %3451
  %v3453 = vsel %vm48, %v3407, 0.0
  %3454 = vadd.xlane.f32.xlu0 %v3453
  %v3455 = vpop.xlane.xlu0 %3454
  %v3456 = vmul.f32 %v3410, %v97
  %v3457 = vmul.f32 %v3413, %v97
  %v3458 = vmul.f32 %v3416, %v97
  %v3459 = vmul.f32 %v3419, %v97
  %v3460 = vmul.f32 %v3422, %v97
  %v3461 = vmul.f32 %v3425, %v97
  %v3462 = vmul.f32 %v3428, %v97
  %v3463 = vmul.f32 %v3431, %v97
  %v3464 = vmul.f32 %v3434, %v97
  %v3465 = vmul.f32 %v3437, %v97
  %v3466 = vmul.f32 %v3440, %v97
  %v3467 = vmul.f32 %v3443, %v97
  %v3468 = vmul.f32 %v3446, %v97
  %v3469 = vmul.f32 %v3449, %v97
  %v3470 = vmul.f32 %v3452, %v97
  %v3471 = vmul.f32 %v3455, %v97
  %v3472 = vsub.f32 %v3392, %v3456
  %v3473 = vsub.f32 %v3393, %v3457
  %v3474 = vsub.f32 %v3394, %v3458
  %v3475 = vsub.f32 %v3395, %v3459
  %v3476 = vsub.f32 %v3396, %v3460
  %v3477 = vsub.f32 %v3397, %v3461
  %v3478 = vsub.f32 %v3398, %v3462
  %v3479 = vsub.f32 %v3399, %v3463
  %v3480 = vsub.f32 %v3400, %v3464
  %v3481 = vsub.f32 %v3401, %v3465
  %v3482 = vsub.f32 %v3402, %v3466
  %v3483 = vsub.f32 %v3403, %v3467
  %v3484 = vsub.f32 %v3404, %v3468
  %v3485 = vsub.f32 %v3405, %v3469
  %v3486 = vsub.f32 %v3406, %v3470
  %v3487 = vsub.f32 %v3407, %v3471
  %v3488 = vmul.f32 %v3472, %v3472
  %v3489 = vmul.f32 %v3473, %v3473
  %v3490 = vmul.f32 %v3474, %v3474
  %v3491 = vmul.f32 %v3475, %v3475
  %v3492 = vmul.f32 %v3476, %v3476
  %v3493 = vmul.f32 %v3477, %v3477
  %v3494 = vmul.f32 %v3478, %v3478
  %v3495 = vmul.f32 %v3479, %v3479
  %v3496 = vmul.f32 %v3480, %v3480
  %v3497 = vmul.f32 %v3481, %v3481
  %v3498 = vmul.f32 %v3482, %v3482
  %v3499 = vmul.f32 %v3483, %v3483
  %v3500 = vmul.f32 %v3484, %v3484
  %v3501 = vmul.f32 %v3485, %v3485
  %v3502 = vmul.f32 %v3486, %v3486
  %v3503 = vmul.f32 %v3487, %v3487
  %v3504 = vsel %vm48, %v3488, 0.0
  %3505 = vadd.xlane.f32.xlu0 %v3504
  %v3506 = vpop.xlane.xlu0 %3505
  %v3507 = vsel %vm48, %v3489, 0.0
  %3508 = vadd.xlane.f32.xlu0 %v3507
  %v3509 = vpop.xlane.xlu0 %3508
  %v3510 = vsel %vm48, %v3490, 0.0
  %3511 = vadd.xlane.f32.xlu0 %v3510
  %v3512 = vpop.xlane.xlu0 %3511
  %v3513 = vsel %vm48, %v3491, 0.0
  %3514 = vadd.xlane.f32.xlu0 %v3513
  %v3515 = vpop.xlane.xlu0 %3514
  %v3516 = vsel %vm48, %v3492, 0.0
  %3517 = vadd.xlane.f32.xlu0 %v3516
  %v3518 = vpop.xlane.xlu0 %3517
  %v3519 = vsel %vm48, %v3493, 0.0
  %3520 = vadd.xlane.f32.xlu0 %v3519
  %v3521 = vpop.xlane.xlu0 %3520
  %v3522 = vsel %vm48, %v3494, 0.0
  %3523 = vadd.xlane.f32.xlu0 %v3522
  %v3524 = vpop.xlane.xlu0 %3523
  %v3525 = vsel %vm48, %v3495, 0.0
  %3526 = vadd.xlane.f32.xlu0 %v3525
  %v3527 = vpop.xlane.xlu0 %3526
  %v3528 = vsel %vm48, %v3496, 0.0
  %3529 = vadd.xlane.f32.xlu0 %v3528
  %v3530 = vpop.xlane.xlu0 %3529
  %v3531 = vsel %vm48, %v3497, 0.0
  %3532 = vadd.xlane.f32.xlu0 %v3531
  %v3533 = vpop.xlane.xlu0 %3532
  %v3534 = vsel %vm48, %v3498, 0.0
  %3535 = vadd.xlane.f32.xlu0 %v3534
  %v3536 = vpop.xlane.xlu0 %3535
  %v3537 = vsel %vm48, %v3499, 0.0
  %3538 = vadd.xlane.f32.xlu0 %v3537
  %v3539 = vpop.xlane.xlu0 %3538
  %v3540 = vsel %vm48, %v3500, 0.0
  %3541 = vadd.xlane.f32.xlu0 %v3540
  %v3542 = vpop.xlane.xlu0 %3541
  %v3543 = vsel %vm48, %v3501, 0.0
  %3544 = vadd.xlane.f32.xlu0 %v3543
  %v3545 = vpop.xlane.xlu0 %3544
  %v3546 = vsel %vm48, %v3502, 0.0
  %3547 = vadd.xlane.f32.xlu0 %v3546
  %v3548 = vpop.xlane.xlu0 %3547
  %v3549 = vsel %vm48, %v3503, 0.0
  %3550 = vadd.xlane.f32.xlu0 %v3549
  %v3551 = vpop.xlane.xlu0 %3550
  %v3552 = vmul.f32 %v3506, %v97
  %v3553 = vmul.f32 %v3509, %v97
  %v3554 = vmul.f32 %v3512, %v97
  %v3555 = vmul.f32 %v3515, %v97
  %v3556 = vmul.f32 %v3518, %v97
  %v3557 = vmul.f32 %v3521, %v97
  %v3558 = vmul.f32 %v3524, %v97
  %v3559 = vmul.f32 %v3527, %v97
  %v3560 = vmul.f32 %v3530, %v97
  %v3561 = vmul.f32 %v3533, %v97
  %v3562 = vmul.f32 %v3536, %v97
  %v3563 = vmul.f32 %v3539, %v97
  %v3564 = vmul.f32 %v3542, %v97
  %v3565 = vmul.f32 %v3545, %v97
  %v3566 = vmul.f32 %v3548, %v97
  %v3567 = vmul.f32 %v3551, %v97
  %v3568 = vadd.f32 %v3552, 1e-05
  %v3569 = vadd.f32 %v3553, 1e-05
  %v3570 = vadd.f32 %v3554, 1e-05
  %v3571 = vadd.f32 %v3555, 1e-05
  %v3572 = vadd.f32 %v3556, 1e-05
  %v3573 = vadd.f32 %v3557, 1e-05
  %v3574 = vadd.f32 %v3558, 1e-05
  %v3575 = vadd.f32 %v3559, 1e-05
  %v3576 = vadd.f32 %v3560, 1e-05
  %v3577 = vadd.f32 %v3561, 1e-05
  %v3578 = vadd.f32 %v3562, 1e-05
  %v3579 = vadd.f32 %v3563, 1e-05
  %v3580 = vadd.f32 %v3564, 1e-05
  %v3581 = vadd.f32 %v3565, 1e-05
  %v3582 = vadd.f32 %v3566, 1e-05
  %v3583 = vadd.f32 %v3567, 1e-05
  %v3584 = vrsqrt.pop %v3568
  %v3585 = vrsqrt.pop %v3569
  %v3586 = vrsqrt.pop %v3570
  %v3587 = vrsqrt.pop %v3571
  %v3588 = vrsqrt.pop %v3572
  %v3589 = vrsqrt.pop %v3573
  %v3590 = vrsqrt.pop %v3574
  %v3591 = vrsqrt.pop %v3575
  %v3592 = vrsqrt.pop %v3576
  %v3593 = vrsqrt.pop %v3577
  %v3594 = vrsqrt.pop %v3578
  %v3595 = vrsqrt.pop %v3579
  %v3596 = vrsqrt.pop %v3580
  %v3597 = vrsqrt.pop %v3581
  %v3598 = vrsqrt.pop %v3582
  %v3599 = vrsqrt.pop %v3583
  %v3600 = vmul.f32 %v3472, %v3584
  %v3601 = vmul.f32 %v3473, %v3585
  %v3602 = vmul.f32 %v3474, %v3586
  %v3603 = vmul.f32 %v3475, %v3587
  %v3604 = vmul.f32 %v3476, %v3588
  %v3605 = vmul.f32 %v3477, %v3589
  %v3606 = vmul.f32 %v3478, %v3590
  %v3607 = vmul.f32 %v3479, %v3591
  %v3608 = vmul.f32 %v3480, %v3592
  %v3609 = vmul.f32 %v3481, %v3593
  %v3610 = vmul.f32 %v3482, %v3594
  %v3611 = vmul.f32 %v3483, %v3595
  %v3612 = vmul.f32 %v3484, %v3596
  %v3613 = vmul.f32 %v3485, %v3597
  %v3614 = vmul.f32 %v3486, %v3598
  %v3615 = vmul.f32 %v3487, %v3599
  %v3616 = vmul.f32 %v3600, %v261
  %v3617 = vmul.f32 %v3601, %v261
  %v3618 = vmul.f32 %v3602, %v261
  %v3619 = vmul.f32 %v3603, %v261
  %v3620 = vmul.f32 %v3604, %v261
  %v3621 = vmul.f32 %v3605, %v261
  %v3622 = vmul.f32 %v3606, %v261
  %v3623 = vmul.f32 %v3607, %v261
  %v3624 = vmul.f32 %v3608, %v261
  %v3625 = vmul.f32 %v3609, %v261
  %v3626 = vmul.f32 %v3610, %v261
  %v3627 = vmul.f32 %v3611, %v261
  %v3628 = vmul.f32 %v3612, %v261
  %v3629 = vmul.f32 %v3613, %v261
  %v3630 = vmul.f32 %v3614, %v261
  %v3631 = vmul.f32 %v3615, %v261
  %v3632 = vadd.f32 %v3616, %v281
  %v3633 = vadd.f32 %v3617, %v281
  %v3634 = vadd.f32 %v3618, %v281
  %v3635 = vadd.f32 %v3619, %v281
  %v3636 = vadd.f32 %v3620, %v281
  %v3637 = vadd.f32 %v3621, %v281
  %v3638 = vadd.f32 %v3622, %v281
  %v3639 = vadd.f32 %v3623, %v281
  %v3640 = vadd.f32 %v3624, %v281
  %v3641 = vadd.f32 %v3625, %v281
  %v3642 = vadd.f32 %v3626, %v281
  %v3643 = vadd.f32 %v3627, %v281
  %v3644 = vadd.f32 %v3628, %v281
  %v3645 = vadd.f32 %v3629, %v281
  %v3646 = vadd.f32 %v3630, %v281
  %v3647 = vadd.f32 %v3631, %v281
  %v3648 = vpack.c.bf16 %v3633, %v3632
  %v3649 = vpack.c.bf16 %v3635, %v3634
  %v3650 = vpack.c.bf16 %v3637, %v3636
  %v3651 = vpack.c.bf16 %v3639, %v3638
  %v3652 = vpack.c.bf16 %v3641, %v3640
  %v3653 = vpack.c.bf16 %v3643, %v3642
  %v3654 = vpack.c.bf16 %v3645, %v3644
  %v3655 = vpack.c.bf16 %v3647, %v3646
  %v3656 = vld [vmem:[%s4] sm:$0xf]
  %v3657 = vld [vmem:[%s4 + $0x4] sm:$0xf]
  %v3658 = vld [vmem:[%s4 + $0x8] sm:$0xf]
  %v3659 = vld [vmem:[%s4 + $0xc] sm:$0xf]
  %v3660 = vlaneseq
  %v3661 = vshrl.u32 %v3660, 7
  %v3662 = vsub.s32 0, %v3661
  %v3663 = vrot.slane %v46, %v3662
  %v3668 = vunpack.c.l.b16 %v3656
  %v3669 = vunpack.c.l.b16 %v3657
  %v3670 = vunpack.c.l.b16 %v3658
  %v3671 = vunpack.c.l.b16 %v3659
  %v3672 = vpack.c.b16 %v3669, %v3668
  %v3673 = vpack.c.b16 %v3671, %v3670
  %v3677 = vsel %vm48, %v3648, 0
  %v3680 = vsel %vm48, %v3649, 0
  %v3683 = vsel %vm48, %v3650, 0
  %v3686 = vsel %vm48, %v3651, 0
  %v3689 = vsel %vm48, %v3652, 0
  %v3692 = vsel %vm48, %v3653, 0
  %v3695 = vsel %vm48, %v3654, 0
  %v3698 = vsel %vm48, %v3655, 0
  %3700 = vmatprep.subr.bf16.mxu0 0
  %3701 = vmatpush1.bf16.msra.mxu0 0
  %3702 = vmatprep.subr.bf16.mxu0 0
  %3703 = vmatpush1.bf16.msra.mxu0 0
  %3704 = vmatprep.subr.bf16.mxu0 0
  %3705 = vmatpush1.bf16.msra.mxu0 0
  %3706 = vmatprep.subr.bf16.mxu0 0
  %3707 = vmatpush1.bf16.msra.mxu0 0
  %3708 = vmatprep.subr.bf16.mxu0 0
  %3709 = vmatpush1.bf16.msra.mxu0 0
  %3710 = vmatprep.subr.bf16.mxu0 0
  %3711 = vmatpush1.bf16.msra.mxu0 0
  %3712 = vmatprep.subr.bf16.mxu0 0
  %3713 = vmatpush1.bf16.msra.mxu0 %v3673
  %3714 = vmatprep.subr.bf16.mxu0 0
  %3715 = vmatpush1.bf16.msra.mxu0 %v3672
  %3716 = vmatprep.subr.bf16.mxu0 0
  %3717 = vmatpush2.bf16.msra.mxu0 0
  %3718 = vmatprep.subr.bf16.mxu0 0
  %3719 = vmatpush2.bf16.msra.mxu0 0
  %3720 = vmatprep.subr.bf16.mxu0 0
  %3721 = vmatpush2.bf16.msra.mxu0 0
  %3722 = vmatprep.subr.bf16.mxu0 0
  %3723 = vmatpush2.bf16.msra.mxu0 0
  %3724 = vmatprep.subr.bf16.mxu0 0
  %3725 = vmatpush2.bf16.msra.mxu0 0
  %3726 = vmatprep.subr.bf16.mxu0 0
  %3727 = vmatpush2.bf16.msra.mxu0 0
  %3728 = vmatprep.subr.bf16.mxu0 0
  %3729 = vmatpush2.bf16.msra.mxu0 0
  %3730 = vmatprep.subr.bf16.mxu0 0
  %3731 = vmatpush2.bf16.msra.mxu0 0
  %3732 = vmatprep.mubr.bf16.mxu0 0
  %3733 = vmatmul.mubr.bf16.gmra.mxu0 %v3677
  %v3734 = vpop.f32.mrf.mxu0
  %v3735 = vadd.f32 %v3663, %v3734
  %v3736 = vpop.f32.mrf.mxu0
  %v3737 = vpop.f32.mrf.mxu0
  %v3738 = vadd.f32 %v3663, %v3737
  %v3739 = vpop.f32.mrf.mxu0
  %3740 = vmatprep.mubr.bf16.mxu0 0
  %3741 = vmatmul.mubr.bf16.gmra.mxu0 %v3680
  %v3742 = vpop.f32.mrf.mxu0
  %v3743 = vadd.f32 %v3663, %v3742
  %v3744 = vpop.f32.mrf.mxu0
  %v3745 = vpop.f32.mrf.mxu0
  %v3746 = vadd.f32 %v3663, %v3745
  %v3747 = vpop.f32.mrf.mxu0
  %3748 = vmatprep.mubr.bf16.mxu0 0
  %3749 = vmatmul.mubr.bf16.gmra.mxu0 %v3683
  %v3750 = vpop.f32.mrf.mxu0
  %v3751 = vadd.f32 %v3663, %v3750
  %v3752 = vpop.f32.mrf.mxu0
  %v3753 = vpop.f32.mrf.mxu0
  %v3754 = vadd.f32 %v3663, %v3753
  %v3755 = vpop.f32.mrf.mxu0
  %3756 = vmatprep.mubr.bf16.mxu0 0
  %3757 = vmatmul.mubr.bf16.gmra.mxu0 %v3686
  %v3758 = vpop.f32.mrf.mxu0
  %v3759 = vadd.f32 %v3663, %v3758
  %v3760 = vpop.f32.mrf.mxu0
  %v3761 = vpop.f32.mrf.mxu0
  %v3762 = vadd.f32 %v3663, %v3761
  %v3763 = vpop.f32.mrf.mxu0
  %3764 = vmatprep.mubr.bf16.mxu0 0
  %3765 = vmatmul.mubr.bf16.gmra.mxu0 %v3689
  %v3766 = vpop.f32.mrf.mxu0
  %v3767 = vadd.f32 %v3663, %v3766
  %v3768 = vpop.f32.mrf.mxu0
  %v3769 = vpop.f32.mrf.mxu0
  %v3770 = vadd.f32 %v3663, %v3769
  %v3771 = vpop.f32.mrf.mxu0
  %3772 = vmatprep.mubr.bf16.mxu0 0
  %3773 = vmatmul.mubr.bf16.gmra.mxu0 %v3692
  %v3774 = vpop.f32.mrf.mxu0
  %v3775 = vadd.f32 %v3663, %v3774
  %v3776 = vpop.f32.mrf.mxu0
  %v3777 = vpop.f32.mrf.mxu0
  %v3778 = vadd.f32 %v3663, %v3777
  %v3779 = vpop.f32.mrf.mxu0
  %3780 = vmatprep.mubr.bf16.mxu0 0
  %3781 = vmatmul.mubr.bf16.gmra.mxu0 %v3695
  %v3782 = vpop.f32.mrf.mxu0
  %v3783 = vadd.f32 %v3663, %v3782
  %v3784 = vpop.f32.mrf.mxu0
  %v3785 = vpop.f32.mrf.mxu0
  %v3786 = vadd.f32 %v3663, %v3785
  %v3787 = vpop.f32.mrf.mxu0
  %3788 = vmatprep.mubr.bf16.mxu0 0
  %3789 = vmatmul.mubr.bf16.gmra.mxu0 %v3698
  %v3790 = vpop.f32.mrf.mxu0
  %v3791 = vadd.f32 %v3663, %v3790
  %v3792 = vpop.f32.mrf.mxu0
  %v3793 = vpop.f32.mrf.mxu0
  %v3794 = vadd.f32 %v3663, %v3793
  %v3795 = vpop.f32.mrf.mxu0
  %3796 = vdwg.mxu0
  %v3797 = vmul.f32 %v3735, 0.5
  %v3798 = vmul.f32 %v3738, 0.5
  %v3799 = vmul.f32 %v3743, 0.5
  %v3800 = vmul.f32 %v3746, 0.5
  %v3801 = vmul.f32 %v3751, 0.5
  %v3802 = vmul.f32 %v3754, 0.5
  %v3803 = vmul.f32 %v3759, 0.5
  %v3804 = vmul.f32 %v3762, 0.5
  %v3805 = vmul.f32 %v3767, 0.5
  %v3806 = vmul.f32 %v3770, 0.5
  %v3807 = vmul.f32 %v3775, 0.5
  %v3808 = vmul.f32 %v3778, 0.5
  %v3809 = vmul.f32 %v3783, 0.5
  %v3810 = vmul.f32 %v3786, 0.5
  %v3811 = vmul.f32 %v3791, 0.5
  %v3812 = vmul.f32 %v3794, 0.5
  %v3813 = vmul.f32 %v3735, 0.70710677
  %v3814 = vmul.f32 %v3738, 0.70710677
  %v3815 = vmul.f32 %v3743, 0.70710677
  %v3816 = vmul.f32 %v3746, 0.70710677
  %v3817 = vmul.f32 %v3751, 0.70710677
  %v3818 = vmul.f32 %v3754, 0.70710677
  %v3819 = vmul.f32 %v3759, 0.70710677
  %v3820 = vmul.f32 %v3762, 0.70710677
  %v3821 = vmul.f32 %v3767, 0.70710677
  %v3822 = vmul.f32 %v3770, 0.70710677
  %v3823 = vmul.f32 %v3775, 0.70710677
  %v3824 = vmul.f32 %v3778, 0.70710677
  %v3825 = vmul.f32 %v3783, 0.70710677
  %v3826 = vmul.f32 %v3786, 0.70710677
  %v3827 = vmul.f32 %v3791, 0.70710677
  %v3828 = vmul.f32 %v3794, 0.70710677
  %v3829 = verf.f32.pop %v3813
  %v3830 = verf.f32.pop %v3814
  %v3831 = verf.f32.pop %v3815
  %v3832 = verf.f32.pop %v3816
  %v3833 = verf.f32.pop %v3817
  %v3834 = verf.f32.pop %v3818
  %v3835 = verf.f32.pop %v3819
  %v3836 = verf.f32.pop %v3820
  %v3837 = verf.f32.pop %v3821
  %v3838 = verf.f32.pop %v3822
  %v3839 = verf.f32.pop %v3823
  %v3840 = verf.f32.pop %v3824
  %v3841 = verf.f32.pop %v3825
  %v3842 = verf.f32.pop %v3826
  %v3843 = verf.f32.pop %v3827
  %v3844 = verf.f32.pop %v3828
  %v3845 = vadd.f32 %v3829, 1.0
  %v3846 = vadd.f32 %v3830, 1.0
  %v3847 = vadd.f32 %v3831, 1.0
  %v3848 = vadd.f32 %v3832, 1.0
  %v3849 = vadd.f32 %v3833, 1.0
  %v3850 = vadd.f32 %v3834, 1.0
  %v3851 = vadd.f32 %v3835, 1.0
  %v3852 = vadd.f32 %v3836, 1.0
  %v3853 = vadd.f32 %v3837, 1.0
  %v3854 = vadd.f32 %v3838, 1.0
  %v3855 = vadd.f32 %v3839, 1.0
  %v3856 = vadd.f32 %v3840, 1.0
  %v3857 = vadd.f32 %v3841, 1.0
  %v3858 = vadd.f32 %v3842, 1.0
  %v3859 = vadd.f32 %v3843, 1.0
  %v3860 = vadd.f32 %v3844, 1.0
  %v3861 = vmul.f32 %v3797, %v3845
  %v3862 = vmul.f32 %v3798, %v3846
  %v3863 = vmul.f32 %v3799, %v3847
  %v3864 = vmul.f32 %v3800, %v3848
  %v3865 = vmul.f32 %v3801, %v3849
  %v3866 = vmul.f32 %v3802, %v3850
  %v3867 = vmul.f32 %v3803, %v3851
  %v3868 = vmul.f32 %v3804, %v3852
  %v3869 = vmul.f32 %v3805, %v3853
  %v3870 = vmul.f32 %v3806, %v3854
  %v3871 = vmul.f32 %v3807, %v3855
  %v3872 = vmul.f32 %v3808, %v3856
  %v3873 = vmul.f32 %v3809, %v3857
  %v3874 = vmul.f32 %v3810, %v3858
  %v3875 = vmul.f32 %v3811, %v3859
  %v3876 = vmul.f32 %v3812, %v3860
  %v3877 = vpack.c.bf16 %v3862, %v3861
  %v3878 = vpack.c.bf16 %v3864, %v3863
  %v3879 = vpack.c.bf16 %v3866, %v3865
  %v3880 = vpack.c.bf16 %v3868, %v3867
  %v3881 = vpack.c.bf16 %v3870, %v3869
  %v3882 = vpack.c.bf16 %v3872, %v3871
  %v3883 = vpack.c.bf16 %v3874, %v3873
  %v3884 = vpack.c.bf16 %v3876, %v3875
  %v3885 = vld [vmem:[%s5] sm:$0xf]
  %v3886 = vld [vmem:[%s5 + $0x4] sm:$0xf]
  %v3887 = vld [vmem:[%s5 + $0x8] sm:$0xf]
  %v3888 = vld [vmem:[%s5 + $0xc] sm:$0xf]
  %v3889 = vlaneseq
  %v3890 = vshrl.u32 %v3889, 7
  %v3891 = vsub.s32 0, %v3890
  %v3892 = vrot.slane %v47, %v3891
  %v3897 = vunpack.c.l.b16 %v3885
  %v3898 = vunpack.c.l.b16 %v3886
  %v3899 = vunpack.c.l.b16 %v3887
  %v3900 = vunpack.c.l.b16 %v3888
  %v3901 = vpack.c.b16 %v3898, %v3897
  %v3902 = vpack.c.b16 %v3900, %v3899
  %v3906 = vsel %vm48, %v3877, 0
  %v3909 = vsel %vm48, %v3878, 0
  %v3912 = vsel %vm48, %v3879, 0
  %v3915 = vsel %vm48, %v3880, 0
  %v3918 = vsel %vm48, %v3881, 0
  %v3921 = vsel %vm48, %v3882, 0
  %v3924 = vsel %vm48, %v3883, 0
  %v3927 = vsel %vm48, %v3884, 0
  %3929 = vmatprep.subr.bf16.mxu0 0
  %3930 = vmatpush1.bf16.msra.mxu0 0
  %3931 = vmatprep.subr.bf16.mxu0 0
  %3932 = vmatpush1.bf16.msra.mxu0 0
  %3933 = vmatprep.subr.bf16.mxu0 0
  %3934 = vmatpush1.bf16.msra.mxu0 0
  %3935 = vmatprep.subr.bf16.mxu0 0
  %3936 = vmatpush1.bf16.msra.mxu0 0
  %3937 = vmatprep.subr.bf16.mxu0 0
  %3938 = vmatpush1.bf16.msra.mxu0 0
  %3939 = vmatprep.subr.bf16.mxu0 0
  %3940 = vmatpush1.bf16.msra.mxu0 0
  %3941 = vmatprep.subr.bf16.mxu0 0
  %3942 = vmatpush1.bf16.msra.mxu0 %v3902
  %3943 = vmatprep.subr.bf16.mxu0 0
  %3944 = vmatpush1.bf16.msra.mxu0 %v3901
  %3945 = vmatprep.subr.bf16.mxu0 0
  %3946 = vmatpush2.bf16.msra.mxu0 0
  %3947 = vmatprep.subr.bf16.mxu0 0
  %3948 = vmatpush2.bf16.msra.mxu0 0
  %3949 = vmatprep.subr.bf16.mxu0 0
  %3950 = vmatpush2.bf16.msra.mxu0 0
  %3951 = vmatprep.subr.bf16.mxu0 0
  %3952 = vmatpush2.bf16.msra.mxu0 0
  %3953 = vmatprep.subr.bf16.mxu0 0
  %3954 = vmatpush2.bf16.msra.mxu0 0
  %3955 = vmatprep.subr.bf16.mxu0 0
  %3956 = vmatpush2.bf16.msra.mxu0 0
  %3957 = vmatprep.subr.bf16.mxu0 0
  %3958 = vmatpush2.bf16.msra.mxu0 0
  %3959 = vmatprep.subr.bf16.mxu0 0
  %3960 = vmatpush2.bf16.msra.mxu0 0
  %3961 = vmatprep.mubr.bf16.mxu0 0
  %3962 = vmatmul.mubr.bf16.gmra.mxu0 %v3906
  %v3963 = vpop.f32.mrf.mxu0
  %v3964 = vadd.f32 %v3892, %v3963
  %v3965 = vpop.f32.mrf.mxu0
  %v3966 = vpop.f32.mrf.mxu0
  %v3967 = vadd.f32 %v3892, %v3966
  %v3968 = vpop.f32.mrf.mxu0
  %3969 = vmatprep.mubr.bf16.mxu0 0
  %3970 = vmatmul.mubr.bf16.gmra.mxu0 %v3909
  %v3971 = vpop.f32.mrf.mxu0
  %v3972 = vadd.f32 %v3892, %v3971
  %v3973 = vpop.f32.mrf.mxu0
  %v3974 = vpop.f32.mrf.mxu0
  %v3975 = vadd.f32 %v3892, %v3974
  %v3976 = vpop.f32.mrf.mxu0
  %3977 = vmatprep.mubr.bf16.mxu0 0
  %3978 = vmatmul.mubr.bf16.gmra.mxu0 %v3912
  %v3979 = vpop.f32.mrf.mxu0
  %v3980 = vadd.f32 %v3892, %v3979
  %v3981 = vpop.f32.mrf.mxu0
  %v3982 = vpop.f32.mrf.mxu0
  %v3983 = vadd.f32 %v3892, %v3982
  %v3984 = vpop.f32.mrf.mxu0
  %3985 = vmatprep.mubr.bf16.mxu0 0
  %3986 = vmatmul.mubr.bf16.gmra.mxu0 %v3915
  %v3987 = vpop.f32.mrf.mxu0
  %v3988 = vadd.f32 %v3892, %v3987
  %v3989 = vpop.f32.mrf.mxu0
  %v3990 = vpop.f32.mrf.mxu0
  %v3991 = vadd.f32 %v3892, %v3990
  %v3992 = vpop.f32.mrf.mxu0
  %3993 = vmatprep.mubr.bf16.mxu0 0
  %3994 = vmatmul.mubr.bf16.gmra.mxu0 %v3918
  %v3995 = vpop.f32.mrf.mxu0
  %v3996 = vadd.f32 %v3892, %v3995
  %v3997 = vpop.f32.mrf.mxu0
  %v3998 = vpop.f32.mrf.mxu0
  %v3999 = vadd.f32 %v3892, %v3998
  %v4000 = vpop.f32.mrf.mxu0
  %4001 = vmatprep.mubr.bf16.mxu0 0
  %4002 = vmatmul.mubr.bf16.gmra.mxu0 %v3921
  %v4003 = vpop.f32.mrf.mxu0
  %v4004 = vadd.f32 %v3892, %v4003
  %v4005 = vpop.f32.mrf.mxu0
  %v4006 = vpop.f32.mrf.mxu0
  %v4007 = vadd.f32 %v3892, %v4006
  %v4008 = vpop.f32.mrf.mxu0
  %4009 = vmatprep.mubr.bf16.mxu0 0
  %4010 = vmatmul.mubr.bf16.gmra.mxu0 %v3924
  %v4011 = vpop.f32.mrf.mxu0
  %v4012 = vadd.f32 %v3892, %v4011
  %v4013 = vpop.f32.mrf.mxu0
  %v4014 = vpop.f32.mrf.mxu0
  %v4015 = vadd.f32 %v3892, %v4014
  %v4016 = vpop.f32.mrf.mxu0
  %4017 = vmatprep.mubr.bf16.mxu0 0
  %4018 = vmatmul.mubr.bf16.gmra.mxu0 %v3927
  %v4019 = vpop.f32.mrf.mxu0
  %v4020 = vadd.f32 %v3892, %v4019
  %v4021 = vpop.f32.mrf.mxu0
  %v4022 = vpop.f32.mrf.mxu0
  %v4023 = vadd.f32 %v3892, %v4022
  %v4024 = vpop.f32.mrf.mxu0
  %4025 = vdwg.mxu0
  %v4026 = vadd.f32 %v3964, %v3392
  %v4027 = vadd.f32 %v3967, %v3393
  %v4028 = vadd.f32 %v3972, %v3394
  %v4029 = vadd.f32 %v3975, %v3395
  %v4030 = vadd.f32 %v3980, %v3396
  %v4031 = vadd.f32 %v3983, %v3397
  %v4032 = vadd.f32 %v3988, %v3398
  %v4033 = vadd.f32 %v3991, %v3399
  %v4034 = vadd.f32 %v3996, %v3400
  %v4035 = vadd.f32 %v3999, %v3401
  %v4036 = vadd.f32 %v4004, %v3402
  %v4037 = vadd.f32 %v4007, %v3403
  %v4038 = vadd.f32 %v4012, %v3404
  %v4039 = vadd.f32 %v4015, %v3405
  %v4040 = vadd.f32 %v4020, %v3406
  %v4041 = vadd.f32 %v4023, %v3407
  %4042 = vst.msk [vmem:[%s7] sm:$0xff] %vm48, %v4026
  %4043 = vst.msk [vmem:[%s7 + $0x8] sm:$0xff] %vm48, %v4027
  %4044 = vst.msk [vmem:[%s7 + $0x10] sm:$0xff] %vm48, %v4028
  %4045 = vst.msk [vmem:[%s7 + $0x18] sm:$0xff] %vm48, %v4029
  %4046 = vst.msk [vmem:[%s7 + $0x20] sm:$0xff] %vm48, %v4030
  %4047 = vst.msk [vmem:[%s7 + $0x28] sm:$0xff] %vm48, %v4031
  %4048 = vst.msk [vmem:[%s7 + $0x30] sm:$0xff] %vm48, %v4032
  %4049 = vst.msk [vmem:[%s7 + $0x38] sm:$0xff] %vm48, %v4033
  %4050 = vst.msk [vmem:[%s7 + $0x40] sm:$0xff] %vm48, %v4034
  %4051 = vst.msk [vmem:[%s7 + $0x48] sm:$0xff] %vm48, %v4035
  %4052 = vst.msk [vmem:[%s7 + $0x50] sm:$0xff] %vm48, %v4036
  %4053 = vst.msk [vmem:[%s7 + $0x58] sm:$0xff] %vm48, %v4037
  %4054 = vst.msk [vmem:[%s7 + $0x60] sm:$0xff] %vm48, %v4038
  %4055 = vst.msk [vmem:[%s7 + $0x68] sm:$0xff] %vm48, %v4039
  %4056 = vst.msk [vmem:[%s7 + $0x70] sm:$0xff] %vm48, %v4040
  %4057 = vst.msk [vmem:[%s7 + $0x78] sm:$0xff] %vm48, %v4041
  // Predicated region
  $region30: #{tpu_custom_call.1} parent=0 // pred_check
    _
  $region31: #{tpu_custom_call.1} parent=0 // pred_check_branch
    %4059 = sbr.rel (0) target = $region33
  $region32: #{tpu_custom_call.1} parent=0 // pred_region
    _
  $region33: #{tpu_custom_call.1} parent=0 // pred_fallthru
    _
  // Predicated region
  $region34: #{tpu_custom_call.1} parent=0 // pred_check
    _
  $region35: #{tpu_custom_call.1} parent=0 // pred_check_branch
    %4061 = sbr.rel (0) target = $region37
  $region36: #{tpu_custom_call.1} parent=0 // pred_region
    _
  $region37: #{tpu_custom_call.1} parent=0 // pred_fallthru
    _

</llo_original>
